<compile_context>
chip_gen: v7x
topology: tpu7x:2x2x1
jax: 0.10.0
libtpu: 0.0.40
codegen_flags: <defaults>
</compile_context>

<pallas_src>
import jax
import jax.numpy as jnp
from jax.experimental import pallas as pl
from jax.experimental.pallas import tpu as pltpu

NUM_CLASSES = 5
FEATURE_DIM = 512      # resnet34 feature_dim
PATCH = 32             # resnet34 total spatial stride
LANE = 128             # lane-dense logits width (sliced back to NUM_CLASSES)


def _round_up(a, b):
    return (a + b - 1) // b * b


@jax.jit
def resnet_classifier(x, params):
    """x: (N, 3, H, W) NCHW float32 -> logits (N, NUM_CLASSES) float32."""
    N, C, H, W = x.shape
    Hp, Wp = H // PATCH, W // PATCH
    P = Hp * Wp                      # pooled spatial positions per image
    K = C * PATCH * PATCH            # im2col contraction length
    inv_p = 1.0 / float(P)           # true-P mean (padding never enters the pool)

    # Batch row tile: multiple of 8 (f32 sublanes), capped at 128 (v5e MXU rows).
    TN = min(128, _round_up(N, 8))
    N_pad = _round_up(N, TN)

    # im2col to patch-major (P, N_pad, K); K ordering is (c, ph, pw), matching
    # the stand-in stem weight rows.  f32 end-to-end (no bf16 round trip).
    patches = x.reshape(N, C, Hp, PATCH, Wp, PATCH)
    patches = patches.transpose(2, 4, 0, 1, 3, 5).reshape(P, N, K)
    if N_pad != N:
        patches = jnp.pad(patches, ((0, 0), (0, N_pad - N), (0, 0)))

    w_stem = params["w_stem"]                                       # (K, 512)
    w_cls = jnp.pad(params["w_cls"],
                    ((0, 0), (0, LANE - NUM_CLASSES)))              # (512, 128)
    b_cls = jnp.pad(params["b_cls"],
                    (0, LANE - NUM_CLASSES)).reshape(1, LANE)       # (1, 128)

    def kernel(p_ref, ws_ref, wc_ref, b_ref, o_ref, acc_ref):
        p_step = pl.program_id(1)

        @pl.when(p_step == 0)
        def _init():
            acc_ref[...] = jnp.zeros_like(acc_ref)

        # Per-image running patch sum (input of the global-average-pool).
        acc_ref[...] += p_ref[0]                                    # (TN, K)

        @pl.when(p_step == pl.num_programs(1) - 1)
        def _finalize():
            pooled = acc_ref[...] * inv_p                           # mean over P
            # Stem projection: pool-then-matmul == matmul-then-pool (linear).
            feats = jnp.dot(pooled, ws_ref[...],
                            preferred_element_type=jnp.float32)     # (TN, 512)
            # Dropout(0.5) = identity in eval mode; batched classifier head.
            logits = jnp.dot(feats, wc_ref[...],
                             preferred_element_type=jnp.float32) + b_ref[...]
            o_ref[...] = logits                                     # (TN, 128)

    batch_tiles = N_pad // TN
    cost = pl.CostEstimate(
        flops=(2 * N_pad * K * FEATURE_DIM          # stem matmul (per tile, pooled)
               + 2 * N_pad * FEATURE_DIM * LANE     # classifier head
               + N_pad * P * K),                    # pooling adds
        transcendentals=0,
        bytes_accessed=(patches.size * 4 + w_stem.size * 4
                        + w_cls.size * 4 + b_cls.size * 4
                        + N_pad * LANE * 4),
    )

    out = pl.pallas_call(
        kernel,
        out_shape=jax.ShapeDtypeStruct((N_pad, LANE), jnp.float32),
        grid_spec=pltpu.PrefetchScalarGridSpec(
            num_scalar_prefetch=0,
            grid=(batch_tiles, P),
            in_specs=[
                pl.BlockSpec((1, TN, K), lambda i, p: (p, i, 0)),        # patches
                pl.BlockSpec((K, FEATURE_DIM), lambda i, p: (0, 0)),     # w_stem (resident)
                pl.BlockSpec((FEATURE_DIM, LANE), lambda i, p: (0, 0)),  # w_cls
                pl.BlockSpec((1, LANE), lambda i, p: (0, 0)),            # b_cls
            ],
            out_specs=pl.BlockSpec((TN, LANE), lambda i, p: (i, 0)),
            scratch_shapes=[pltpu.VMEM((TN, K), jnp.float32)],
        ),
        compiler_params=pltpu.CompilerParams(
            dimension_semantics=("parallel", "arbitrary"),
            vmem_limit_bytes=32 * 1024 * 1024),
        cost_estimate=cost,
    )(patches, w_stem, w_cls, b_cls)

    return out[:N, :NUM_CLASSES]


def _reference(x, params):
    """Pure-JAX reference in the original order: per-patch matmul, mean pool, head."""
    N, C, H, W = x.shape
    Hp, Wp = H // PATCH, W // PATCH
    patches = x.reshape(N, C, Hp, PATCH, Wp, PATCH)
    patches = patches.transpose(0, 2, 4, 1, 3, 5).reshape(N, Hp * Wp, -1)
    feat = jnp.einsum("npk,kc->npc", patches, params["w_stem"],
                      preferred_element_type=jnp.float32)            # (N, P, 512)
    pooled = feat.mean(axis=1)                                       # (N, 512)
    return jnp.dot(pooled, params["w_cls"]) + params["b_cls"]


if __name__ == "__main__":
    key = jax.random.PRNGKey(0)
    k_stem, k_cls, k_b, k_x = jax.random.split(key, 4)

    # Deterministic synthetic parameters (shapes follow the module __init__).
    params = {
        "w_stem": jax.random.normal(
            k_stem, (3 * PATCH * PATCH, FEATURE_DIM), jnp.float32) * 0.02,
        "w_cls": jax.random.normal(
            k_cls, (FEATURE_DIM, NUM_CLASSES), jnp.float32) * 0.05,
        "b_cls": jax.random.normal(k_b, (NUM_CLASSES,), jnp.float32) * 0.01,
    }

    # Small NCHW image batch consistent with the module: (batch=2, 3, 64, 64).
    x = jax.random.normal(k_x, (2, 3, 64, 64), jnp.float32)

    logits = jax.block_until_ready(resnet_classifier(x, params))
    ref = _reference(x, params)

    assert logits.shape == (2, NUM_CLASSES), logits.shape
    assert jnp.allclose(logits, ref, atol=1e-2, rtol=1e-2), (
        "mismatch vs reference: max |d| = "
        f"{float(jnp.max(jnp.abs(logits - ref)))}")

    print("KERNEL_OK")
</pallas_src>

<mosaic_0001>
module attributes {stable_mosaic.version = 11 : i64} {
  func.func @kernel(%arg0: i32, %arg1: i32, %arg2: memref<1x8x3072xf32, #tpu.memory_space<vmem>>, %arg3: memref<3072x512xf32, #tpu.memory_space<vmem>>, %arg4: memref<512x128xf32, #tpu.memory_space<vmem>>, %arg5: memref<1x128xf32, #tpu.memory_space<vmem>>, %arg6: memref<8x128xf32, #tpu.memory_space<vmem>>, %arg7: memref<8x3072xf32, #tpu.memory_space<vmem>>) attributes {dimension_semantics = [#tpu.dimension_semantics<parallel>, #tpu.dimension_semantics<arbitrary>], iteration_bounds = array<i64: 1, 4>, scalar_prefetch = 0 : i64, scratch_operands = 1 : i64, tpu.core_type = #tpu.core_type<tc>, window_params = [{transform_indices = @transform_0, window_bounds = array<i64: 1, 8, 3072>}, {pipeline_mode = #tpu.pipeline_mode<synchronous>, transform_indices = @transform_1, window_bounds = array<i64: 3072, 512>}, {pipeline_mode = #tpu.pipeline_mode<synchronous>, transform_indices = @transform_2, window_bounds = array<i64: 512, 128>}, {pipeline_mode = #tpu.pipeline_mode<synchronous>, transform_indices = @transform_3, window_bounds = array<i64: 1, 128>}, {transform_indices = @transform_4, window_bounds = array<i64: 8, 128>}]} {
    %c0_i32 = arith.constant 0 : i32
    %0 = arith.cmpi eq, %arg1, %c0_i32 : i32
    %1 = arith.extui %0 : i1 to i32
    %c0_i32_0 = arith.constant 0 : i32
    %2 = arith.cmpi ne, %1, %c0_i32_0 : i32
    scf.if %2 {
      %cst = arith.constant 0.000000e+00 : f32
      %11 = vector.broadcast %cst : f32 to vector<8x3072xf32>
      %c0_8 = arith.constant 0 : index
      %c0_9 = arith.constant 0 : index
      %12 = vector.load %arg7[%c0_8, %c0_9] : memref<8x3072xf32, #tpu.memory_space<vmem>>, vector<8x3072xf32>
      tpu.vector_store %arg7[%c0_8, %c0_9], %11 {strides = array<i32>} : memref<8x3072xf32, #tpu.memory_space<vmem>>, vector<8x3072xf32>,
    } else {
    }
    %c0 = arith.constant 0 : index
    %c0_1 = arith.constant 0 : index
    %3 = vector.load %arg7[%c0, %c0_1] : memref<8x3072xf32, #tpu.memory_space<vmem>>, vector<8x3072xf32>
    %c0_2 = arith.constant 0 : index
    %c0_3 = arith.constant 0 : index
    %c0_4 = arith.constant 0 : index
    %4 = vector.load %arg2[%c0_2, %c0_3, %c0_4] : memref<1x8x3072xf32, #tpu.memory_space<vmem>>, vector<1x8x3072xf32>
    %5 = vector.shape_cast %4 : vector<1x8x3072xf32> to vector<8x3072xf32>
    %6 = arith.addf %3, %5 : vector<8x3072xf32>
    %c0_5 = arith.constant 0 : index
    %c0_6 = arith.constant 0 : index
    %7 = vector.load %arg7[%c0_5, %c0_6] : memref<8x3072xf32, #tpu.memory_space<vmem>>, vector<8x3072xf32>
    tpu.vector_store %arg7[%c0_5, %c0_6], %6 {strides = array<i32>} : memref<8x3072xf32, #tpu.memory_space<vmem>>, vector<8x3072xf32>,
    %c3_i32 = arith.constant 3 : i32
    %8 = arith.cmpi eq, %arg1, %c3_i32 : i32
    %9 = arith.extui %8 : i1 to i32
    %c0_i32_7 = arith.constant 0 : i32
    %10 = arith.cmpi ne, %9, %c0_i32_7 : i32
    scf.if %10 {
      %c0_8 = arith.constant 0 : index
      %c0_9 = arith.constant 0 : index
      %11 = vector.load %arg7[%c0_8, %c0_9] : memref<8x3072xf32, #tpu.memory_space<vmem>>, vector<8x3072xf32>
      %cst = arith.constant 2.500000e-01 : f32
      %12 = vector.broadcast %cst : f32 to vector<8x3072xf32>
      %13 = arith.mulf %11, %12 : vector<8x3072xf32>
      %c0_10 = arith.constant 0 : index
      %c0_11 = arith.constant 0 : index
      %14 = vector.load %arg3[%c0_10, %c0_11] : memref<3072x512xf32, #tpu.memory_space<vmem>>, vector<3072x512xf32>
      %cst_12 = arith.constant dense<0.000000e+00> : vector<8x512xf32>
      %15 = tpu.matmul %13, %14, %cst_12 {dimension_numbers = #tpu.dot_dimension_numbers<[1], [0], [0], [1], [0, 0, 1, 1], [], []>} : vector<8x3072xf32>, vector<3072x512xf32>, vector<8x512xf32> -> vector<8x512xf32>
      %c0_13 = arith.constant 0 : index
      %c0_14 = arith.constant 0 : index
      %16 = vector.load %arg4[%c0_13, %c0_14] : memref<512x128xf32, #tpu.memory_space<vmem>>, vector<512x128xf32>
      %cst_15 = arith.constant dense<0.000000e+00> : vector<8x128xf32>
      %17 = tpu.matmul %15, %16, %cst_15 {dimension_numbers = #tpu.dot_dimension_numbers<[1], [0], [0], [1], [0, 0, 1, 1], [], []>} : vector<8x512xf32>, vector<512x128xf32>, vector<8x128xf32> -> vector<8x128xf32>
      %c0_16 = arith.constant 0 : index
      %c0_17 = arith.constant 0 : index
      %18 = vector.load %arg5[%c0_16, %c0_17] : memref<1x128xf32, #tpu.memory_space<vmem>>, vector<1x128xf32>
      %19 = vector.broadcast %18 : vector<1x128xf32> to vector<8x128xf32>
      %20 = arith.addf %17, %19 : vector<8x128xf32>
      %c0_18 = arith.constant 0 : index
      %c0_19 = arith.constant 0 : index
      %21 = vector.load %arg6[%c0_18, %c0_19] : memref<8x128xf32, #tpu.memory_space<vmem>>, vector<8x128xf32>
      tpu.vector_store %arg6[%c0_18, %c0_19], %20 {strides = array<i32>} : memref<8x128xf32, #tpu.memory_space<vmem>>, vector<8x128xf32>,
    } else {
    }
    return
  }
  func.func @transform_0(%arg0: i32, %arg1: i32) -> (i32, i32, i32) {
    %c0_i32 = arith.constant 0 : i32
    %c0_i32_0 = arith.constant 0 : i32
    return %arg1, %arg0, %c0_i32 : i32, i32, i32
  }
  func.func @transform_1(%arg0: i32, %arg1: i32) -> (i32, i32) {
    %c0_i32 = arith.constant 0 : i32
    %c0_i32_0 = arith.constant 0 : i32
    %c0_i32_1 = arith.constant 0 : i32
    return %c0_i32, %c0_i32_0 : i32, i32
  }
  func.func @transform_2(%arg0: i32, %arg1: i32) -> (i32, i32) {
    %c0_i32 = arith.constant 0 : i32
    %c0_i32_0 = arith.constant 0 : i32
    %c0_i32_1 = arith.constant 0 : i32
    return %c0_i32, %c0_i32_0 : i32, i32
  }
  func.func @transform_3(%arg0: i32, %arg1: i32) -> (i32, i32) {
    %c0_i32 = arith.constant 0 : i32
    %c0_i32_0 = arith.constant 0 : i32
    %c0_i32_1 = arith.constant 0 : i32
    return %c0_i32, %c0_i32_0 : i32, i32
  }
  func.func @transform_4(%arg0: i32, %arg1: i32) -> (i32, i32) {
    %c0_i32 = arith.constant 0 : i32
    %c0_i32_0 = arith.constant 0 : i32
    return %arg0, %c0_i32 : i32, i32
  }
}

</mosaic_0001>

<llo_original>
// kernel: resnet_classifier.1
$region0: #{resnet_classifier.1}
  #allocation0 [shape = 'u32[]', space=smem, size = 0x4, offset = 0x4, fixed_abs, tag = 'smem constant byte address 0x4 - core index']
  #allocation1 [shape = 'u32[144,128]{1,0:T(1,128)}', space=vmem, size = 0x12000, scoped, tag = 'internal scratch']
  #allocation2 [shape = 'f32[8,3072]{1,0:T(8,128)}', space=vmem, size = 0x18000, scoped, tag = 'scratch operand']
  %s0 = inlined_call_operand.vmem [shape: f32[4,8,3072], index: 0, kind: input, shape index: {}]
  %s1 = inlined_call_operand.hbm [shape: f32[3072,512], index: 1, kind: input, shape index: {}]
  %s2 = inlined_call_operand.vmem [shape: f32[512,128], index: 2, kind: input, shape index: {}]
  %s3 = inlined_call_operand.vmem [shape: f32[1,128], index: 3, kind: input, shape index: {}]
  %s4 = inlined_call_operand.vmem [shape: f32[8,128], index: 4, kind: output, shape index: {}]
  %s5 = sld [smem:[#allocation0]]
  $region61: #{resnet_classifier.1} parent=0
    _
  %s7 = ssub.s32 1, %s5
  %s8 = scalar_select 0, %s7, %s5
  $region1: #{resnet_classifier.1} parent=0
    #allocation3 [shape = 'u8[6291456]{0}', space=vmem, size = 0x600000, scoped, tag = 'input window, operand 1, single buffered']
    #allocation4 [shape = 's32[2]{0}', space=sflag, size = 0x8, scoped, tag = 'scoped memory for resnet_classifier.1']
    %9 = vsyncpa [#allocation4], 0
    loop: start=0, step=1, limit=6
    $region2: #{resnet_classifier.1} parent=1 // loop_pre_header
      _
    $region3: #{resnet_classifier.1} parent=1 // loop_header
      %s11 = sphi 0, %s15
      %p12 = scmp.ge.s32.totalorder %s11, 6
      %s18 = sphi 0, %s30
      %s19 = sphi 0, %s26
      %s20 = sphi 0, %s18
      %s21 = sphi 0, %s19
      %s22 = sphi 0, %s20
      %s23 = sphi 0, %s21
      %s35 = sphi 0, %s37
      %s38 = sphi 0, %s35
      %s39 = sphi 0, %s38
      %s55 = sphi 0, %s39
      %s59 = sphi 0, %s59
      %s61 = sphi 0, %s59
      %s62 = sphi 0, %s61
      %s76 = sphi 0, %s62
      %s80 = sphi 0, %s80
      %s82 = sphi 0, %s80
      %s83 = sphi 0, %s82
      %s97 = sphi 0, %s83
      %s101 = sphi 0, %s101
      %s103 = sphi 0, %s101
      %s104 = sphi 0, %s103
      %s118 = sphi 0, %s104
      %s124 = sphi 0, %s126
      %s127 = sphi 0, %s124
      %s128 = sphi 0, %s127
      %s144 = sphi 0, %s128
    $region4: #{resnet_classifier.1} parent=1 // loop_header_branch
      %14 = sbr.rel (%p12) target = $region8
    $region5: #{resnet_classifier.1} parent=1 // loop_body
      %s16 = ssub.s32 %s11, 1
      %s17 = ssub.s32 %s11, 2
      %s24 = sadd.s32 1, %s19
      %p25 = scmp.ge.s32.totalorder %s24, 4
      %s26 = scalar_select %p25, 0, %s24
      %s27 = sadd.s32 1, %s18
      %s28 = scalar_select %p25, %s27, %s18
      %p29 = scmp.ge.s32.totalorder %s28, 1
      %s30 = scalar_select %p29, 0, %s28
      %s31 = ssub.s32 %s19, %s26
      %s32 = ssub.s32 %s18, %s30
      %s33 = sor.u32 %s31, %s32
      %p34 = scmp.eq.s32.totalorder %s33, 0
      %s36 = sadd.s32 %s35, 1
      %s37 = scalar_select %p34, %s35, %s36
      %p40 = pneg %p34
      %p41 = scmp.eq.s32.totalorder %s11, 3
      %p42 = por %p40, %p41
      %p43 = scmp.ne.s32.totalorder %s35, %s38
      %p44 = scmp.eq.s32.totalorder %s11, 0
      %p45 = por %p43, %p44
      %p46 = scmp.ne.s32.totalorder %s35, %s38
      %p47 = scmp.eq.s32.totalorder %s16, 3
      %p48 = por %p46, %p47
      %p49 = scmp.ne.s32.totalorder %s38, %s39
      %p50 = scmp.eq.s32.totalorder %s16, 0
      %p51 = por %p49, %p50
      %p52 = scmp.ne.s32.totalorder %s38, %s39
      %p53 = scmp.eq.s32.totalorder %s17, 3
      %p54 = por %p52, %p53
      %p56 = scmp.ne.s32.totalorder %s39, %s55
      %p57 = scmp.eq.s32.totalorder %s17, 0
      %p58 = por %p56, %p57
      %s60 = sadd.s32 %s59, 1
      %p63 = scmp.eq.s32.totalorder %s11, 3
      %p64 = scmp.ne.s32.totalorder %s59, %s61
      %p65 = scmp.eq.s32.totalorder %s11, 0
      %p66 = por %p64, %p65
      %p67 = scmp.ne.s32.totalorder %s59, %s61
      %p68 = scmp.eq.s32.totalorder %s16, 3
      %p69 = por %p67, %p68
      %p70 = scmp.ne.s32.totalorder %s61, %s62
      %p71 = scmp.eq.s32.totalorder %s16, 0
      %p72 = por %p70, %p71
      %p73 = scmp.ne.s32.totalorder %s61, %s62
      %p74 = scmp.eq.s32.totalorder %s17, 3
      %p75 = por %p73, %p74
      %p77 = scmp.ne.s32.totalorder %s62, %s76
      %p78 = scmp.eq.s32.totalorder %s17, 0
      %p79 = por %p77, %p78
      %s81 = sadd.s32 %s80, 1
      %p84 = scmp.eq.s32.totalorder %s11, 3
      %p85 = scmp.ne.s32.totalorder %s80, %s82
      %p86 = scmp.eq.s32.totalorder %s11, 0
      %p87 = por %p85, %p86
      %p88 = scmp.ne.s32.totalorder %s80, %s82
      %p89 = scmp.eq.s32.totalorder %s16, 3
      %p90 = por %p88, %p89
      %p91 = scmp.ne.s32.totalorder %s82, %s83
      %p92 = scmp.eq.s32.totalorder %s16, 0
      %p93 = por %p91, %p92
      %p94 = scmp.ne.s32.totalorder %s82, %s83
      %p95 = scmp.eq.s32.totalorder %s17, 3
      %p96 = por %p94, %p95
      %p98 = scmp.ne.s32.totalorder %s83, %s97
      %p99 = scmp.eq.s32.totalorder %s17, 0
      %p100 = por %p98, %p99
      %s102 = sadd.s32 %s101, 1
      %p105 = scmp.eq.s32.totalorder %s11, 3
      %p106 = scmp.ne.s32.totalorder %s101, %s103
      %p107 = scmp.eq.s32.totalorder %s11, 0
      %p108 = por %p106, %p107
      %p109 = scmp.ne.s32.totalorder %s101, %s103
      %p110 = scmp.eq.s32.totalorder %s16, 3
      %p111 = por %p109, %p110
      %p112 = scmp.ne.s32.totalorder %s103, %s104
      %p113 = scmp.eq.s32.totalorder %s16, 0
      %p114 = por %p112, %p113
      %p115 = scmp.ne.s32.totalorder %s103, %s104
      %p116 = scmp.eq.s32.totalorder %s17, 3
      %p117 = por %p115, %p116
      %p119 = scmp.ne.s32.totalorder %s104, %s118
      %p120 = scmp.eq.s32.totalorder %s17, 0
      %p121 = por %p119, %p120
      %s122 = ssub.s32 %s18, %s30
      %p123 = scmp.eq.s32.totalorder %s122, 0
      %s125 = sadd.s32 %s124, 1
      %s126 = scalar_select %p123, %s124, %s125
      %p129 = pneg %p123
      %p130 = scmp.eq.s32.totalorder %s11, 3
      %p131 = por %p129, %p130
      %p132 = scmp.ne.s32.totalorder %s124, %s127
      %p133 = scmp.eq.s32.totalorder %s11, 0
      %p134 = por %p132, %p133
      %p135 = scmp.ne.s32.totalorder %s124, %s127
      %p136 = scmp.eq.s32.totalorder %s16, 3
      %p137 = por %p135, %p136
      %p138 = scmp.ne.s32.totalorder %s127, %s128
      %p139 = scmp.eq.s32.totalorder %s16, 0
      %p140 = por %p138, %p139
      %p141 = scmp.ne.s32.totalorder %s127, %s128
      %p142 = scmp.eq.s32.totalorder %s17, 3
      %p143 = por %p141, %p142
      %p145 = scmp.ne.s32.totalorder %s128, %s144
      %p146 = scmp.eq.s32.totalorder %s17, 0
      %p147 = por %p145, %p146
      %p148 = scmp.le.s32.totalorder 1, %s11
      %p149 = scmp.lt.s32.totalorder %s11, 5
      %p150 = pnand %p148, %p149
      %p151 = pneg %p150
      // Predicated region
      $region9: #{resnet_classifier.1} parent=5 // pred_check
        _
      $region10: #{resnet_classifier.1} parent=5 // pred_check_branch
        %153 = sbr.rel (%p150) target = $region12
      $region11: #{resnet_classifier.1} parent=5 // pred_region
        %s154 = ssub.s32 %s11, 1
        // Predicated region
        $region13: #{resnet_classifier.1} parent=11 // pred_check
          %p155 = pneg %p72
        $region14: #{resnet_classifier.1} parent=11 // pred_check_branch
          %157 = sbr.rel (%p155) target = $region16
        $region15: #{resnet_classifier.1} parent=11 // pred_region
          %s159 = ssub.s32 196608, 196608
          %160 = vsyncadd [#allocation4], %s159
          %s161 = sshll.u32 [#allocation3], 4
          %s162 = int_to_ptr.vmem [resolvable:$true] %s161
          %167 = dma.hbm_to_vmem [thread:$0]  %s1, 196608, %s162, [#allocation4], 512, 512, 32
        $region16: #{resnet_classifier.1} parent=11 // pred_fallthru
          _
        // Predicated region
        $region17: #{resnet_classifier.1} parent=11 // pred_check
          %p168 = pneg %p93
        $region18: #{resnet_classifier.1} parent=11 // pred_check_branch
          %170 = sbr.rel (%p168) target = $region20
        $region19: #{resnet_classifier.1} parent=11 // pred_region
          _
        $region20: #{resnet_classifier.1} parent=11 // pred_fallthru
          _
        // Predicated region
        $region21: #{resnet_classifier.1} parent=11 // pred_check
          %p171 = pneg %p114
        $region22: #{resnet_classifier.1} parent=11 // pred_check_branch
          %173 = sbr.rel (%p171) target = $region24
        $region23: #{resnet_classifier.1} parent=11 // pred_region
          _
        $region24: #{resnet_classifier.1} parent=11 // pred_fallthru
          _
      $region12: #{resnet_classifier.1} parent=5 // pred_fallthru
        _
      %p174 = scmp.lt.s32.totalorder %s11, 4
      // Predicated region
      $region25: #{resnet_classifier.1} parent=5 // pred_check
        %p175 = pneg %p174
      $region26: #{resnet_classifier.1} parent=5 // pred_check_branch
        %177 = sbr.rel (%p175) target = $region28
      $region27: #{resnet_classifier.1} parent=5 // pred_region
        // Predicated region
        $region29: #{resnet_classifier.1} parent=27 // pred_check
          %p178 = pneg %p45
        $region30: #{resnet_classifier.1} parent=27 // pred_check_branch
          %180 = sbr.rel (%p178) target = $region32
        $region31: #{resnet_classifier.1} parent=27 // pred_region
          %p181 = scmp.lt.s32.totalorder %s19, 3
          %s182 = scalar_select %p181, %s19, 3
          %p183 = scmp.lt.s32.totalorder %s18, 0
          %s184 = scalar_select %p183, %s18, 0
          %s185 = smul.addr %s184, 24
          %s186 = smul.addr %s182, 24
          %s187 = sadd.s32 %s185, %s186
          %s188 = smul.addr %s187, 8
          %s189 = scalar_lea.vmem %s0, %s188
        $region32: #{resnet_classifier.1} parent=27 // pred_fallthru
          _
      $region28: #{resnet_classifier.1} parent=5 // pred_fallthru
        _
      %p190 = scmp.le.s32.totalorder 1, %s11
      %p191 = scmp.lt.s32.totalorder %s11, 5
      %p192 = pnand %p190, %p191
      %p193 = pneg %p192
      // Predicated region
      $region33: #{resnet_classifier.1} parent=5 // pred_check
        _
      $region34: #{resnet_classifier.1} parent=5 // pred_check_branch
        %195 = sbr.rel (%p192) target = $region36
      $region35: #{resnet_classifier.1} parent=5 // pred_region
        %s196 = ssub.s32 %s11, 1
        // Predicated region
        $region37: #{resnet_classifier.1} parent=35 // pred_check
          %p197 = pneg %p72
        $region38: #{resnet_classifier.1} parent=35 // pred_check_branch
          %199 = sbr.rel (%p197) target = $region40
        $region39: #{resnet_classifier.1} parent=35 // pred_region
          %200 = dma.done [#allocation4], 196608
        $region40: #{resnet_classifier.1} parent=35 // pred_fallthru
          _
        %p201 = scmp.lt.s32.totalorder %s21, 3
        %s202 = scalar_select %p201, %s21, 3
        %p203 = scmp.lt.s32.totalorder %s20, 0
        %s204 = scalar_select %p203, %s20, 0
        %s205 = smul.addr %s204, 24
        %s206 = smul.addr %s202, 24
        %s207 = sadd.s32 %s205, %s206
        %s208 = smul.addr %s207, 8
        %s209 = scalar_lea.vmem %s0, %s208
        %p210 = pneg %p51
        %p211 = pneg %p48
        %p212 = pneg %p72
        %p213 = pneg %p69
        %p214 = pneg %p93
        %p215 = pneg %p90
        %p216 = pneg %p114
        %p217 = pneg %p111
        %p218 = pneg %p140
        %p219 = pneg %p137
        %p220 = scmp.lt.s32.totalorder %s20, 0
        %s221 = scalar_select %p220, %s20, 0
        %s222 = smul.addr %s221, 8
        %s223 = scalar_lea.vmem %s4, %s222
        %p224 = scmp.lt.s32.totalorder %s21, 3
        %s225 = scalar_select %p224, %s21, 3
        %p226 = scmp.lt.s32.totalorder %s20, 0
        %s227 = scalar_select %p226, %s20, 0
        %s228 = smul.addr %s227, 24
        %s229 = smul.addr %s225, 24
        %s230 = sadd.s32 %s228, %s229
        %s231 = smul.addr %s230, 8
        %s232 = scalar_lea.vmem %s0, %s231
        %p233 = scmp.lt.s32.totalorder %s20, 0
        %s234 = scalar_select %p233, %s20, 0
        %s235 = smul.addr %s234, 8
        %s236 = scalar_lea.vmem %s4, %s235
        %p237 = scmp.eq.s32.totalorder %s21, 0
        // Predicated region
        $region41: #{resnet_classifier.1} parent=35 // pred_check
          %p238 = pneg %p237
        $region42: #{resnet_classifier.1} parent=35 // pred_check_branch
          %240 = sbr.rel (%p238) target = $region44
        $region43: #{resnet_classifier.1} parent=35 // pred_region
          %241 = vst [vmem:[#allocation2] sm:$0xff] 0.0
          %242 = vst [vmem:[#allocation2 + $0x8] sm:$0xff] 0.0
          %243 = vst [vmem:[#allocation2 + $0x10] sm:$0xff] 0.0
          %244 = vst [vmem:[#allocation2 + $0x18] sm:$0xff] 0.0
          %245 = vst [vmem:[#allocation2 + $0x20] sm:$0xff] 0.0
          %246 = vst [vmem:[#allocation2 + $0x28] sm:$0xff] 0.0
          %247 = vst [vmem:[#allocation2 + $0x30] sm:$0xff] 0.0
          %248 = vst [vmem:[#allocation2 + $0x38] sm:$0xff] 0.0
          %249 = vst [vmem:[#allocation2 + $0x40] sm:$0xff] 0.0
          %250 = vst [vmem:[#allocation2 + $0x48] sm:$0xff] 0.0
          %251 = vst [vmem:[#allocation2 + $0x50] sm:$0xff] 0.0
          %252 = vst [vmem:[#allocation2 + $0x58] sm:$0xff] 0.0
          %253 = vst [vmem:[#allocation2 + $0x60] sm:$0xff] 0.0
          %254 = vst [vmem:[#allocation2 + $0x68] sm:$0xff] 0.0
          %255 = vst [vmem:[#allocation2 + $0x70] sm:$0xff] 0.0
          %256 = vst [vmem:[#allocation2 + $0x78] sm:$0xff] 0.0
          %257 = vst [vmem:[#allocation2 + $0x80] sm:$0xff] 0.0
          %258 = vst [vmem:[#allocation2 + $0x88] sm:$0xff] 0.0
          %259 = vst [vmem:[#allocation2 + $0x90] sm:$0xff] 0.0
          %260 = vst [vmem:[#allocation2 + $0x98] sm:$0xff] 0.0
          %261 = vst [vmem:[#allocation2 + $0xa0] sm:$0xff] 0.0
          %262 = vst [vmem:[#allocation2 + $0xa8] sm:$0xff] 0.0
          %263 = vst [vmem:[#allocation2 + $0xb0] sm:$0xff] 0.0
          %264 = vst [vmem:[#allocation2 + $0xb8] sm:$0xff] 0.0
        $region44: #{resnet_classifier.1} parent=35 // pred_fallthru
          _
        %v265 = vld [vmem:[#allocation2] sm:$0xff]
        %v266 = vld [vmem:[#allocation2 + $0x8] sm:$0xff]
        %v267 = vld [vmem:[#allocation2 + $0x10] sm:$0xff]
        %v268 = vld [vmem:[#allocation2 + $0x18] sm:$0xff]
        %v269 = vld [vmem:[#allocation2 + $0x20] sm:$0xff]
        %v270 = vld [vmem:[#allocation2 + $0x28] sm:$0xff]
        %v271 = vld [vmem:[#allocation2 + $0x30] sm:$0xff]
        %v272 = vld [vmem:[#allocation2 + $0x38] sm:$0xff]
        %v273 = vld [vmem:[#allocation2 + $0x40] sm:$0xff]
        %v274 = vld [vmem:[#allocation2 + $0x48] sm:$0xff]
        %v275 = vld [vmem:[#allocation2 + $0x50] sm:$0xff]
        %v276 = vld [vmem:[#allocation2 + $0x58] sm:$0xff]
        %v277 = vld [vmem:[#allocation2 + $0x60] sm:$0xff]
        %v278 = vld [vmem:[#allocation2 + $0x68] sm:$0xff]
        %v279 = vld [vmem:[#allocation2 + $0x70] sm:$0xff]
        %v280 = vld [vmem:[#allocation2 + $0x78] sm:$0xff]
        %v281 = vld [vmem:[#allocation2 + $0x80] sm:$0xff]
        %v282 = vld [vmem:[#allocation2 + $0x88] sm:$0xff]
        %v283 = vld [vmem:[#allocation2 + $0x90] sm:$0xff]
        %v284 = vld [vmem:[#allocation2 + $0x98] sm:$0xff]
        %v285 = vld [vmem:[#allocation2 + $0xa0] sm:$0xff]
        %v286 = vld [vmem:[#allocation2 + $0xa8] sm:$0xff]
        %v287 = vld [vmem:[#allocation2 + $0xb0] sm:$0xff]
        %v288 = vld [vmem:[#allocation2 + $0xb8] sm:$0xff]
        %v289 = vld [vmem:[%s232] sm:$0xff]
        %v290 = vld [vmem:[%s232 + $0x8] sm:$0xff]
        %v291 = vld [vmem:[%s232 + $0x10] sm:$0xff]
        %v292 = vld [vmem:[%s232 + $0x18] sm:$0xff]
        %v293 = vld [vmem:[%s232 + $0x20] sm:$0xff]
        %v294 = vld [vmem:[%s232 + $0x28] sm:$0xff]
        %v295 = vld [vmem:[%s232 + $0x30] sm:$0xff]
        %v296 = vld [vmem:[%s232 + $0x38] sm:$0xff]
        %v297 = vld [vmem:[%s232 + $0x40] sm:$0xff]
        %v298 = vld [vmem:[%s232 + $0x48] sm:$0xff]
        %v299 = vld [vmem:[%s232 + $0x50] sm:$0xff]
        %v300 = vld [vmem:[%s232 + $0x58] sm:$0xff]
        %v301 = vld [vmem:[%s232 + $0x60] sm:$0xff]
        %v302 = vld [vmem:[%s232 + $0x68] sm:$0xff]
        %v303 = vld [vmem:[%s232 + $0x70] sm:$0xff]
        %v304 = vld [vmem:[%s232 + $0x78] sm:$0xff]
        %v305 = vld [vmem:[%s232 + $0x80] sm:$0xff]
        %v306 = vld [vmem:[%s232 + $0x88] sm:$0xff]
        %v307 = vld [vmem:[%s232 + $0x90] sm:$0xff]
        %v308 = vld [vmem:[%s232 + $0x98] sm:$0xff]
        %v309 = vld [vmem:[%s232 + $0xa0] sm:$0xff]
        %v310 = vld [vmem:[%s232 + $0xa8] sm:$0xff]
        %v311 = vld [vmem:[%s232 + $0xb0] sm:$0xff]
        %v312 = vld [vmem:[%s232 + $0xb8] sm:$0xff]
        %v313 = vadd.f32 %v265, %v289
        %v314 = vadd.f32 %v266, %v290
        %v315 = vadd.f32 %v267, %v291
        %v316 = vadd.f32 %v268, %v292
        %v317 = vadd.f32 %v269, %v293
        %v318 = vadd.f32 %v270, %v294
        %v319 = vadd.f32 %v271, %v295
        %v320 = vadd.f32 %v272, %v296
        %v321 = vadd.f32 %v273, %v297
        %v322 = vadd.f32 %v274, %v298
        %v323 = vadd.f32 %v275, %v299
        %v324 = vadd.f32 %v276, %v300
        %v325 = vadd.f32 %v277, %v301
        %v326 = vadd.f32 %v278, %v302
        %v327 = vadd.f32 %v279, %v303
        %v328 = vadd.f32 %v280, %v304
        %v329 = vadd.f32 %v281, %v305
        %v330 = vadd.f32 %v282, %v306
        %v331 = vadd.f32 %v283, %v307
        %v332 = vadd.f32 %v284, %v308
        %v333 = vadd.f32 %v285, %v309
        %v334 = vadd.f32 %v286, %v310
        %v335 = vadd.f32 %v287, %v311
        %v336 = vadd.f32 %v288, %v312
        %337 = vst [vmem:[#allocation2] sm:$0xff] %v313
        %338 = vst [vmem:[#allocation2 + $0x8] sm:$0xff] %v314
        %339 = vst [vmem:[#allocation2 + $0x10] sm:$0xff] %v315
        %340 = vst [vmem:[#allocation2 + $0x18] sm:$0xff] %v316
        %341 = vst [vmem:[#allocation2 + $0x20] sm:$0xff] %v317
        %342 = vst [vmem:[#allocation2 + $0x28] sm:$0xff] %v318
        %343 = vst [vmem:[#allocation2 + $0x30] sm:$0xff] %v319
        %344 = vst [vmem:[#allocation2 + $0x38] sm:$0xff] %v320
        %345 = vst [vmem:[#allocation2 + $0x40] sm:$0xff] %v321
        %346 = vst [vmem:[#allocation2 + $0x48] sm:$0xff] %v322
        %347 = vst [vmem:[#allocation2 + $0x50] sm:$0xff] %v323
        %348 = vst [vmem:[#allocation2 + $0x58] sm:$0xff] %v324
        %349 = vst [vmem:[#allocation2 + $0x60] sm:$0xff] %v325
        %350 = vst [vmem:[#allocation2 + $0x68] sm:$0xff] %v326
        %351 = vst [vmem:[#allocation2 + $0x70] sm:$0xff] %v327
        %352 = vst [vmem:[#allocation2 + $0x78] sm:$0xff] %v328
        %353 = vst [vmem:[#allocation2 + $0x80] sm:$0xff] %v329
        %354 = vst [vmem:[#allocation2 + $0x88] sm:$0xff] %v330
        %355 = vst [vmem:[#allocation2 + $0x90] sm:$0xff] %v331
        %356 = vst [vmem:[#allocation2 + $0x98] sm:$0xff] %v332
        %357 = vst [vmem:[#allocation2 + $0xa0] sm:$0xff] %v333
        %358 = vst [vmem:[#allocation2 + $0xa8] sm:$0xff] %v334
        %359 = vst [vmem:[#allocation2 + $0xb0] sm:$0xff] %v335
        %360 = vst [vmem:[#allocation2 + $0xb8] sm:$0xff] %v336
        %p361 = scmp.eq.s32.totalorder %s21, 3
        // Predicated region
        $region45: #{resnet_classifier.1} parent=35 // pred_check
          %p362 = pneg %p361
        $region46: #{resnet_classifier.1} parent=35 // pred_check_branch
          %364 = sbr.rel (%p362) target = $region48
        $region47: #{resnet_classifier.1} parent=35 // pred_region
          %v365 = vld [vmem:[#allocation2] sm:$0xff]
          %v366 = vld [vmem:[#allocation2 + $0x8] sm:$0xff]
          %v367 = vld [vmem:[#allocation2 + $0x10] sm:$0xff]
          %v368 = vld [vmem:[#allocation2 + $0x18] sm:$0xff]
          %v369 = vld [vmem:[#allocation2 + $0x20] sm:$0xff]
          %v370 = vld [vmem:[#allocation2 + $0x28] sm:$0xff]
          %v371 = vld [vmem:[#allocation2 + $0x30] sm:$0xff]
          %v372 = vld [vmem:[#allocation2 + $0x38] sm:$0xff]
          %v373 = vld [vmem:[#allocation2 + $0x40] sm:$0xff]
          %v374 = vld [vmem:[#allocation2 + $0x48] sm:$0xff]
          %v375 = vld [vmem:[#allocation2 + $0x50] sm:$0xff]
          %v376 = vld [vmem:[#allocation2 + $0x58] sm:$0xff]
          %v377 = vld [vmem:[#allocation2 + $0x60] sm:$0xff]
          %v378 = vld [vmem:[#allocation2 + $0x68] sm:$0xff]
          %v379 = vld [vmem:[#allocation2 + $0x70] sm:$0xff]
          %v380 = vld [vmem:[#allocation2 + $0x78] sm:$0xff]
          %v381 = vld [vmem:[#allocation2 + $0x80] sm:$0xff]
          %v382 = vld [vmem:[#allocation2 + $0x88] sm:$0xff]
          %v383 = vld [vmem:[#allocation2 + $0x90] sm:$0xff]
          %v384 = vld [vmem:[#allocation2 + $0x98] sm:$0xff]
          %v385 = vld [vmem:[#allocation2 + $0xa0] sm:$0xff]
          %v386 = vld [vmem:[#allocation2 + $0xa8] sm:$0xff]
          %v387 = vld [vmem:[#allocation2 + $0xb0] sm:$0xff]
          %v388 = vld [vmem:[#allocation2 + $0xb8] sm:$0xff]
          %v389 = vmul.f32 %v365, 0.25
          %v390 = vmul.f32 %v366, 0.25
          %v391 = vmul.f32 %v367, 0.25
          %v392 = vmul.f32 %v368, 0.25
          %v393 = vmul.f32 %v369, 0.25
          %v394 = vmul.f32 %v370, 0.25
          %v395 = vmul.f32 %v371, 0.25
          %v396 = vmul.f32 %v372, 0.25
          %v397 = vmul.f32 %v373, 0.25
          %v398 = vmul.f32 %v374, 0.25
          %v399 = vmul.f32 %v375, 0.25
          %v400 = vmul.f32 %v376, 0.25
          %v401 = vmul.f32 %v377, 0.25
          %v402 = vmul.f32 %v378, 0.25
          %v403 = vmul.f32 %v379, 0.25
          %v404 = vmul.f32 %v380, 0.25
          %v405 = vmul.f32 %v381, 0.25
          %v406 = vmul.f32 %v382, 0.25
          %v407 = vmul.f32 %v383, 0.25
          %v408 = vmul.f32 %v384, 0.25
          %v409 = vmul.f32 %v385, 0.25
          %v410 = vmul.f32 %v386, 0.25
          %v411 = vmul.f32 %v387, 0.25
          %v412 = vmul.f32 %v388, 0.25
          %v413 = vld [vmem:[#allocation3] sm:$0xff]
          %v414 = vld [vmem:[#allocation3 + $0x8] sm:$0xff]
          %v415 = vld [vmem:[#allocation3 + $0x10] sm:$0xff]
          %v416 = vld [vmem:[#allocation3 + $0x18] sm:$0xff]
          %v417 = vld [vmem:[#allocation3 + $0x20] sm:$0xff]
          %v418 = vld [vmem:[#allocation3 + $0x28] sm:$0xff]
          %v419 = vld [vmem:[#allocation3 + $0x30] sm:$0xff]
          %v420 = vld [vmem:[#allocation3 + $0x38] sm:$0xff]
          %v421 = vld [vmem:[#allocation3 + $0x40] sm:$0xff]
          %v422 = vld [vmem:[#allocation3 + $0x48] sm:$0xff]
          %v423 = vld [vmem:[#allocation3 + $0x50] sm:$0xff]
          %v424 = vld [vmem:[#allocation3 + $0x58] sm:$0xff]
          %v425 = vld [vmem:[#allocation3 + $0x60] sm:$0xff]
          %v426 = vld [vmem:[#allocation3 + $0x68] sm:$0xff]
          %v427 = vld [vmem:[#allocation3 + $0x70] sm:$0xff]
          %v428 = vld [vmem:[#allocation3 + $0x78] sm:$0xff]
          %v429 = vld [vmem:[#allocation3 + $0x80] sm:$0xff]
          %v430 = vld [vmem:[#allocation3 + $0x88] sm:$0xff]
          %v431 = vld [vmem:[#allocation3 + $0x90] sm:$0xff]
          %v432 = vld [vmem:[#allocation3 + $0x98] sm:$0xff]
          %v433 = vld [vmem:[#allocation3 + $0xa0] sm:$0xff]
          %v434 = vld [vmem:[#allocation3 + $0xa8] sm:$0xff]
          %v435 = vld [vmem:[#allocation3 + $0xb0] sm:$0xff]
          %v436 = vld [vmem:[#allocation3 + $0xb8] sm:$0xff]
          %v437 = vld [vmem:[#allocation3 + $0xc0] sm:$0xff]
          %v438 = vld [vmem:[#allocation3 + $0xc8] sm:$0xff]
          %v439 = vld [vmem:[#allocation3 + $0xd0] sm:$0xff]
          %v440 = vld [vmem:[#allocation3 + $0xd8] sm:$0xff]
          %v441 = vld [vmem:[#allocation3 + $0xe0] sm:$0xff]
          %v442 = vld [vmem:[#allocation3 + $0xe8] sm:$0xff]
          %v443 = vld [vmem:[#allocation3 + $0xf0] sm:$0xff]
          %v444 = vld [vmem:[#allocation3 + $0xf8] sm:$0xff]
          %v445 = vld [vmem:[#allocation3 + $0x100] sm:$0xff]
          %v446 = vld [vmem:[#allocation3 + $0x108] sm:$0xff]
          %v447 = vld [vmem:[#allocation3 + $0x110] sm:$0xff]
          %v448 = vld [vmem:[#allocation3 + $0x118] sm:$0xff]
          %v449 = vld [vmem:[#allocation3 + $0x120] sm:$0xff]
          %v450 = vld [vmem:[#allocation3 + $0x128] sm:$0xff]
          %v451 = vld [vmem:[#allocation3 + $0x130] sm:$0xff]
          %v452 = vld [vmem:[#allocation3 + $0x138] sm:$0xff]
          %v453 = vld [vmem:[#allocation3 + $0x140] sm:$0xff]
          %v454 = vld [vmem:[#allocation3 + $0x148] sm:$0xff]
          %v455 = vld [vmem:[#allocation3 + $0x150] sm:$0xff]
          %v456 = vld [vmem:[#allocation3 + $0x158] sm:$0xff]
          %v457 = vld [vmem:[#allocation3 + $0x160] sm:$0xff]
          %v458 = vld [vmem:[#allocation3 + $0x168] sm:$0xff]
          %v459 = vld [vmem:[#allocation3 + $0x170] sm:$0xff]
          %v460 = vld [vmem:[#allocation3 + $0x178] sm:$0xff]
          %v461 = vld [vmem:[#allocation3 + $0x180] sm:$0xff]
          %v462 = vld [vmem:[#allocation3 + $0x188] sm:$0xff]
          %v463 = vld [vmem:[#allocation3 + $0x190] sm:$0xff]
          %v464 = vld [vmem:[#allocation3 + $0x198] sm:$0xff]
          %v465 = vld [vmem:[#allocation3 + $0x1a0] sm:$0xff]
          %v466 = vld [vmem:[#allocation3 + $0x1a8] sm:$0xff]
          %v467 = vld [vmem:[#allocation3 + $0x1b0] sm:$0xff]
          %v468 = vld [vmem:[#allocation3 + $0x1b8] sm:$0xff]
          %v469 = vld [vmem:[#allocation3 + $0x1c0] sm:$0xff]
          %v470 = vld [vmem:[#allocation3 + $0x1c8] sm:$0xff]
          %v471 = vld [vmem:[#allocation3 + $0x1d0] sm:$0xff]
          %v472 = vld [vmem:[#allocation3 + $0x1d8] sm:$0xff]
          %v473 = vld [vmem:[#allocation3 + $0x1e0] sm:$0xff]
          %v474 = vld [vmem:[#allocation3 + $0x1e8] sm:$0xff]
          %v475 = vld [vmem:[#allocation3 + $0x1f0] sm:$0xff]
          %v476 = vld [vmem:[#allocation3 + $0x1f8] sm:$0xff]
          %v477 = vld [vmem:[#allocation3 + $0x200] sm:$0xff]
          %v478 = vld [vmem:[#allocation3 + $0x208] sm:$0xff]
          %v479 = vld [vmem:[#allocation3 + $0x210] sm:$0xff]
          %v480 = vld [vmem:[#allocation3 + $0x218] sm:$0xff]
          %v481 = vld [vmem:[#allocation3 + $0x220] sm:$0xff]
          %v482 = vld [vmem:[#allocation3 + $0x228] sm:$0xff]
          %v483 = vld [vmem:[#allocation3 + $0x230] sm:$0xff]
          %v484 = vld [vmem:[#allocation3 + $0x238] sm:$0xff]
          %v485 = vld [vmem:[#allocation3 + $0x240] sm:$0xff]
          %v486 = vld [vmem:[#allocation3 + $0x248] sm:$0xff]
          %v487 = vld [vmem:[#allocation3 + $0x250] sm:$0xff]
          %v488 = vld [vmem:[#allocation3 + $0x258] sm:$0xff]
          %v489 = vld [vmem:[#allocation3 + $0x260] sm:$0xff]
          %v490 = vld [vmem:[#allocation3 + $0x268] sm:$0xff]
          %v491 = vld [vmem:[#allocation3 + $0x270] sm:$0xff]
          %v492 = vld [vmem:[#allocation3 + $0x278] sm:$0xff]
          %v493 = vld [vmem:[#allocation3 + $0x280] sm:$0xff]
          %v494 = vld [vmem:[#allocation3 + $0x288] sm:$0xff]
          %v495 = vld [vmem:[#allocation3 + $0x290] sm:$0xff]
          %v496 = vld [vmem:[#allocation3 + $0x298] sm:$0xff]
          %v497 = vld [vmem:[#allocation3 + $0x2a0] sm:$0xff]
          %v498 = vld [vmem:[#allocation3 + $0x2a8] sm:$0xff]
          %v499 = vld [vmem:[#allocation3 + $0x2b0] sm:$0xff]
          %v500 = vld [vmem:[#allocation3 + $0x2b8] sm:$0xff]
          %v501 = vld [vmem:[#allocation3 + $0x2c0] sm:$0xff]
          %v502 = vld [vmem:[#allocation3 + $0x2c8] sm:$0xff]
          %v503 = vld [vmem:[#allocation3 + $0x2d0] sm:$0xff]
          %v504 = vld [vmem:[#allocation3 + $0x2d8] sm:$0xff]
          %v505 = vld [vmem:[#allocation3 + $0x2e0] sm:$0xff]
          %v506 = vld [vmem:[#allocation3 + $0x2e8] sm:$0xff]
          %v507 = vld [vmem:[#allocation3 + $0x2f0] sm:$0xff]
          %v508 = vld [vmem:[#allocation3 + $0x2f8] sm:$0xff]
          %v509 = vld [vmem:[#allocation3 + $0x300] sm:$0xff]
          %v510 = vld [vmem:[#allocation3 + $0x308] sm:$0xff]
          %v511 = vld [vmem:[#allocation3 + $0x310] sm:$0xff]
          %v512 = vld [vmem:[#allocation3 + $0x318] sm:$0xff]
          %v513 = vld [vmem:[#allocation3 + $0x320] sm:$0xff]
          %v514 = vld [vmem:[#allocation3 + $0x328] sm:$0xff]
          %v515 = vld [vmem:[#allocation3 + $0x330] sm:$0xff]
          %v516 = vld [vmem:[#allocation3 + $0x338] sm:$0xff]
          %v517 = vld [vmem:[#allocation3 + $0x340] sm:$0xff]
          %v518 = vld [vmem:[#allocation3 + $0x348] sm:$0xff]
          %v519 = vld [vmem:[#allocation3 + $0x350] sm:$0xff]
          %v520 = vld [vmem:[#allocation3 + $0x358] sm:$0xff]
          %v521 = vld [vmem:[#allocation3 + $0x360] sm:$0xff]
          %v522 = vld [vmem:[#allocation3 + $0x368] sm:$0xff]
          %v523 = vld [vmem:[#allocation3 + $0x370] sm:$0xff]
          %v524 = vld [vmem:[#allocation3 + $0x378] sm:$0xff]
          %v525 = vld [vmem:[#allocation3 + $0x380] sm:$0xff]
          %v526 = vld [vmem:[#allocation3 + $0x388] sm:$0xff]
          %v527 = vld [vmem:[#allocation3 + $0x390] sm:$0xff]
          %v528 = vld [vmem:[#allocation3 + $0x398] sm:$0xff]
          %v529 = vld [vmem:[#allocation3 + $0x3a0] sm:$0xff]
          %v530 = vld [vmem:[#allocation3 + $0x3a8] sm:$0xff]
          %v531 = vld [vmem:[#allocation3 + $0x3b0] sm:$0xff]
          %v532 = vld [vmem:[#allocation3 + $0x3b8] sm:$0xff]
          %v533 = vld [vmem:[#allocation3 + $0x3c0] sm:$0xff]
          %v534 = vld [vmem:[#allocation3 + $0x3c8] sm:$0xff]
          %v535 = vld [vmem:[#allocation3 + $0x3d0] sm:$0xff]
          %v536 = vld [vmem:[#allocation3 + $0x3d8] sm:$0xff]
          %v537 = vld [vmem:[#allocation3 + $0x3e0] sm:$0xff]
          %v538 = vld [vmem:[#allocation3 + $0x3e8] sm:$0xff]
          %v539 = vld [vmem:[#allocation3 + $0x3f0] sm:$0xff]
          %v540 = vld [vmem:[#allocation3 + $0x3f8] sm:$0xff]
          %v541 = vld [vmem:[#allocation3 + $0x400] sm:$0xff]
          %v542 = vld [vmem:[#allocation3 + $0x408] sm:$0xff]
          %v543 = vld [vmem:[#allocation3 + $0x410] sm:$0xff]
          %v544 = vld [vmem:[#allocation3 + $0x418] sm:$0xff]
          %v545 = vld [vmem:[#allocation3 + $0x420] sm:$0xff]
          %v546 = vld [vmem:[#allocation3 + $0x428] sm:$0xff]
          %v547 = vld [vmem:[#allocation3 + $0x430] sm:$0xff]
          %v548 = vld [vmem:[#allocation3 + $0x438] sm:$0xff]
          %v549 = vld [vmem:[#allocation3 + $0x440] sm:$0xff]
          %v550 = vld [vmem:[#allocation3 + $0x448] sm:$0xff]
          %v551 = vld [vmem:[#allocation3 + $0x450] sm:$0xff]
          %v552 = vld [vmem:[#allocation3 + $0x458] sm:$0xff]
          %v553 = vld [vmem:[#allocation3 + $0x460] sm:$0xff]
          %v554 = vld [vmem:[#allocation3 + $0x468] sm:$0xff]
          %v555 = vld [vmem:[#allocation3 + $0x470] sm:$0xff]
          %v556 = vld [vmem:[#allocation3 + $0x478] sm:$0xff]
          %v557 = vld [vmem:[#allocation3 + $0x480] sm:$0xff]
          %v558 = vld [vmem:[#allocation3 + $0x488] sm:$0xff]
          %v559 = vld [vmem:[#allocation3 + $0x490] sm:$0xff]
          %v560 = vld [vmem:[#allocation3 + $0x498] sm:$0xff]
          %v561 = vld [vmem:[#allocation3 + $0x4a0] sm:$0xff]
          %v562 = vld [vmem:[#allocation3 + $0x4a8] sm:$0xff]
          %v563 = vld [vmem:[#allocation3 + $0x4b0] sm:$0xff]
          %v564 = vld [vmem:[#allocation3 + $0x4b8] sm:$0xff]
          %v565 = vld [vmem:[#allocation3 + $0x4c0] sm:$0xff]
          %v566 = vld [vmem:[#allocation3 + $0x4c8] sm:$0xff]
          %v567 = vld [vmem:[#allocation3 + $0x4d0] sm:$0xff]
          %v568 = vld [vmem:[#allocation3 + $0x4d8] sm:$0xff]
          %v569 = vld [vmem:[#allocation3 + $0x4e0] sm:$0xff]
          %v570 = vld [vmem:[#allocation3 + $0x4e8] sm:$0xff]
          %v571 = vld [vmem:[#allocation3 + $0x4f0] sm:$0xff]
          %v572 = vld [vmem:[#allocation3 + $0x4f8] sm:$0xff]
          %v573 = vld [vmem:[#allocation3 + $0x500] sm:$0xff]
          %v574 = vld [vmem:[#allocation3 + $0x508] sm:$0xff]
          %v575 = vld [vmem:[#allocation3 + $0x510] sm:$0xff]
          %v576 = vld [vmem:[#allocation3 + $0x518] sm:$0xff]
          %v577 = vld [vmem:[#allocation3 + $0x520] sm:$0xff]
          %v578 = vld [vmem:[#allocation3 + $0x528] sm:$0xff]
          %v579 = vld [vmem:[#allocation3 + $0x530] sm:$0xff]
          %v580 = vld [vmem:[#allocation3 + $0x538] sm:$0xff]
          %v581 = vld [vmem:[#allocation3 + $0x540] sm:$0xff]
          %v582 = vld [vmem:[#allocation3 + $0x548] sm:$0xff]
          %v583 = vld [vmem:[#allocation3 + $0x550] sm:$0xff]
          %v584 = vld [vmem:[#allocation3 + $0x558] sm:$0xff]
          %v585 = vld [vmem:[#allocation3 + $0x560] sm:$0xff]
          %v586 = vld [vmem:[#allocation3 + $0x568] sm:$0xff]
          %v587 = vld [vmem:[#allocation3 + $0x570] sm:$0xff]
          %v588 = vld [vmem:[#allocation3 + $0x578] sm:$0xff]
          %v589 = vld [vmem:[#allocation3 + $0x580] sm:$0xff]
          %v590 = vld [vmem:[#allocation3 + $0x588] sm:$0xff]
          %v591 = vld [vmem:[#allocation3 + $0x590] sm:$0xff]
          %v592 = vld [vmem:[#allocation3 + $0x598] sm:$0xff]
          %v593 = vld [vmem:[#allocation3 + $0x5a0] sm:$0xff]
          %v594 = vld [vmem:[#allocation3 + $0x5a8] sm:$0xff]
          %v595 = vld [vmem:[#allocation3 + $0x5b0] sm:$0xff]
          %v596 = vld [vmem:[#allocation3 + $0x5b8] sm:$0xff]
          %v597 = vld [vmem:[#allocation3 + $0x5c0] sm:$0xff]
          %v598 = vld [vmem:[#allocation3 + $0x5c8] sm:$0xff]
          %v599 = vld [vmem:[#allocation3 + $0x5d0] sm:$0xff]
          %v600 = vld [vmem:[#allocation3 + $0x5d8] sm:$0xff]
          %v601 = vld [vmem:[#allocation3 + $0x5e0] sm:$0xff]
          %v602 = vld [vmem:[#allocation3 + $0x5e8] sm:$0xff]
          %v603 = vld [vmem:[#allocation3 + $0x5f0] sm:$0xff]
          %v604 = vld [vmem:[#allocation3 + $0x5f8] sm:$0xff]
          %v605 = vld [vmem:[#allocation3 + $0x600] sm:$0xff]
          %v606 = vld [vmem:[#allocation3 + $0x608] sm:$0xff]
          %v607 = vld [vmem:[#allocation3 + $0x610] sm:$0xff]
          %v608 = vld [vmem:[#allocation3 + $0x618] sm:$0xff]
          %v609 = vld [vmem:[#allocation3 + $0x620] sm:$0xff]
          %v610 = vld [vmem:[#allocation3 + $0x628] sm:$0xff]
          %v611 = vld [vmem:[#allocation3 + $0x630] sm:$0xff]
          %v612 = vld [vmem:[#allocation3 + $0x638] sm:$0xff]
          %v613 = vld [vmem:[#allocation3 + $0x640] sm:$0xff]
          %v614 = vld [vmem:[#allocation3 + $0x648] sm:$0xff]
          %v615 = vld [vmem:[#allocation3 + $0x650] sm:$0xff]
          %v616 = vld [vmem:[#allocation3 + $0x658] sm:$0xff]
          %v617 = vld [vmem:[#allocation3 + $0x660] sm:$0xff]
          %v618 = vld [vmem:[#allocation3 + $0x668] sm:$0xff]
          %v619 = vld [vmem:[#allocation3 + $0x670] sm:$0xff]
          %v620 = vld [vmem:[#allocation3 + $0x678] sm:$0xff]
          %v621 = vld [vmem:[#allocation3 + $0x680] sm:$0xff]
          %v622 = vld [vmem:[#allocation3 + $0x688] sm:$0xff]
          %v623 = vld [vmem:[#allocation3 + $0x690] sm:$0xff]
          %v624 = vld [vmem:[#allocation3 + $0x698] sm:$0xff]
          %v625 = vld [vmem:[#allocation3 + $0x6a0] sm:$0xff]
          %v626 = vld [vmem:[#allocation3 + $0x6a8] sm:$0xff]
          %v627 = vld [vmem:[#allocation3 + $0x6b0] sm:$0xff]
          %v628 = vld [vmem:[#allocation3 + $0x6b8] sm:$0xff]
          %v629 = vld [vmem:[#allocation3 + $0x6c0] sm:$0xff]
          %v630 = vld [vmem:[#allocation3 + $0x6c8] sm:$0xff]
          %v631 = vld [vmem:[#allocation3 + $0x6d0] sm:$0xff]
          %v632 = vld [vmem:[#allocation3 + $0x6d8] sm:$0xff]
          %v633 = vld [vmem:[#allocation3 + $0x6e0] sm:$0xff]
          %v634 = vld [vmem:[#allocation3 + $0x6e8] sm:$0xff]
          %v635 = vld [vmem:[#allocation3 + $0x6f0] sm:$0xff]
          %v636 = vld [vmem:[#allocation3 + $0x6f8] sm:$0xff]
          %v637 = vld [vmem:[#allocation3 + $0x700] sm:$0xff]
          %v638 = vld [vmem:[#allocation3 + $0x708] sm:$0xff]
          %v639 = vld [vmem:[#allocation3 + $0x710] sm:$0xff]
          %v640 = vld [vmem:[#allocation3 + $0x718] sm:$0xff]
          %v641 = vld [vmem:[#allocation3 + $0x720] sm:$0xff]
          %v642 = vld [vmem:[#allocation3 + $0x728] sm:$0xff]
          %v643 = vld [vmem:[#allocation3 + $0x730] sm:$0xff]
          %v644 = vld [vmem:[#allocation3 + $0x738] sm:$0xff]
          %v645 = vld [vmem:[#allocation3 + $0x740] sm:$0xff]
          %v646 = vld [vmem:[#allocation3 + $0x748] sm:$0xff]
          %v647 = vld [vmem:[#allocation3 + $0x750] sm:$0xff]
          %v648 = vld [vmem:[#allocation3 + $0x758] sm:$0xff]
          %v649 = vld [vmem:[#allocation3 + $0x760] sm:$0xff]
          %v650 = vld [vmem:[#allocation3 + $0x768] sm:$0xff]
          %v651 = vld [vmem:[#allocation3 + $0x770] sm:$0xff]
          %v652 = vld [vmem:[#allocation3 + $0x778] sm:$0xff]
          %v653 = vld [vmem:[#allocation3 + $0x780] sm:$0xff]
          %v654 = vld [vmem:[#allocation3 + $0x788] sm:$0xff]
          %v655 = vld [vmem:[#allocation3 + $0x790] sm:$0xff]
          %v656 = vld [vmem:[#allocation3 + $0x798] sm:$0xff]
          %v657 = vld [vmem:[#allocation3 + $0x7a0] sm:$0xff]
          %v658 = vld [vmem:[#allocation3 + $0x7a8] sm:$0xff]
          %v659 = vld [vmem:[#allocation3 + $0x7b0] sm:$0xff]
          %v660 = vld [vmem:[#allocation3 + $0x7b8] sm:$0xff]
          %v661 = vld [vmem:[#allocation3 + $0x7c0] sm:$0xff]
          %v662 = vld [vmem:[#allocation3 + $0x7c8] sm:$0xff]
          %v663 = vld [vmem:[#allocation3 + $0x7d0] sm:$0xff]
          %v664 = vld [vmem:[#allocation3 + $0x7d8] sm:$0xff]
          %v665 = vld [vmem:[#allocation3 + $0x7e0] sm:$0xff]
          %v666 = vld [vmem:[#allocation3 + $0x7e8] sm:$0xff]
          %v667 = vld [vmem:[#allocation3 + $0x7f0] sm:$0xff]
          %v668 = vld [vmem:[#allocation3 + $0x7f8] sm:$0xff]
          %v669 = vld [vmem:[#allocation3 + $0x800] sm:$0xff]
          %v670 = vld [vmem:[#allocation3 + $0x808] sm:$0xff]
          %v671 = vld [vmem:[#allocation3 + $0x810] sm:$0xff]
          %v672 = vld [vmem:[#allocation3 + $0x818] sm:$0xff]
          %v673 = vld [vmem:[#allocation3 + $0x820] sm:$0xff]
          %v674 = vld [vmem:[#allocation3 + $0x828] sm:$0xff]
          %v675 = vld [vmem:[#allocation3 + $0x830] sm:$0xff]
          %v676 = vld [vmem:[#allocation3 + $0x838] sm:$0xff]
          %v677 = vld [vmem:[#allocation3 + $0x840] sm:$0xff]
          %v678 = vld [vmem:[#allocation3 + $0x848] sm:$0xff]
          %v679 = vld [vmem:[#allocation3 + $0x850] sm:$0xff]
          %v680 = vld [vmem:[#allocation3 + $0x858] sm:$0xff]
          %v681 = vld [vmem:[#allocation3 + $0x860] sm:$0xff]
          %v682 = vld [vmem:[#allocation3 + $0x868] sm:$0xff]
          %v683 = vld [vmem:[#allocation3 + $0x870] sm:$0xff]
          %v684 = vld [vmem:[#allocation3 + $0x878] sm:$0xff]
          %v685 = vld [vmem:[#allocation3 + $0x880] sm:$0xff]
          %v686 = vld [vmem:[#allocation3 + $0x888] sm:$0xff]
          %v687 = vld [vmem:[#allocation3 + $0x890] sm:$0xff]
          %v688 = vld [vmem:[#allocation3 + $0x898] sm:$0xff]
          %v689 = vld [vmem:[#allocation3 + $0x8a0] sm:$0xff]
          %v690 = vld [vmem:[#allocation3 + $0x8a8] sm:$0xff]
          %v691 = vld [vmem:[#allocation3 + $0x8b0] sm:$0xff]
          %v692 = vld [vmem:[#allocation3 + $0x8b8] sm:$0xff]
          %v693 = vld [vmem:[#allocation3 + $0x8c0] sm:$0xff]
          %v694 = vld [vmem:[#allocation3 + $0x8c8] sm:$0xff]
          %v695 = vld [vmem:[#allocation3 + $0x8d0] sm:$0xff]
          %v696 = vld [vmem:[#allocation3 + $0x8d8] sm:$0xff]
          %v697 = vld [vmem:[#allocation3 + $0x8e0] sm:$0xff]
          %v698 = vld [vmem:[#allocation3 + $0x8e8] sm:$0xff]
          %v699 = vld [vmem:[#allocation3 + $0x8f0] sm:$0xff]
          %v700 = vld [vmem:[#allocation3 + $0x8f8] sm:$0xff]
          %v701 = vld [vmem:[#allocation3 + $0x900] sm:$0xff]
          %v702 = vld [vmem:[#allocation3 + $0x908] sm:$0xff]
          %v703 = vld [vmem:[#allocation3 + $0x910] sm:$0xff]
          %v704 = vld [vmem:[#allocation3 + $0x918] sm:$0xff]
          %v705 = vld [vmem:[#allocation3 + $0x920] sm:$0xff]
          %v706 = vld [vmem:[#allocation3 + $0x928] sm:$0xff]
          %v707 = vld [vmem:[#allocation3 + $0x930] sm:$0xff]
          %v708 = vld [vmem:[#allocation3 + $0x938] sm:$0xff]
          %v709 = vld [vmem:[#allocation3 + $0x940] sm:$0xff]
          %v710 = vld [vmem:[#allocation3 + $0x948] sm:$0xff]
          %v711 = vld [vmem:[#allocation3 + $0x950] sm:$0xff]
          %v712 = vld [vmem:[#allocation3 + $0x958] sm:$0xff]
          %v713 = vld [vmem:[#allocation3 + $0x960] sm:$0xff]
          %v714 = vld [vmem:[#allocation3 + $0x968] sm:$0xff]
          %v715 = vld [vmem:[#allocation3 + $0x970] sm:$0xff]
          %v716 = vld [vmem:[#allocation3 + $0x978] sm:$0xff]
          %v717 = vld [vmem:[#allocation3 + $0x980] sm:$0xff]
          %v718 = vld [vmem:[#allocation3 + $0x988] sm:$0xff]
          %v719 = vld [vmem:[#allocation3 + $0x990] sm:$0xff]
          %v720 = vld [vmem:[#allocation3 + $0x998] sm:$0xff]
          %v721 = vld [vmem:[#allocation3 + $0x9a0] sm:$0xff]
          %v722 = vld [vmem:[#allocation3 + $0x9a8] sm:$0xff]
          %v723 = vld [vmem:[#allocation3 + $0x9b0] sm:$0xff]
          %v724 = vld [vmem:[#allocation3 + $0x9b8] sm:$0xff]
          %v725 = vld [vmem:[#allocation3 + $0x9c0] sm:$0xff]
          %v726 = vld [vmem:[#allocation3 + $0x9c8] sm:$0xff]
          %v727 = vld [vmem:[#allocation3 + $0x9d0] sm:$0xff]
          %v728 = vld [vmem:[#allocation3 + $0x9d8] sm:$0xff]
          %v729 = vld [vmem:[#allocation3 + $0x9e0] sm:$0xff]
          %v730 = vld [vmem:[#allocation3 + $0x9e8] sm:$0xff]
          %v731 = vld [vmem:[#allocation3 + $0x9f0] sm:$0xff]
          %v732 = vld [vmem:[#allocation3 + $0x9f8] sm:$0xff]
          %v733 = vld [vmem:[#allocation3 + $0xa00] sm:$0xff]
          %v734 = vld [vmem:[#allocation3 + $0xa08] sm:$0xff]
          %v735 = vld [vmem:[#allocation3 + $0xa10] sm:$0xff]
          %v736 = vld [vmem:[#allocation3 + $0xa18] sm:$0xff]
          %v737 = vld [vmem:[#allocation3 + $0xa20] sm:$0xff]
          %v738 = vld [vmem:[#allocation3 + $0xa28] sm:$0xff]
          %v739 = vld [vmem:[#allocation3 + $0xa30] sm:$0xff]
          %v740 = vld [vmem:[#allocation3 + $0xa38] sm:$0xff]
          %v741 = vld [vmem:[#allocation3 + $0xa40] sm:$0xff]
          %v742 = vld [vmem:[#allocation3 + $0xa48] sm:$0xff]
          %v743 = vld [vmem:[#allocation3 + $0xa50] sm:$0xff]
          %v744 = vld [vmem:[#allocation3 + $0xa58] sm:$0xff]
          %v745 = vld [vmem:[#allocation3 + $0xa60] sm:$0xff]
          %v746 = vld [vmem:[#allocation3 + $0xa68] sm:$0xff]
          %v747 = vld [vmem:[#allocation3 + $0xa70] sm:$0xff]
          %v748 = vld [vmem:[#allocation3 + $0xa78] sm:$0xff]
          %v749 = vld [vmem:[#allocation3 + $0xa80] sm:$0xff]
          %v750 = vld [vmem:[#allocation3 + $0xa88] sm:$0xff]
          %v751 = vld [vmem:[#allocation3 + $0xa90] sm:$0xff]
          %v752 = vld [vmem:[#allocation3 + $0xa98] sm:$0xff]
          %v753 = vld [vmem:[#allocation3 + $0xaa0] sm:$0xff]
          %v754 = vld [vmem:[#allocation3 + $0xaa8] sm:$0xff]
          %v755 = vld [vmem:[#allocation3 + $0xab0] sm:$0xff]
          %v756 = vld [vmem:[#allocation3 + $0xab8] sm:$0xff]
          %v757 = vld [vmem:[#allocation3 + $0xac0] sm:$0xff]
          %v758 = vld [vmem:[#allocation3 + $0xac8] sm:$0xff]
          %v759 = vld [vmem:[#allocation3 + $0xad0] sm:$0xff]
          %v760 = vld [vmem:[#allocation3 + $0xad8] sm:$0xff]
          %v761 = vld [vmem:[#allocation3 + $0xae0] sm:$0xff]
          %v762 = vld [vmem:[#allocation3 + $0xae8] sm:$0xff]
          %v763 = vld [vmem:[#allocation3 + $0xaf0] sm:$0xff]
          %v764 = vld [vmem:[#allocation3 + $0xaf8] sm:$0xff]
          %v765 = vld [vmem:[#allocation3 + $0xb00] sm:$0xff]
          %v766 = vld [vmem:[#allocation3 + $0xb08] sm:$0xff]
          %v767 = vld [vmem:[#allocation3 + $0xb10] sm:$0xff]
          %v768 = vld [vmem:[#allocation3 + $0xb18] sm:$0xff]
          %v769 = vld [vmem:[#allocation3 + $0xb20] sm:$0xff]
          %v770 = vld [vmem:[#allocation3 + $0xb28] sm:$0xff]
          %v771 = vld [vmem:[#allocation3 + $0xb30] sm:$0xff]
          %v772 = vld [vmem:[#allocation3 + $0xb38] sm:$0xff]
          %v773 = vld [vmem:[#allocation3 + $0xb40] sm:$0xff]
          %v774 = vld [vmem:[#allocation3 + $0xb48] sm:$0xff]
          %v775 = vld [vmem:[#allocation3 + $0xb50] sm:$0xff]
          %v776 = vld [vmem:[#allocation3 + $0xb58] sm:$0xff]
          %v777 = vld [vmem:[#allocation3 + $0xb60] sm:$0xff]
          %v778 = vld [vmem:[#allocation3 + $0xb68] sm:$0xff]
          %v779 = vld [vmem:[#allocation3 + $0xb70] sm:$0xff]
          %v780 = vld [vmem:[#allocation3 + $0xb78] sm:$0xff]
          %v781 = vld [vmem:[#allocation3 + $0xb80] sm:$0xff]
          %v782 = vld [vmem:[#allocation3 + $0xb88] sm:$0xff]
          %v783 = vld [vmem:[#allocation3 + $0xb90] sm:$0xff]
          %v784 = vld [vmem:[#allocation3 + $0xb98] sm:$0xff]
          %v785 = vld [vmem:[#allocation3 + $0xba0] sm:$0xff]
          %v786 = vld [vmem:[#allocation3 + $0xba8] sm:$0xff]
          %v787 = vld [vmem:[#allocation3 + $0xbb0] sm:$0xff]
          %v788 = vld [vmem:[#allocation3 + $0xbb8] sm:$0xff]
          %v789 = vld [vmem:[#allocation3 + $0xbc0] sm:$0xff]
          %v790 = vld [vmem:[#allocation3 + $0xbc8] sm:$0xff]
          %v791 = vld [vmem:[#allocation3 + $0xbd0] sm:$0xff]
          %v792 = vld [vmem:[#allocation3 + $0xbd8] sm:$0xff]
          %v793 = vld [vmem:[#allocation3 + $0xbe0] sm:$0xff]
          %v794 = vld [vmem:[#allocation3 + $0xbe8] sm:$0xff]
          %v795 = vld [vmem:[#allocation3 + $0xbf0] sm:$0xff]
          %v796 = vld [vmem:[#allocation3 + $0xbf8] sm:$0xff]
          %v797 = vld [vmem:[#allocation3 + $0xc00] sm:$0xff]
          %v798 = vld [vmem:[#allocation3 + $0xc08] sm:$0xff]
          %v799 = vld [vmem:[#allocation3 + $0xc10] sm:$0xff]
          %v800 = vld [vmem:[#allocation3 + $0xc18] sm:$0xff]
          %v801 = vld [vmem:[#allocation3 + $0xc20] sm:$0xff]
          %v802 = vld [vmem:[#allocation3 + $0xc28] sm:$0xff]
          %v803 = vld [vmem:[#allocation3 + $0xc30] sm:$0xff]
          %v804 = vld [vmem:[#allocation3 + $0xc38] sm:$0xff]
          %v805 = vld [vmem:[#allocation3 + $0xc40] sm:$0xff]
          %v806 = vld [vmem:[#allocation3 + $0xc48] sm:$0xff]
          %v807 = vld [vmem:[#allocation3 + $0xc50] sm:$0xff]
          %v808 = vld [vmem:[#allocation3 + $0xc58] sm:$0xff]
          %v809 = vld [vmem:[#allocation3 + $0xc60] sm:$0xff]
          %v810 = vld [vmem:[#allocation3 + $0xc68] sm:$0xff]
          %v811 = vld [vmem:[#allocation3 + $0xc70] sm:$0xff]
          %v812 = vld [vmem:[#allocation3 + $0xc78] sm:$0xff]
          %v813 = vld [vmem:[#allocation3 + $0xc80] sm:$0xff]
          %v814 = vld [vmem:[#allocation3 + $0xc88] sm:$0xff]
          %v815 = vld [vmem:[#allocation3 + $0xc90] sm:$0xff]
          %v816 = vld [vmem:[#allocation3 + $0xc98] sm:$0xff]
          %v817 = vld [vmem:[#allocation3 + $0xca0] sm:$0xff]
          %v818 = vld [vmem:[#allocation3 + $0xca8] sm:$0xff]
          %v819 = vld [vmem:[#allocation3 + $0xcb0] sm:$0xff]
          %v820 = vld [vmem:[#allocation3 + $0xcb8] sm:$0xff]
          %v821 = vld [vmem:[#allocation3 + $0xcc0] sm:$0xff]
          %v822 = vld [vmem:[#allocation3 + $0xcc8] sm:$0xff]
          %v823 = vld [vmem:[#allocation3 + $0xcd0] sm:$0xff]
          %v824 = vld [vmem:[#allocation3 + $0xcd8] sm:$0xff]
          %v825 = vld [vmem:[#allocation3 + $0xce0] sm:$0xff]
          %v826 = vld [vmem:[#allocation3 + $0xce8] sm:$0xff]
          %v827 = vld [vmem:[#allocation3 + $0xcf0] sm:$0xff]
          %v828 = vld [vmem:[#allocation3 + $0xcf8] sm:$0xff]
          %v829 = vld [vmem:[#allocation3 + $0xd00] sm:$0xff]
          %v830 = vld [vmem:[#allocation3 + $0xd08] sm:$0xff]
          %v831 = vld [vmem:[#allocation3 + $0xd10] sm:$0xff]
          %v832 = vld [vmem:[#allocation3 + $0xd18] sm:$0xff]
          %v833 = vld [vmem:[#allocation3 + $0xd20] sm:$0xff]
          %v834 = vld [vmem:[#allocation3 + $0xd28] sm:$0xff]
          %v835 = vld [vmem:[#allocation3 + $0xd30] sm:$0xff]
          %v836 = vld [vmem:[#allocation3 + $0xd38] sm:$0xff]
          %v837 = vld [vmem:[#allocation3 + $0xd40] sm:$0xff]
          %v838 = vld [vmem:[#allocation3 + $0xd48] sm:$0xff]
          %v839 = vld [vmem:[#allocation3 + $0xd50] sm:$0xff]
          %v840 = vld [vmem:[#allocation3 + $0xd58] sm:$0xff]
          %v841 = vld [vmem:[#allocation3 + $0xd60] sm:$0xff]
          %v842 = vld [vmem:[#allocation3 + $0xd68] sm:$0xff]
          %v843 = vld [vmem:[#allocation3 + $0xd70] sm:$0xff]
          %v844 = vld [vmem:[#allocation3 + $0xd78] sm:$0xff]
          %v845 = vld [vmem:[#allocation3 + $0xd80] sm:$0xff]
          %v846 = vld [vmem:[#allocation3 + $0xd88] sm:$0xff]
          %v847 = vld [vmem:[#allocation3 + $0xd90] sm:$0xff]
          %v848 = vld [vmem:[#allocation3 + $0xd98] sm:$0xff]
          %v849 = vld [vmem:[#allocation3 + $0xda0] sm:$0xff]
          %v850 = vld [vmem:[#allocation3 + $0xda8] sm:$0xff]
          %v851 = vld [vmem:[#allocation3 + $0xdb0] sm:$0xff]
          %v852 = vld [vmem:[#allocation3 + $0xdb8] sm:$0xff]
          %v853 = vld [vmem:[#allocation3 + $0xdc0] sm:$0xff]
          %v854 = vld [vmem:[#allocation3 + $0xdc8] sm:$0xff]
          %v855 = vld [vmem:[#allocation3 + $0xdd0] sm:$0xff]
          %v856 = vld [vmem:[#allocation3 + $0xdd8] sm:$0xff]
          %v857 = vld [vmem:[#allocation3 + $0xde0] sm:$0xff]
          %v858 = vld [vmem:[#allocation3 + $0xde8] sm:$0xff]
          %v859 = vld [vmem:[#allocation3 + $0xdf0] sm:$0xff]
          %v860 = vld [vmem:[#allocation3 + $0xdf8] sm:$0xff]
          %v861 = vld [vmem:[#allocation3 + $0xe00] sm:$0xff]
          %v862 = vld [vmem:[#allocation3 + $0xe08] sm:$0xff]
          %v863 = vld [vmem:[#allocation3 + $0xe10] sm:$0xff]
          %v864 = vld [vmem:[#allocation3 + $0xe18] sm:$0xff]
          %v865 = vld [vmem:[#allocation3 + $0xe20] sm:$0xff]
          %v866 = vld [vmem:[#allocation3 + $0xe28] sm:$0xff]
          %v867 = vld [vmem:[#allocation3 + $0xe30] sm:$0xff]
          %v868 = vld [vmem:[#allocation3 + $0xe38] sm:$0xff]
          %v869 = vld [vmem:[#allocation3 + $0xe40] sm:$0xff]
          %v870 = vld [vmem:[#allocation3 + $0xe48] sm:$0xff]
          %v871 = vld [vmem:[#allocation3 + $0xe50] sm:$0xff]
          %v872 = vld [vmem:[#allocation3 + $0xe58] sm:$0xff]
          %v873 = vld [vmem:[#allocation3 + $0xe60] sm:$0xff]
          %v874 = vld [vmem:[#allocation3 + $0xe68] sm:$0xff]
          %v875 = vld [vmem:[#allocation3 + $0xe70] sm:$0xff]
          %v876 = vld [vmem:[#allocation3 + $0xe78] sm:$0xff]
          %v877 = vld [vmem:[#allocation3 + $0xe80] sm:$0xff]
          %v878 = vld [vmem:[#allocation3 + $0xe88] sm:$0xff]
          %v879 = vld [vmem:[#allocation3 + $0xe90] sm:$0xff]
          %v880 = vld [vmem:[#allocation3 + $0xe98] sm:$0xff]
          %v881 = vld [vmem:[#allocation3 + $0xea0] sm:$0xff]
          %v882 = vld [vmem:[#allocation3 + $0xea8] sm:$0xff]
          %v883 = vld [vmem:[#allocation3 + $0xeb0] sm:$0xff]
          %v884 = vld [vmem:[#allocation3 + $0xeb8] sm:$0xff]
          %v885 = vld [vmem:[#allocation3 + $0xec0] sm:$0xff]
          %v886 = vld [vmem:[#allocation3 + $0xec8] sm:$0xff]
          %v887 = vld [vmem:[#allocation3 + $0xed0] sm:$0xff]
          %v888 = vld [vmem:[#allocation3 + $0xed8] sm:$0xff]
          %v889 = vld [vmem:[#allocation3 + $0xee0] sm:$0xff]
          %v890 = vld [vmem:[#allocation3 + $0xee8] sm:$0xff]
          %v891 = vld [vmem:[#allocation3 + $0xef0] sm:$0xff]
          %v892 = vld [vmem:[#allocation3 + $0xef8] sm:$0xff]
          %v893 = vld [vmem:[#allocation3 + $0xf00] sm:$0xff]
          %v894 = vld [vmem:[#allocation3 + $0xf08] sm:$0xff]
          %v895 = vld [vmem:[#allocation3 + $0xf10] sm:$0xff]
          %v896 = vld [vmem:[#allocation3 + $0xf18] sm:$0xff]
          %v897 = vld [vmem:[#allocation3 + $0xf20] sm:$0xff]
          %v898 = vld [vmem:[#allocation3 + $0xf28] sm:$0xff]
          %v899 = vld [vmem:[#allocation3 + $0xf30] sm:$0xff]
          %v900 = vld [vmem:[#allocation3 + $0xf38] sm:$0xff]
          %v901 = vld [vmem:[#allocation3 + $0xf40] sm:$0xff]
          %v902 = vld [vmem:[#allocation3 + $0xf48] sm:$0xff]
          %v903 = vld [vmem:[#allocation3 + $0xf50] sm:$0xff]
          %v904 = vld [vmem:[#allocation3 + $0xf58] sm:$0xff]
          %v905 = vld [vmem:[#allocation3 + $0xf60] sm:$0xff]
          %v906 = vld [vmem:[#allocation3 + $0xf68] sm:$0xff]
          %v907 = vld [vmem:[#allocation3 + $0xf70] sm:$0xff]
          %v908 = vld [vmem:[#allocation3 + $0xf78] sm:$0xff]
          %v909 = vld [vmem:[#allocation3 + $0xf80] sm:$0xff]
          %v910 = vld [vmem:[#allocation3 + $0xf88] sm:$0xff]
          %v911 = vld [vmem:[#allocation3 + $0xf90] sm:$0xff]
          %v912 = vld [vmem:[#allocation3 + $0xf98] sm:$0xff]
          %v913 = vld [vmem:[#allocation3 + $0xfa0] sm:$0xff]
          %v914 = vld [vmem:[#allocation3 + $0xfa8] sm:$0xff]
          %v915 = vld [vmem:[#allocation3 + $0xfb0] sm:$0xff]
          %v916 = vld [vmem:[#allocation3 + $0xfb8] sm:$0xff]
          %v917 = vld [vmem:[#allocation3 + $0xfc0] sm:$0xff]
          %v918 = vld [vmem:[#allocation3 + $0xfc8] sm:$0xff]
          %v919 = vld [vmem:[#allocation3 + $0xfd0] sm:$0xff]
          %v920 = vld [vmem:[#allocation3 + $0xfd8] sm:$0xff]
          %v921 = vld [vmem:[#allocation3 + $0xfe0] sm:$0xff]
          %v922 = vld [vmem:[#allocation3 + $0xfe8] sm:$0xff]
          %v923 = vld [vmem:[#allocation3 + $0xff0] sm:$0xff]
          %v924 = vld [vmem:[#allocation3 + $0xff8] sm:$0xff]
          %v925 = vld [vmem:[#allocation3 + $0x1000] sm:$0xff]
          %v926 = vld [vmem:[#allocation3 + $0x1008] sm:$0xff]
          %v927 = vld [vmem:[#allocation3 + $0x1010] sm:$0xff]
          %v928 = vld [vmem:[#allocation3 + $0x1018] sm:$0xff]
          %v929 = vld [vmem:[#allocation3 + $0x1020] sm:$0xff]
          %v930 = vld [vmem:[#allocation3 + $0x1028] sm:$0xff]
          %v931 = vld [vmem:[#allocation3 + $0x1030] sm:$0xff]
          %v932 = vld [vmem:[#allocation3 + $0x1038] sm:$0xff]
          %v933 = vld [vmem:[#allocation3 + $0x1040] sm:$0xff]
          %v934 = vld [vmem:[#allocation3 + $0x1048] sm:$0xff]
          %v935 = vld [vmem:[#allocation3 + $0x1050] sm:$0xff]
          %v936 = vld [vmem:[#allocation3 + $0x1058] sm:$0xff]
          %v937 = vld [vmem:[#allocation3 + $0x1060] sm:$0xff]
          %v938 = vld [vmem:[#allocation3 + $0x1068] sm:$0xff]
          %v939 = vld [vmem:[#allocation3 + $0x1070] sm:$0xff]
          %v940 = vld [vmem:[#allocation3 + $0x1078] sm:$0xff]
          %v941 = vld [vmem:[#allocation3 + $0x1080] sm:$0xff]
          %v942 = vld [vmem:[#allocation3 + $0x1088] sm:$0xff]
          %v943 = vld [vmem:[#allocation3 + $0x1090] sm:$0xff]
          %v944 = vld [vmem:[#allocation3 + $0x1098] sm:$0xff]
          %v945 = vld [vmem:[#allocation3 + $0x10a0] sm:$0xff]
          %v946 = vld [vmem:[#allocation3 + $0x10a8] sm:$0xff]
          %v947 = vld [vmem:[#allocation3 + $0x10b0] sm:$0xff]
          %v948 = vld [vmem:[#allocation3 + $0x10b8] sm:$0xff]
          %v949 = vld [vmem:[#allocation3 + $0x10c0] sm:$0xff]
          %v950 = vld [vmem:[#allocation3 + $0x10c8] sm:$0xff]
          %v951 = vld [vmem:[#allocation3 + $0x10d0] sm:$0xff]
          %v952 = vld [vmem:[#allocation3 + $0x10d8] sm:$0xff]
          %v953 = vld [vmem:[#allocation3 + $0x10e0] sm:$0xff]
          %v954 = vld [vmem:[#allocation3 + $0x10e8] sm:$0xff]
          %v955 = vld [vmem:[#allocation3 + $0x10f0] sm:$0xff]
          %v956 = vld [vmem:[#allocation3 + $0x10f8] sm:$0xff]
          %v957 = vld [vmem:[#allocation3 + $0x1100] sm:$0xff]
          %v958 = vld [vmem:[#allocation3 + $0x1108] sm:$0xff]
          %v959 = vld [vmem:[#allocation3 + $0x1110] sm:$0xff]
          %v960 = vld [vmem:[#allocation3 + $0x1118] sm:$0xff]
          %v961 = vld [vmem:[#allocation3 + $0x1120] sm:$0xff]
          %v962 = vld [vmem:[#allocation3 + $0x1128] sm:$0xff]
          %v963 = vld [vmem:[#allocation3 + $0x1130] sm:$0xff]
          %v964 = vld [vmem:[#allocation3 + $0x1138] sm:$0xff]
          %v965 = vld [vmem:[#allocation3 + $0x1140] sm:$0xff]
          %v966 = vld [vmem:[#allocation3 + $0x1148] sm:$0xff]
          %v967 = vld [vmem:[#allocation3 + $0x1150] sm:$0xff]
          %v968 = vld [vmem:[#allocation3 + $0x1158] sm:$0xff]
          %v969 = vld [vmem:[#allocation3 + $0x1160] sm:$0xff]
          %v970 = vld [vmem:[#allocation3 + $0x1168] sm:$0xff]
          %v971 = vld [vmem:[#allocation3 + $0x1170] sm:$0xff]
          %v972 = vld [vmem:[#allocation3 + $0x1178] sm:$0xff]
          %v973 = vld [vmem:[#allocation3 + $0x1180] sm:$0xff]
          %v974 = vld [vmem:[#allocation3 + $0x1188] sm:$0xff]
          %v975 = vld [vmem:[#allocation3 + $0x1190] sm:$0xff]
          %v976 = vld [vmem:[#allocation3 + $0x1198] sm:$0xff]
          %v977 = vld [vmem:[#allocation3 + $0x11a0] sm:$0xff]
          %v978 = vld [vmem:[#allocation3 + $0x11a8] sm:$0xff]
          %v979 = vld [vmem:[#allocation3 + $0x11b0] sm:$0xff]
          %v980 = vld [vmem:[#allocation3 + $0x11b8] sm:$0xff]
          %v981 = vld [vmem:[#allocation3 + $0x11c0] sm:$0xff]
          %v982 = vld [vmem:[#allocation3 + $0x11c8] sm:$0xff]
          %v983 = vld [vmem:[#allocation3 + $0x11d0] sm:$0xff]
          %v984 = vld [vmem:[#allocation3 + $0x11d8] sm:$0xff]
          %v985 = vld [vmem:[#allocation3 + $0x11e0] sm:$0xff]
          %v986 = vld [vmem:[#allocation3 + $0x11e8] sm:$0xff]
          %v987 = vld [vmem:[#allocation3 + $0x11f0] sm:$0xff]
          %v988 = vld [vmem:[#allocation3 + $0x11f8] sm:$0xff]
          %v989 = vld [vmem:[#allocation3 + $0x1200] sm:$0xff]
          %v990 = vld [vmem:[#allocation3 + $0x1208] sm:$0xff]
          %v991 = vld [vmem:[#allocation3 + $0x1210] sm:$0xff]
          %v992 = vld [vmem:[#allocation3 + $0x1218] sm:$0xff]
          %v993 = vld [vmem:[#allocation3 + $0x1220] sm:$0xff]
          %v994 = vld [vmem:[#allocation3 + $0x1228] sm:$0xff]
          %v995 = vld [vmem:[#allocation3 + $0x1230] sm:$0xff]
          %v996 = vld [vmem:[#allocation3 + $0x1238] sm:$0xff]
          %v997 = vld [vmem:[#allocation3 + $0x1240] sm:$0xff]
          %v998 = vld [vmem:[#allocation3 + $0x1248] sm:$0xff]
          %v999 = vld [vmem:[#allocation3 + $0x1250] sm:$0xff]
          %v1000 = vld [vmem:[#allocation3 + $0x1258] sm:$0xff]
          %v1001 = vld [vmem:[#allocation3 + $0x1260] sm:$0xff]
          %v1002 = vld [vmem:[#allocation3 + $0x1268] sm:$0xff]
          %v1003 = vld [vmem:[#allocation3 + $0x1270] sm:$0xff]
          %v1004 = vld [vmem:[#allocation3 + $0x1278] sm:$0xff]
          %v1005 = vld [vmem:[#allocation3 + $0x1280] sm:$0xff]
          %v1006 = vld [vmem:[#allocation3 + $0x1288] sm:$0xff]
          %v1007 = vld [vmem:[#allocation3 + $0x1290] sm:$0xff]
          %v1008 = vld [vmem:[#allocation3 + $0x1298] sm:$0xff]
          %v1009 = vld [vmem:[#allocation3 + $0x12a0] sm:$0xff]
          %v1010 = vld [vmem:[#allocation3 + $0x12a8] sm:$0xff]
          %v1011 = vld [vmem:[#allocation3 + $0x12b0] sm:$0xff]
          %v1012 = vld [vmem:[#allocation3 + $0x12b8] sm:$0xff]
          %v1013 = vld [vmem:[#allocation3 + $0x12c0] sm:$0xff]
          %v1014 = vld [vmem:[#allocation3 + $0x12c8] sm:$0xff]
          %v1015 = vld [vmem:[#allocation3 + $0x12d0] sm:$0xff]
          %v1016 = vld [vmem:[#allocation3 + $0x12d8] sm:$0xff]
          %v1017 = vld [vmem:[#allocation3 + $0x12e0] sm:$0xff]
          %v1018 = vld [vmem:[#allocation3 + $0x12e8] sm:$0xff]
          %v1019 = vld [vmem:[#allocation3 + $0x12f0] sm:$0xff]
          %v1020 = vld [vmem:[#allocation3 + $0x12f8] sm:$0xff]
          %v1021 = vld [vmem:[#allocation3 + $0x1300] sm:$0xff]
          %v1022 = vld [vmem:[#allocation3 + $0x1308] sm:$0xff]
          %v1023 = vld [vmem:[#allocation3 + $0x1310] sm:$0xff]
          %v1024 = vld [vmem:[#allocation3 + $0x1318] sm:$0xff]
          %v1025 = vld [vmem:[#allocation3 + $0x1320] sm:$0xff]
          %v1026 = vld [vmem:[#allocation3 + $0x1328] sm:$0xff]
          %v1027 = vld [vmem:[#allocation3 + $0x1330] sm:$0xff]
          %v1028 = vld [vmem:[#allocation3 + $0x1338] sm:$0xff]
          %v1029 = vld [vmem:[#allocation3 + $0x1340] sm:$0xff]
          %v1030 = vld [vmem:[#allocation3 + $0x1348] sm:$0xff]
          %v1031 = vld [vmem:[#allocation3 + $0x1350] sm:$0xff]
          %v1032 = vld [vmem:[#allocation3 + $0x1358] sm:$0xff]
          %v1033 = vld [vmem:[#allocation3 + $0x1360] sm:$0xff]
          %v1034 = vld [vmem:[#allocation3 + $0x1368] sm:$0xff]
          %v1035 = vld [vmem:[#allocation3 + $0x1370] sm:$0xff]
          %v1036 = vld [vmem:[#allocation3 + $0x1378] sm:$0xff]
          %v1037 = vld [vmem:[#allocation3 + $0x1380] sm:$0xff]
          %v1038 = vld [vmem:[#allocation3 + $0x1388] sm:$0xff]
          %v1039 = vld [vmem:[#allocation3 + $0x1390] sm:$0xff]
          %v1040 = vld [vmem:[#allocation3 + $0x1398] sm:$0xff]
          %v1041 = vld [vmem:[#allocation3 + $0x13a0] sm:$0xff]
          %v1042 = vld [vmem:[#allocation3 + $0x13a8] sm:$0xff]
          %v1043 = vld [vmem:[#allocation3 + $0x13b0] sm:$0xff]
          %v1044 = vld [vmem:[#allocation3 + $0x13b8] sm:$0xff]
          %v1045 = vld [vmem:[#allocation3 + $0x13c0] sm:$0xff]
          %v1046 = vld [vmem:[#allocation3 + $0x13c8] sm:$0xff]
          %v1047 = vld [vmem:[#allocation3 + $0x13d0] sm:$0xff]
          %v1048 = vld [vmem:[#allocation3 + $0x13d8] sm:$0xff]
          %v1049 = vld [vmem:[#allocation3 + $0x13e0] sm:$0xff]
          %v1050 = vld [vmem:[#allocation3 + $0x13e8] sm:$0xff]
          %v1051 = vld [vmem:[#allocation3 + $0x13f0] sm:$0xff]
          %v1052 = vld [vmem:[#allocation3 + $0x13f8] sm:$0xff]
          %v1053 = vld [vmem:[#allocation3 + $0x1400] sm:$0xff]
          %v1054 = vld [vmem:[#allocation3 + $0x1408] sm:$0xff]
          %v1055 = vld [vmem:[#allocation3 + $0x1410] sm:$0xff]
          %v1056 = vld [vmem:[#allocation3 + $0x1418] sm:$0xff]
          %v1057 = vld [vmem:[#allocation3 + $0x1420] sm:$0xff]
          %v1058 = vld [vmem:[#allocation3 + $0x1428] sm:$0xff]
          %v1059 = vld [vmem:[#allocation3 + $0x1430] sm:$0xff]
          %v1060 = vld [vmem:[#allocation3 + $0x1438] sm:$0xff]
          %v1061 = vld [vmem:[#allocation3 + $0x1440] sm:$0xff]
          %v1062 = vld [vmem:[#allocation3 + $0x1448] sm:$0xff]
          %v1063 = vld [vmem:[#allocation3 + $0x1450] sm:$0xff]
          %v1064 = vld [vmem:[#allocation3 + $0x1458] sm:$0xff]
          %v1065 = vld [vmem:[#allocation3 + $0x1460] sm:$0xff]
          %v1066 = vld [vmem:[#allocation3 + $0x1468] sm:$0xff]
          %v1067 = vld [vmem:[#allocation3 + $0x1470] sm:$0xff]
          %v1068 = vld [vmem:[#allocation3 + $0x1478] sm:$0xff]
          %v1069 = vld [vmem:[#allocation3 + $0x1480] sm:$0xff]
          %v1070 = vld [vmem:[#allocation3 + $0x1488] sm:$0xff]
          %v1071 = vld [vmem:[#allocation3 + $0x1490] sm:$0xff]
          %v1072 = vld [vmem:[#allocation3 + $0x1498] sm:$0xff]
          %v1073 = vld [vmem:[#allocation3 + $0x14a0] sm:$0xff]
          %v1074 = vld [vmem:[#allocation3 + $0x14a8] sm:$0xff]
          %v1075 = vld [vmem:[#allocation3 + $0x14b0] sm:$0xff]
          %v1076 = vld [vmem:[#allocation3 + $0x14b8] sm:$0xff]
          %v1077 = vld [vmem:[#allocation3 + $0x14c0] sm:$0xff]
          %v1078 = vld [vmem:[#allocation3 + $0x14c8] sm:$0xff]
          %v1079 = vld [vmem:[#allocation3 + $0x14d0] sm:$0xff]
          %v1080 = vld [vmem:[#allocation3 + $0x14d8] sm:$0xff]
          %v1081 = vld [vmem:[#allocation3 + $0x14e0] sm:$0xff]
          %v1082 = vld [vmem:[#allocation3 + $0x14e8] sm:$0xff]
          %v1083 = vld [vmem:[#allocation3 + $0x14f0] sm:$0xff]
          %v1084 = vld [vmem:[#allocation3 + $0x14f8] sm:$0xff]
          %v1085 = vld [vmem:[#allocation3 + $0x1500] sm:$0xff]
          %v1086 = vld [vmem:[#allocation3 + $0x1508] sm:$0xff]
          %v1087 = vld [vmem:[#allocation3 + $0x1510] sm:$0xff]
          %v1088 = vld [vmem:[#allocation3 + $0x1518] sm:$0xff]
          %v1089 = vld [vmem:[#allocation3 + $0x1520] sm:$0xff]
          %v1090 = vld [vmem:[#allocation3 + $0x1528] sm:$0xff]
          %v1091 = vld [vmem:[#allocation3 + $0x1530] sm:$0xff]
          %v1092 = vld [vmem:[#allocation3 + $0x1538] sm:$0xff]
          %v1093 = vld [vmem:[#allocation3 + $0x1540] sm:$0xff]
          %v1094 = vld [vmem:[#allocation3 + $0x1548] sm:$0xff]
          %v1095 = vld [vmem:[#allocation3 + $0x1550] sm:$0xff]
          %v1096 = vld [vmem:[#allocation3 + $0x1558] sm:$0xff]
          %v1097 = vld [vmem:[#allocation3 + $0x1560] sm:$0xff]
          %v1098 = vld [vmem:[#allocation3 + $0x1568] sm:$0xff]
          %v1099 = vld [vmem:[#allocation3 + $0x1570] sm:$0xff]
          %v1100 = vld [vmem:[#allocation3 + $0x1578] sm:$0xff]
          %v1101 = vld [vmem:[#allocation3 + $0x1580] sm:$0xff]
          %v1102 = vld [vmem:[#allocation3 + $0x1588] sm:$0xff]
          %v1103 = vld [vmem:[#allocation3 + $0x1590] sm:$0xff]
          %v1104 = vld [vmem:[#allocation3 + $0x1598] sm:$0xff]
          %v1105 = vld [vmem:[#allocation3 + $0x15a0] sm:$0xff]
          %v1106 = vld [vmem:[#allocation3 + $0x15a8] sm:$0xff]
          %v1107 = vld [vmem:[#allocation3 + $0x15b0] sm:$0xff]
          %v1108 = vld [vmem:[#allocation3 + $0x15b8] sm:$0xff]
          %v1109 = vld [vmem:[#allocation3 + $0x15c0] sm:$0xff]
          %v1110 = vld [vmem:[#allocation3 + $0x15c8] sm:$0xff]
          %v1111 = vld [vmem:[#allocation3 + $0x15d0] sm:$0xff]
          %v1112 = vld [vmem:[#allocation3 + $0x15d8] sm:$0xff]
          %v1113 = vld [vmem:[#allocation3 + $0x15e0] sm:$0xff]
          %v1114 = vld [vmem:[#allocation3 + $0x15e8] sm:$0xff]
          %v1115 = vld [vmem:[#allocation3 + $0x15f0] sm:$0xff]
          %v1116 = vld [vmem:[#allocation3 + $0x15f8] sm:$0xff]
          %v1117 = vld [vmem:[#allocation3 + $0x1600] sm:$0xff]
          %v1118 = vld [vmem:[#allocation3 + $0x1608] sm:$0xff]
          %v1119 = vld [vmem:[#allocation3 + $0x1610] sm:$0xff]
          %v1120 = vld [vmem:[#allocation3 + $0x1618] sm:$0xff]
          %v1121 = vld [vmem:[#allocation3 + $0x1620] sm:$0xff]
          %v1122 = vld [vmem:[#allocation3 + $0x1628] sm:$0xff]
          %v1123 = vld [vmem:[#allocation3 + $0x1630] sm:$0xff]
          %v1124 = vld [vmem:[#allocation3 + $0x1638] sm:$0xff]
          %v1125 = vld [vmem:[#allocation3 + $0x1640] sm:$0xff]
          %v1126 = vld [vmem:[#allocation3 + $0x1648] sm:$0xff]
          %v1127 = vld [vmem:[#allocation3 + $0x1650] sm:$0xff]
          %v1128 = vld [vmem:[#allocation3 + $0x1658] sm:$0xff]
          %v1129 = vld [vmem:[#allocation3 + $0x1660] sm:$0xff]
          %v1130 = vld [vmem:[#allocation3 + $0x1668] sm:$0xff]
          %v1131 = vld [vmem:[#allocation3 + $0x1670] sm:$0xff]
          %v1132 = vld [vmem:[#allocation3 + $0x1678] sm:$0xff]
          %v1133 = vld [vmem:[#allocation3 + $0x1680] sm:$0xff]
          %v1134 = vld [vmem:[#allocation3 + $0x1688] sm:$0xff]
          %v1135 = vld [vmem:[#allocation3 + $0x1690] sm:$0xff]
          %v1136 = vld [vmem:[#allocation3 + $0x1698] sm:$0xff]
          %v1137 = vld [vmem:[#allocation3 + $0x16a0] sm:$0xff]
          %v1138 = vld [vmem:[#allocation3 + $0x16a8] sm:$0xff]
          %v1139 = vld [vmem:[#allocation3 + $0x16b0] sm:$0xff]
          %v1140 = vld [vmem:[#allocation3 + $0x16b8] sm:$0xff]
          %v1141 = vld [vmem:[#allocation3 + $0x16c0] sm:$0xff]
          %v1142 = vld [vmem:[#allocation3 + $0x16c8] sm:$0xff]
          %v1143 = vld [vmem:[#allocation3 + $0x16d0] sm:$0xff]
          %v1144 = vld [vmem:[#allocation3 + $0x16d8] sm:$0xff]
          %v1145 = vld [vmem:[#allocation3 + $0x16e0] sm:$0xff]
          %v1146 = vld [vmem:[#allocation3 + $0x16e8] sm:$0xff]
          %v1147 = vld [vmem:[#allocation3 + $0x16f0] sm:$0xff]
          %v1148 = vld [vmem:[#allocation3 + $0x16f8] sm:$0xff]
          %v1149 = vld [vmem:[#allocation3 + $0x1700] sm:$0xff]
          %v1150 = vld [vmem:[#allocation3 + $0x1708] sm:$0xff]
          %v1151 = vld [vmem:[#allocation3 + $0x1710] sm:$0xff]
          %v1152 = vld [vmem:[#allocation3 + $0x1718] sm:$0xff]
          %v1153 = vld [vmem:[#allocation3 + $0x1720] sm:$0xff]
          %v1154 = vld [vmem:[#allocation3 + $0x1728] sm:$0xff]
          %v1155 = vld [vmem:[#allocation3 + $0x1730] sm:$0xff]
          %v1156 = vld [vmem:[#allocation3 + $0x1738] sm:$0xff]
          %v1157 = vld [vmem:[#allocation3 + $0x1740] sm:$0xff]
          %v1158 = vld [vmem:[#allocation3 + $0x1748] sm:$0xff]
          %v1159 = vld [vmem:[#allocation3 + $0x1750] sm:$0xff]
          %v1160 = vld [vmem:[#allocation3 + $0x1758] sm:$0xff]
          %v1161 = vld [vmem:[#allocation3 + $0x1760] sm:$0xff]
          %v1162 = vld [vmem:[#allocation3 + $0x1768] sm:$0xff]
          %v1163 = vld [vmem:[#allocation3 + $0x1770] sm:$0xff]
          %v1164 = vld [vmem:[#allocation3 + $0x1778] sm:$0xff]
          %v1165 = vld [vmem:[#allocation3 + $0x1780] sm:$0xff]
          %v1166 = vld [vmem:[#allocation3 + $0x1788] sm:$0xff]
          %v1167 = vld [vmem:[#allocation3 + $0x1790] sm:$0xff]
          %v1168 = vld [vmem:[#allocation3 + $0x1798] sm:$0xff]
          %v1169 = vld [vmem:[#allocation3 + $0x17a0] sm:$0xff]
          %v1170 = vld [vmem:[#allocation3 + $0x17a8] sm:$0xff]
          %v1171 = vld [vmem:[#allocation3 + $0x17b0] sm:$0xff]
          %v1172 = vld [vmem:[#allocation3 + $0x17b8] sm:$0xff]
          %v1173 = vld [vmem:[#allocation3 + $0x17c0] sm:$0xff]
          %v1174 = vld [vmem:[#allocation3 + $0x17c8] sm:$0xff]
          %v1175 = vld [vmem:[#allocation3 + $0x17d0] sm:$0xff]
          %v1176 = vld [vmem:[#allocation3 + $0x17d8] sm:$0xff]
          %v1177 = vld [vmem:[#allocation3 + $0x17e0] sm:$0xff]
          %v1178 = vld [vmem:[#allocation3 + $0x17e8] sm:$0xff]
          %v1179 = vld [vmem:[#allocation3 + $0x17f0] sm:$0xff]
          %v1180 = vld [vmem:[#allocation3 + $0x17f8] sm:$0xff]
          %v1181 = vld [vmem:[#allocation3 + $0x1800] sm:$0xff]
          %v1182 = vld [vmem:[#allocation3 + $0x1808] sm:$0xff]
          %v1183 = vld [vmem:[#allocation3 + $0x1810] sm:$0xff]
          %v1184 = vld [vmem:[#allocation3 + $0x1818] sm:$0xff]
          %v1185 = vld [vmem:[#allocation3 + $0x1820] sm:$0xff]
          %v1186 = vld [vmem:[#allocation3 + $0x1828] sm:$0xff]
          %v1187 = vld [vmem:[#allocation3 + $0x1830] sm:$0xff]
          %v1188 = vld [vmem:[#allocation3 + $0x1838] sm:$0xff]
          %v1189 = vld [vmem:[#allocation3 + $0x1840] sm:$0xff]
          %v1190 = vld [vmem:[#allocation3 + $0x1848] sm:$0xff]
          %v1191 = vld [vmem:[#allocation3 + $0x1850] sm:$0xff]
          %v1192 = vld [vmem:[#allocation3 + $0x1858] sm:$0xff]
          %v1193 = vld [vmem:[#allocation3 + $0x1860] sm:$0xff]
          %v1194 = vld [vmem:[#allocation3 + $0x1868] sm:$0xff]
          %v1195 = vld [vmem:[#allocation3 + $0x1870] sm:$0xff]
          %v1196 = vld [vmem:[#allocation3 + $0x1878] sm:$0xff]
          %v1197 = vld [vmem:[#allocation3 + $0x1880] sm:$0xff]
          %v1198 = vld [vmem:[#allocation3 + $0x1888] sm:$0xff]
          %v1199 = vld [vmem:[#allocation3 + $0x1890] sm:$0xff]
          %v1200 = vld [vmem:[#allocation3 + $0x1898] sm:$0xff]
          %v1201 = vld [vmem:[#allocation3 + $0x18a0] sm:$0xff]
          %v1202 = vld [vmem:[#allocation3 + $0x18a8] sm:$0xff]
          %v1203 = vld [vmem:[#allocation3 + $0x18b0] sm:$0xff]
          %v1204 = vld [vmem:[#allocation3 + $0x18b8] sm:$0xff]
          %v1205 = vld [vmem:[#allocation3 + $0x18c0] sm:$0xff]
          %v1206 = vld [vmem:[#allocation3 + $0x18c8] sm:$0xff]
          %v1207 = vld [vmem:[#allocation3 + $0x18d0] sm:$0xff]
          %v1208 = vld [vmem:[#allocation3 + $0x18d8] sm:$0xff]
          %v1209 = vld [vmem:[#allocation3 + $0x18e0] sm:$0xff]
          %v1210 = vld [vmem:[#allocation3 + $0x18e8] sm:$0xff]
          %v1211 = vld [vmem:[#allocation3 + $0x18f0] sm:$0xff]
          %v1212 = vld [vmem:[#allocation3 + $0x18f8] sm:$0xff]
          %v1213 = vld [vmem:[#allocation3 + $0x1900] sm:$0xff]
          %v1214 = vld [vmem:[#allocation3 + $0x1908] sm:$0xff]
          %v1215 = vld [vmem:[#allocation3 + $0x1910] sm:$0xff]
          %v1216 = vld [vmem:[#allocation3 + $0x1918] sm:$0xff]
          %v1217 = vld [vmem:[#allocation3 + $0x1920] sm:$0xff]
          %v1218 = vld [vmem:[#allocation3 + $0x1928] sm:$0xff]
          %v1219 = vld [vmem:[#allocation3 + $0x1930] sm:$0xff]
          %v1220 = vld [vmem:[#allocation3 + $0x1938] sm:$0xff]
          %v1221 = vld [vmem:[#allocation3 + $0x1940] sm:$0xff]
          %v1222 = vld [vmem:[#allocation3 + $0x1948] sm:$0xff]
          %v1223 = vld [vmem:[#allocation3 + $0x1950] sm:$0xff]
          %v1224 = vld [vmem:[#allocation3 + $0x1958] sm:$0xff]
          %v1225 = vld [vmem:[#allocation3 + $0x1960] sm:$0xff]
          %v1226 = vld [vmem:[#allocation3 + $0x1968] sm:$0xff]
          %v1227 = vld [vmem:[#allocation3 + $0x1970] sm:$0xff]
          %v1228 = vld [vmem:[#allocation3 + $0x1978] sm:$0xff]
          %v1229 = vld [vmem:[#allocation3 + $0x1980] sm:$0xff]
          %v1230 = vld [vmem:[#allocation3 + $0x1988] sm:$0xff]
          %v1231 = vld [vmem:[#allocation3 + $0x1990] sm:$0xff]
          %v1232 = vld [vmem:[#allocation3 + $0x1998] sm:$0xff]
          %v1233 = vld [vmem:[#allocation3 + $0x19a0] sm:$0xff]
          %v1234 = vld [vmem:[#allocation3 + $0x19a8] sm:$0xff]
          %v1235 = vld [vmem:[#allocation3 + $0x19b0] sm:$0xff]
          %v1236 = vld [vmem:[#allocation3 + $0x19b8] sm:$0xff]
          %v1237 = vld [vmem:[#allocation3 + $0x19c0] sm:$0xff]
          %v1238 = vld [vmem:[#allocation3 + $0x19c8] sm:$0xff]
          %v1239 = vld [vmem:[#allocation3 + $0x19d0] sm:$0xff]
          %v1240 = vld [vmem:[#allocation3 + $0x19d8] sm:$0xff]
          %v1241 = vld [vmem:[#allocation3 + $0x19e0] sm:$0xff]
          %v1242 = vld [vmem:[#allocation3 + $0x19e8] sm:$0xff]
          %v1243 = vld [vmem:[#allocation3 + $0x19f0] sm:$0xff]
          %v1244 = vld [vmem:[#allocation3 + $0x19f8] sm:$0xff]
          %v1245 = vld [vmem:[#allocation3 + $0x1a00] sm:$0xff]
          %v1246 = vld [vmem:[#allocation3 + $0x1a08] sm:$0xff]
          %v1247 = vld [vmem:[#allocation3 + $0x1a10] sm:$0xff]
          %v1248 = vld [vmem:[#allocation3 + $0x1a18] sm:$0xff]
          %v1249 = vld [vmem:[#allocation3 + $0x1a20] sm:$0xff]
          %v1250 = vld [vmem:[#allocation3 + $0x1a28] sm:$0xff]
          %v1251 = vld [vmem:[#allocation3 + $0x1a30] sm:$0xff]
          %v1252 = vld [vmem:[#allocation3 + $0x1a38] sm:$0xff]
          %v1253 = vld [vmem:[#allocation3 + $0x1a40] sm:$0xff]
          %v1254 = vld [vmem:[#allocation3 + $0x1a48] sm:$0xff]
          %v1255 = vld [vmem:[#allocation3 + $0x1a50] sm:$0xff]
          %v1256 = vld [vmem:[#allocation3 + $0x1a58] sm:$0xff]
          %v1257 = vld [vmem:[#allocation3 + $0x1a60] sm:$0xff]
          %v1258 = vld [vmem:[#allocation3 + $0x1a68] sm:$0xff]
          %v1259 = vld [vmem:[#allocation3 + $0x1a70] sm:$0xff]
          %v1260 = vld [vmem:[#allocation3 + $0x1a78] sm:$0xff]
          %v1261 = vld [vmem:[#allocation3 + $0x1a80] sm:$0xff]
          %v1262 = vld [vmem:[#allocation3 + $0x1a88] sm:$0xff]
          %v1263 = vld [vmem:[#allocation3 + $0x1a90] sm:$0xff]
          %v1264 = vld [vmem:[#allocation3 + $0x1a98] sm:$0xff]
          %v1265 = vld [vmem:[#allocation3 + $0x1aa0] sm:$0xff]
          %v1266 = vld [vmem:[#allocation3 + $0x1aa8] sm:$0xff]
          %v1267 = vld [vmem:[#allocation3 + $0x1ab0] sm:$0xff]
          %v1268 = vld [vmem:[#allocation3 + $0x1ab8] sm:$0xff]
          %v1269 = vld [vmem:[#allocation3 + $0x1ac0] sm:$0xff]
          %v1270 = vld [vmem:[#allocation3 + $0x1ac8] sm:$0xff]
          %v1271 = vld [vmem:[#allocation3 + $0x1ad0] sm:$0xff]
          %v1272 = vld [vmem:[#allocation3 + $0x1ad8] sm:$0xff]
          %v1273 = vld [vmem:[#allocation3 + $0x1ae0] sm:$0xff]
          %v1274 = vld [vmem:[#allocation3 + $0x1ae8] sm:$0xff]
          %v1275 = vld [vmem:[#allocation3 + $0x1af0] sm:$0xff]
          %v1276 = vld [vmem:[#allocation3 + $0x1af8] sm:$0xff]
          %v1277 = vld [vmem:[#allocation3 + $0x1b00] sm:$0xff]
          %v1278 = vld [vmem:[#allocation3 + $0x1b08] sm:$0xff]
          %v1279 = vld [vmem:[#allocation3 + $0x1b10] sm:$0xff]
          %v1280 = vld [vmem:[#allocation3 + $0x1b18] sm:$0xff]
          %v1281 = vld [vmem:[#allocation3 + $0x1b20] sm:$0xff]
          %v1282 = vld [vmem:[#allocation3 + $0x1b28] sm:$0xff]
          %v1283 = vld [vmem:[#allocation3 + $0x1b30] sm:$0xff]
          %v1284 = vld [vmem:[#allocation3 + $0x1b38] sm:$0xff]
          %v1285 = vld [vmem:[#allocation3 + $0x1b40] sm:$0xff]
          %v1286 = vld [vmem:[#allocation3 + $0x1b48] sm:$0xff]
          %v1287 = vld [vmem:[#allocation3 + $0x1b50] sm:$0xff]
          %v1288 = vld [vmem:[#allocation3 + $0x1b58] sm:$0xff]
          %v1289 = vld [vmem:[#allocation3 + $0x1b60] sm:$0xff]
          %v1290 = vld [vmem:[#allocation3 + $0x1b68] sm:$0xff]
          %v1291 = vld [vmem:[#allocation3 + $0x1b70] sm:$0xff]
          %v1292 = vld [vmem:[#allocation3 + $0x1b78] sm:$0xff]
          %v1293 = vld [vmem:[#allocation3 + $0x1b80] sm:$0xff]
          %v1294 = vld [vmem:[#allocation3 + $0x1b88] sm:$0xff]
          %v1295 = vld [vmem:[#allocation3 + $0x1b90] sm:$0xff]
          %v1296 = vld [vmem:[#allocation3 + $0x1b98] sm:$0xff]
          %v1297 = vld [vmem:[#allocation3 + $0x1ba0] sm:$0xff]
          %v1298 = vld [vmem:[#allocation3 + $0x1ba8] sm:$0xff]
          %v1299 = vld [vmem:[#allocation3 + $0x1bb0] sm:$0xff]
          %v1300 = vld [vmem:[#allocation3 + $0x1bb8] sm:$0xff]
          %v1301 = vld [vmem:[#allocation3 + $0x1bc0] sm:$0xff]
          %v1302 = vld [vmem:[#allocation3 + $0x1bc8] sm:$0xff]
          %v1303 = vld [vmem:[#allocation3 + $0x1bd0] sm:$0xff]
          %v1304 = vld [vmem:[#allocation3 + $0x1bd8] sm:$0xff]
          %v1305 = vld [vmem:[#allocation3 + $0x1be0] sm:$0xff]
          %v1306 = vld [vmem:[#allocation3 + $0x1be8] sm:$0xff]
          %v1307 = vld [vmem:[#allocation3 + $0x1bf0] sm:$0xff]
          %v1308 = vld [vmem:[#allocation3 + $0x1bf8] sm:$0xff]
          %v1309 = vld [vmem:[#allocation3 + $0x1c00] sm:$0xff]
          %v1310 = vld [vmem:[#allocation3 + $0x1c08] sm:$0xff]
          %v1311 = vld [vmem:[#allocation3 + $0x1c10] sm:$0xff]
          %v1312 = vld [vmem:[#allocation3 + $0x1c18] sm:$0xff]
          %v1313 = vld [vmem:[#allocation3 + $0x1c20] sm:$0xff]
          %v1314 = vld [vmem:[#allocation3 + $0x1c28] sm:$0xff]
          %v1315 = vld [vmem:[#allocation3 + $0x1c30] sm:$0xff]
          %v1316 = vld [vmem:[#allocation3 + $0x1c38] sm:$0xff]
          %v1317 = vld [vmem:[#allocation3 + $0x1c40] sm:$0xff]
          %v1318 = vld [vmem:[#allocation3 + $0x1c48] sm:$0xff]
          %v1319 = vld [vmem:[#allocation3 + $0x1c50] sm:$0xff]
          %v1320 = vld [vmem:[#allocation3 + $0x1c58] sm:$0xff]
          %v1321 = vld [vmem:[#allocation3 + $0x1c60] sm:$0xff]
          %v1322 = vld [vmem:[#allocation3 + $0x1c68] sm:$0xff]
          %v1323 = vld [vmem:[#allocation3 + $0x1c70] sm:$0xff]
          %v1324 = vld [vmem:[#allocation3 + $0x1c78] sm:$0xff]
          %v1325 = vld [vmem:[#allocation3 + $0x1c80] sm:$0xff]
          %v1326 = vld [vmem:[#allocation3 + $0x1c88] sm:$0xff]
          %v1327 = vld [vmem:[#allocation3 + $0x1c90] sm:$0xff]
          %v1328 = vld [vmem:[#allocation3 + $0x1c98] sm:$0xff]
          %v1329 = vld [vmem:[#allocation3 + $0x1ca0] sm:$0xff]
          %v1330 = vld [vmem:[#allocation3 + $0x1ca8] sm:$0xff]
          %v1331 = vld [vmem:[#allocation3 + $0x1cb0] sm:$0xff]
          %v1332 = vld [vmem:[#allocation3 + $0x1cb8] sm:$0xff]
          %v1333 = vld [vmem:[#allocation3 + $0x1cc0] sm:$0xff]
          %v1334 = vld [vmem:[#allocation3 + $0x1cc8] sm:$0xff]
          %v1335 = vld [vmem:[#allocation3 + $0x1cd0] sm:$0xff]
          %v1336 = vld [vmem:[#allocation3 + $0x1cd8] sm:$0xff]
          %v1337 = vld [vmem:[#allocation3 + $0x1ce0] sm:$0xff]
          %v1338 = vld [vmem:[#allocation3 + $0x1ce8] sm:$0xff]
          %v1339 = vld [vmem:[#allocation3 + $0x1cf0] sm:$0xff]
          %v1340 = vld [vmem:[#allocation3 + $0x1cf8] sm:$0xff]
          %v1341 = vld [vmem:[#allocation3 + $0x1d00] sm:$0xff]
          %v1342 = vld [vmem:[#allocation3 + $0x1d08] sm:$0xff]
          %v1343 = vld [vmem:[#allocation3 + $0x1d10] sm:$0xff]
          %v1344 = vld [vmem:[#allocation3 + $0x1d18] sm:$0xff]
          %v1345 = vld [vmem:[#allocation3 + $0x1d20] sm:$0xff]
          %v1346 = vld [vmem:[#allocation3 + $0x1d28] sm:$0xff]
          %v1347 = vld [vmem:[#allocation3 + $0x1d30] sm:$0xff]
          %v1348 = vld [vmem:[#allocation3 + $0x1d38] sm:$0xff]
          %v1349 = vld [vmem:[#allocation3 + $0x1d40] sm:$0xff]
          %v1350 = vld [vmem:[#allocation3 + $0x1d48] sm:$0xff]
          %v1351 = vld [vmem:[#allocation3 + $0x1d50] sm:$0xff]
          %v1352 = vld [vmem:[#allocation3 + $0x1d58] sm:$0xff]
          %v1353 = vld [vmem:[#allocation3 + $0x1d60] sm:$0xff]
          %v1354 = vld [vmem:[#allocation3 + $0x1d68] sm:$0xff]
          %v1355 = vld [vmem:[#allocation3 + $0x1d70] sm:$0xff]
          %v1356 = vld [vmem:[#allocation3 + $0x1d78] sm:$0xff]
          %v1357 = vld [vmem:[#allocation3 + $0x1d80] sm:$0xff]
          %v1358 = vld [vmem:[#allocation3 + $0x1d88] sm:$0xff]
          %v1359 = vld [vmem:[#allocation3 + $0x1d90] sm:$0xff]
          %v1360 = vld [vmem:[#allocation3 + $0x1d98] sm:$0xff]
          %v1361 = vld [vmem:[#allocation3 + $0x1da0] sm:$0xff]
          %v1362 = vld [vmem:[#allocation3 + $0x1da8] sm:$0xff]
          %v1363 = vld [vmem:[#allocation3 + $0x1db0] sm:$0xff]
          %v1364 = vld [vmem:[#allocation3 + $0x1db8] sm:$0xff]
          %v1365 = vld [vmem:[#allocation3 + $0x1dc0] sm:$0xff]
          %v1366 = vld [vmem:[#allocation3 + $0x1dc8] sm:$0xff]
          %v1367 = vld [vmem:[#allocation3 + $0x1dd0] sm:$0xff]
          %v1368 = vld [vmem:[#allocation3 + $0x1dd8] sm:$0xff]
          %v1369 = vld [vmem:[#allocation3 + $0x1de0] sm:$0xff]
          %v1370 = vld [vmem:[#allocation3 + $0x1de8] sm:$0xff]
          %v1371 = vld [vmem:[#allocation3 + $0x1df0] sm:$0xff]
          %v1372 = vld [vmem:[#allocation3 + $0x1df8] sm:$0xff]
          %v1373 = vld [vmem:[#allocation3 + $0x1e00] sm:$0xff]
          %v1374 = vld [vmem:[#allocation3 + $0x1e08] sm:$0xff]
          %v1375 = vld [vmem:[#allocation3 + $0x1e10] sm:$0xff]
          %v1376 = vld [vmem:[#allocation3 + $0x1e18] sm:$0xff]
          %v1377 = vld [vmem:[#allocation3 + $0x1e20] sm:$0xff]
          %v1378 = vld [vmem:[#allocation3 + $0x1e28] sm:$0xff]
          %v1379 = vld [vmem:[#allocation3 + $0x1e30] sm:$0xff]
          %v1380 = vld [vmem:[#allocation3 + $0x1e38] sm:$0xff]
          %v1381 = vld [vmem:[#allocation3 + $0x1e40] sm:$0xff]
          %v1382 = vld [vmem:[#allocation3 + $0x1e48] sm:$0xff]
          %v1383 = vld [vmem:[#allocation3 + $0x1e50] sm:$0xff]
          %v1384 = vld [vmem:[#allocation3 + $0x1e58] sm:$0xff]
          %v1385 = vld [vmem:[#allocation3 + $0x1e60] sm:$0xff]
          %v1386 = vld [vmem:[#allocation3 + $0x1e68] sm:$0xff]
          %v1387 = vld [vmem:[#allocation3 + $0x1e70] sm:$0xff]
          %v1388 = vld [vmem:[#allocation3 + $0x1e78] sm:$0xff]
          %v1389 = vld [vmem:[#allocation3 + $0x1e80] sm:$0xff]
          %v1390 = vld [vmem:[#allocation3 + $0x1e88] sm:$0xff]
          %v1391 = vld [vmem:[#allocation3 + $0x1e90] sm:$0xff]
          %v1392 = vld [vmem:[#allocation3 + $0x1e98] sm:$0xff]
          %v1393 = vld [vmem:[#allocation3 + $0x1ea0] sm:$0xff]
          %v1394 = vld [vmem:[#allocation3 + $0x1ea8] sm:$0xff]
          %v1395 = vld [vmem:[#allocation3 + $0x1eb0] sm:$0xff]
          %v1396 = vld [vmem:[#allocation3 + $0x1eb8] sm:$0xff]
          %v1397 = vld [vmem:[#allocation3 + $0x1ec0] sm:$0xff]
          %v1398 = vld [vmem:[#allocation3 + $0x1ec8] sm:$0xff]
          %v1399 = vld [vmem:[#allocation3 + $0x1ed0] sm:$0xff]
          %v1400 = vld [vmem:[#allocation3 + $0x1ed8] sm:$0xff]
          %v1401 = vld [vmem:[#allocation3 + $0x1ee0] sm:$0xff]
          %v1402 = vld [vmem:[#allocation3 + $0x1ee8] sm:$0xff]
          %v1403 = vld [vmem:[#allocation3 + $0x1ef0] sm:$0xff]
          %v1404 = vld [vmem:[#allocation3 + $0x1ef8] sm:$0xff]
          %v1405 = vld [vmem:[#allocation3 + $0x1f00] sm:$0xff]
          %v1406 = vld [vmem:[#allocation3 + $0x1f08] sm:$0xff]
          %v1407 = vld [vmem:[#allocation3 + $0x1f10] sm:$0xff]
          %v1408 = vld [vmem:[#allocation3 + $0x1f18] sm:$0xff]
          %v1409 = vld [vmem:[#allocation3 + $0x1f20] sm:$0xff]
          %v1410 = vld [vmem:[#allocation3 + $0x1f28] sm:$0xff]
          %v1411 = vld [vmem:[#allocation3 + $0x1f30] sm:$0xff]
          %v1412 = vld [vmem:[#allocation3 + $0x1f38] sm:$0xff]
          %v1413 = vld [vmem:[#allocation3 + $0x1f40] sm:$0xff]
          %v1414 = vld [vmem:[#allocation3 + $0x1f48] sm:$0xff]
          %v1415 = vld [vmem:[#allocation3 + $0x1f50] sm:$0xff]
          %v1416 = vld [vmem:[#allocation3 + $0x1f58] sm:$0xff]
          %v1417 = vld [vmem:[#allocation3 + $0x1f60] sm:$0xff]
          %v1418 = vld [vmem:[#allocation3 + $0x1f68] sm:$0xff]
          %v1419 = vld [vmem:[#allocation3 + $0x1f70] sm:$0xff]
          %v1420 = vld [vmem:[#allocation3 + $0x1f78] sm:$0xff]
          %v1421 = vld [vmem:[#allocation3 + $0x1f80] sm:$0xff]
          %v1422 = vld [vmem:[#allocation3 + $0x1f88] sm:$0xff]
          %v1423 = vld [vmem:[#allocation3 + $0x1f90] sm:$0xff]
          %v1424 = vld [vmem:[#allocation3 + $0x1f98] sm:$0xff]
          %v1425 = vld [vmem:[#allocation3 + $0x1fa0] sm:$0xff]
          %v1426 = vld [vmem:[#allocation3 + $0x1fa8] sm:$0xff]
          %v1427 = vld [vmem:[#allocation3 + $0x1fb0] sm:$0xff]
          %v1428 = vld [vmem:[#allocation3 + $0x1fb8] sm:$0xff]
          %v1429 = vld [vmem:[#allocation3 + $0x1fc0] sm:$0xff]
          %v1430 = vld [vmem:[#allocation3 + $0x1fc8] sm:$0xff]
          %v1431 = vld [vmem:[#allocation3 + $0x1fd0] sm:$0xff]
          %v1432 = vld [vmem:[#allocation3 + $0x1fd8] sm:$0xff]
          %v1433 = vld [vmem:[#allocation3 + $0x1fe0] sm:$0xff]
          %v1434 = vld [vmem:[#allocation3 + $0x1fe8] sm:$0xff]
          %v1435 = vld [vmem:[#allocation3 + $0x1ff0] sm:$0xff]
          %v1436 = vld [vmem:[#allocation3 + $0x1ff8] sm:$0xff]
          %v1437 = vld [vmem:[#allocation3 + $0x2000] sm:$0xff]
          %v1438 = vld [vmem:[#allocation3 + $0x2008] sm:$0xff]
          %v1439 = vld [vmem:[#allocation3 + $0x2010] sm:$0xff]
          %v1440 = vld [vmem:[#allocation3 + $0x2018] sm:$0xff]
          %v1441 = vld [vmem:[#allocation3 + $0x2020] sm:$0xff]
          %v1442 = vld [vmem:[#allocation3 + $0x2028] sm:$0xff]
          %v1443 = vld [vmem:[#allocation3 + $0x2030] sm:$0xff]
          %v1444 = vld [vmem:[#allocation3 + $0x2038] sm:$0xff]
          %v1445 = vld [vmem:[#allocation3 + $0x2040] sm:$0xff]
          %v1446 = vld [vmem:[#allocation3 + $0x2048] sm:$0xff]
          %v1447 = vld [vmem:[#allocation3 + $0x2050] sm:$0xff]
          %v1448 = vld [vmem:[#allocation3 + $0x2058] sm:$0xff]
          %v1449 = vld [vmem:[#allocation3 + $0x2060] sm:$0xff]
          %v1450 = vld [vmem:[#allocation3 + $0x2068] sm:$0xff]
          %v1451 = vld [vmem:[#allocation3 + $0x2070] sm:$0xff]
          %v1452 = vld [vmem:[#allocation3 + $0x2078] sm:$0xff]
          %v1453 = vld [vmem:[#allocation3 + $0x2080] sm:$0xff]
          %v1454 = vld [vmem:[#allocation3 + $0x2088] sm:$0xff]
          %v1455 = vld [vmem:[#allocation3 + $0x2090] sm:$0xff]
          %v1456 = vld [vmem:[#allocation3 + $0x2098] sm:$0xff]
          %v1457 = vld [vmem:[#allocation3 + $0x20a0] sm:$0xff]
          %v1458 = vld [vmem:[#allocation3 + $0x20a8] sm:$0xff]
          %v1459 = vld [vmem:[#allocation3 + $0x20b0] sm:$0xff]
          %v1460 = vld [vmem:[#allocation3 + $0x20b8] sm:$0xff]
          %v1461 = vld [vmem:[#allocation3 + $0x20c0] sm:$0xff]
          %v1462 = vld [vmem:[#allocation3 + $0x20c8] sm:$0xff]
          %v1463 = vld [vmem:[#allocation3 + $0x20d0] sm:$0xff]
          %v1464 = vld [vmem:[#allocation3 + $0x20d8] sm:$0xff]
          %v1465 = vld [vmem:[#allocation3 + $0x20e0] sm:$0xff]
          %v1466 = vld [vmem:[#allocation3 + $0x20e8] sm:$0xff]
          %v1467 = vld [vmem:[#allocation3 + $0x20f0] sm:$0xff]
          %v1468 = vld [vmem:[#allocation3 + $0x20f8] sm:$0xff]
          %v1469 = vld [vmem:[#allocation3 + $0x2100] sm:$0xff]
          %v1470 = vld [vmem:[#allocation3 + $0x2108] sm:$0xff]
          %v1471 = vld [vmem:[#allocation3 + $0x2110] sm:$0xff]
          %v1472 = vld [vmem:[#allocation3 + $0x2118] sm:$0xff]
          %v1473 = vld [vmem:[#allocation3 + $0x2120] sm:$0xff]
          %v1474 = vld [vmem:[#allocation3 + $0x2128] sm:$0xff]
          %v1475 = vld [vmem:[#allocation3 + $0x2130] sm:$0xff]
          %v1476 = vld [vmem:[#allocation3 + $0x2138] sm:$0xff]
          %v1477 = vld [vmem:[#allocation3 + $0x2140] sm:$0xff]
          %v1478 = vld [vmem:[#allocation3 + $0x2148] sm:$0xff]
          %v1479 = vld [vmem:[#allocation3 + $0x2150] sm:$0xff]
          %v1480 = vld [vmem:[#allocation3 + $0x2158] sm:$0xff]
          %v1481 = vld [vmem:[#allocation3 + $0x2160] sm:$0xff]
          %v1482 = vld [vmem:[#allocation3 + $0x2168] sm:$0xff]
          %v1483 = vld [vmem:[#allocation3 + $0x2170] sm:$0xff]
          %v1484 = vld [vmem:[#allocation3 + $0x2178] sm:$0xff]
          %v1485 = vld [vmem:[#allocation3 + $0x2180] sm:$0xff]
          %v1486 = vld [vmem:[#allocation3 + $0x2188] sm:$0xff]
          %v1487 = vld [vmem:[#allocation3 + $0x2190] sm:$0xff]
          %v1488 = vld [vmem:[#allocation3 + $0x2198] sm:$0xff]
          %v1489 = vld [vmem:[#allocation3 + $0x21a0] sm:$0xff]
          %v1490 = vld [vmem:[#allocation3 + $0x21a8] sm:$0xff]
          %v1491 = vld [vmem:[#allocation3 + $0x21b0] sm:$0xff]
          %v1492 = vld [vmem:[#allocation3 + $0x21b8] sm:$0xff]
          %v1493 = vld [vmem:[#allocation3 + $0x21c0] sm:$0xff]
          %v1494 = vld [vmem:[#allocation3 + $0x21c8] sm:$0xff]
          %v1495 = vld [vmem:[#allocation3 + $0x21d0] sm:$0xff]
          %v1496 = vld [vmem:[#allocation3 + $0x21d8] sm:$0xff]
          %v1497 = vld [vmem:[#allocation3 + $0x21e0] sm:$0xff]
          %v1498 = vld [vmem:[#allocation3 + $0x21e8] sm:$0xff]
          %v1499 = vld [vmem:[#allocation3 + $0x21f0] sm:$0xff]
          %v1500 = vld [vmem:[#allocation3 + $0x21f8] sm:$0xff]
          %v1501 = vld [vmem:[#allocation3 + $0x2200] sm:$0xff]
          %v1502 = vld [vmem:[#allocation3 + $0x2208] sm:$0xff]
          %v1503 = vld [vmem:[#allocation3 + $0x2210] sm:$0xff]
          %v1504 = vld [vmem:[#allocation3 + $0x2218] sm:$0xff]
          %v1505 = vld [vmem:[#allocation3 + $0x2220] sm:$0xff]
          %v1506 = vld [vmem:[#allocation3 + $0x2228] sm:$0xff]
          %v1507 = vld [vmem:[#allocation3 + $0x2230] sm:$0xff]
          %v1508 = vld [vmem:[#allocation3 + $0x2238] sm:$0xff]
          %v1509 = vld [vmem:[#allocation3 + $0x2240] sm:$0xff]
          %v1510 = vld [vmem:[#allocation3 + $0x2248] sm:$0xff]
          %v1511 = vld [vmem:[#allocation3 + $0x2250] sm:$0xff]
          %v1512 = vld [vmem:[#allocation3 + $0x2258] sm:$0xff]
          %v1513 = vld [vmem:[#allocation3 + $0x2260] sm:$0xff]
          %v1514 = vld [vmem:[#allocation3 + $0x2268] sm:$0xff]
          %v1515 = vld [vmem:[#allocation3 + $0x2270] sm:$0xff]
          %v1516 = vld [vmem:[#allocation3 + $0x2278] sm:$0xff]
          %v1517 = vld [vmem:[#allocation3 + $0x2280] sm:$0xff]
          %v1518 = vld [vmem:[#allocation3 + $0x2288] sm:$0xff]
          %v1519 = vld [vmem:[#allocation3 + $0x2290] sm:$0xff]
          %v1520 = vld [vmem:[#allocation3 + $0x2298] sm:$0xff]
          %v1521 = vld [vmem:[#allocation3 + $0x22a0] sm:$0xff]
          %v1522 = vld [vmem:[#allocation3 + $0x22a8] sm:$0xff]
          %v1523 = vld [vmem:[#allocation3 + $0x22b0] sm:$0xff]
          %v1524 = vld [vmem:[#allocation3 + $0x22b8] sm:$0xff]
          %v1525 = vld [vmem:[#allocation3 + $0x22c0] sm:$0xff]
          %v1526 = vld [vmem:[#allocation3 + $0x22c8] sm:$0xff]
          %v1527 = vld [vmem:[#allocation3 + $0x22d0] sm:$0xff]
          %v1528 = vld [vmem:[#allocation3 + $0x22d8] sm:$0xff]
          %v1529 = vld [vmem:[#allocation3 + $0x22e0] sm:$0xff]
          %v1530 = vld [vmem:[#allocation3 + $0x22e8] sm:$0xff]
          %v1531 = vld [vmem:[#allocation3 + $0x22f0] sm:$0xff]
          %v1532 = vld [vmem:[#allocation3 + $0x22f8] sm:$0xff]
          %v1533 = vld [vmem:[#allocation3 + $0x2300] sm:$0xff]
          %v1534 = vld [vmem:[#allocation3 + $0x2308] sm:$0xff]
          %v1535 = vld [vmem:[#allocation3 + $0x2310] sm:$0xff]
          %v1536 = vld [vmem:[#allocation3 + $0x2318] sm:$0xff]
          %v1537 = vld [vmem:[#allocation3 + $0x2320] sm:$0xff]
          %v1538 = vld [vmem:[#allocation3 + $0x2328] sm:$0xff]
          %v1539 = vld [vmem:[#allocation3 + $0x2330] sm:$0xff]
          %v1540 = vld [vmem:[#allocation3 + $0x2338] sm:$0xff]
          %v1541 = vld [vmem:[#allocation3 + $0x2340] sm:$0xff]
          %v1542 = vld [vmem:[#allocation3 + $0x2348] sm:$0xff]
          %v1543 = vld [vmem:[#allocation3 + $0x2350] sm:$0xff]
          %v1544 = vld [vmem:[#allocation3 + $0x2358] sm:$0xff]
          %v1545 = vld [vmem:[#allocation3 + $0x2360] sm:$0xff]
          %v1546 = vld [vmem:[#allocation3 + $0x2368] sm:$0xff]
          %v1547 = vld [vmem:[#allocation3 + $0x2370] sm:$0xff]
          %v1548 = vld [vmem:[#allocation3 + $0x2378] sm:$0xff]
          %v1549 = vld [vmem:[#allocation3 + $0x2380] sm:$0xff]
          %v1550 = vld [vmem:[#allocation3 + $0x2388] sm:$0xff]
          %v1551 = vld [vmem:[#allocation3 + $0x2390] sm:$0xff]
          %v1552 = vld [vmem:[#allocation3 + $0x2398] sm:$0xff]
          %v1553 = vld [vmem:[#allocation3 + $0x23a0] sm:$0xff]
          %v1554 = vld [vmem:[#allocation3 + $0x23a8] sm:$0xff]
          %v1555 = vld [vmem:[#allocation3 + $0x23b0] sm:$0xff]
          %v1556 = vld [vmem:[#allocation3 + $0x23b8] sm:$0xff]
          %v1557 = vld [vmem:[#allocation3 + $0x23c0] sm:$0xff]
          %v1558 = vld [vmem:[#allocation3 + $0x23c8] sm:$0xff]
          %v1559 = vld [vmem:[#allocation3 + $0x23d0] sm:$0xff]
          %v1560 = vld [vmem:[#allocation3 + $0x23d8] sm:$0xff]
          %v1561 = vld [vmem:[#allocation3 + $0x23e0] sm:$0xff]
          %v1562 = vld [vmem:[#allocation3 + $0x23e8] sm:$0xff]
          %v1563 = vld [vmem:[#allocation3 + $0x23f0] sm:$0xff]
          %v1564 = vld [vmem:[#allocation3 + $0x23f8] sm:$0xff]
          %v1565 = vld [vmem:[#allocation3 + $0x2400] sm:$0xff]
          %v1566 = vld [vmem:[#allocation3 + $0x2408] sm:$0xff]
          %v1567 = vld [vmem:[#allocation3 + $0x2410] sm:$0xff]
          %v1568 = vld [vmem:[#allocation3 + $0x2418] sm:$0xff]
          %v1569 = vld [vmem:[#allocation3 + $0x2420] sm:$0xff]
          %v1570 = vld [vmem:[#allocation3 + $0x2428] sm:$0xff]
          %v1571 = vld [vmem:[#allocation3 + $0x2430] sm:$0xff]
          %v1572 = vld [vmem:[#allocation3 + $0x2438] sm:$0xff]
          %v1573 = vld [vmem:[#allocation3 + $0x2440] sm:$0xff]
          %v1574 = vld [vmem:[#allocation3 + $0x2448] sm:$0xff]
          %v1575 = vld [vmem:[#allocation3 + $0x2450] sm:$0xff]
          %v1576 = vld [vmem:[#allocation3 + $0x2458] sm:$0xff]
          %v1577 = vld [vmem:[#allocation3 + $0x2460] sm:$0xff]
          %v1578 = vld [vmem:[#allocation3 + $0x2468] sm:$0xff]
          %v1579 = vld [vmem:[#allocation3 + $0x2470] sm:$0xff]
          %v1580 = vld [vmem:[#allocation3 + $0x2478] sm:$0xff]
          %v1581 = vld [vmem:[#allocation3 + $0x2480] sm:$0xff]
          %v1582 = vld [vmem:[#allocation3 + $0x2488] sm:$0xff]
          %v1583 = vld [vmem:[#allocation3 + $0x2490] sm:$0xff]
          %v1584 = vld [vmem:[#allocation3 + $0x2498] sm:$0xff]
          %v1585 = vld [vmem:[#allocation3 + $0x24a0] sm:$0xff]
          %v1586 = vld [vmem:[#allocation3 + $0x24a8] sm:$0xff]
          %v1587 = vld [vmem:[#allocation3 + $0x24b0] sm:$0xff]
          %v1588 = vld [vmem:[#allocation3 + $0x24b8] sm:$0xff]
          %v1589 = vld [vmem:[#allocation3 + $0x24c0] sm:$0xff]
          %v1590 = vld [vmem:[#allocation3 + $0x24c8] sm:$0xff]
          %v1591 = vld [vmem:[#allocation3 + $0x24d0] sm:$0xff]
          %v1592 = vld [vmem:[#allocation3 + $0x24d8] sm:$0xff]
          %v1593 = vld [vmem:[#allocation3 + $0x24e0] sm:$0xff]
          %v1594 = vld [vmem:[#allocation3 + $0x24e8] sm:$0xff]
          %v1595 = vld [vmem:[#allocation3 + $0x24f0] sm:$0xff]
          %v1596 = vld [vmem:[#allocation3 + $0x24f8] sm:$0xff]
          %v1597 = vld [vmem:[#allocation3 + $0x2500] sm:$0xff]
          %v1598 = vld [vmem:[#allocation3 + $0x2508] sm:$0xff]
          %v1599 = vld [vmem:[#allocation3 + $0x2510] sm:$0xff]
          %v1600 = vld [vmem:[#allocation3 + $0x2518] sm:$0xff]
          %v1601 = vld [vmem:[#allocation3 + $0x2520] sm:$0xff]
          %v1602 = vld [vmem:[#allocation3 + $0x2528] sm:$0xff]
          %v1603 = vld [vmem:[#allocation3 + $0x2530] sm:$0xff]
          %v1604 = vld [vmem:[#allocation3 + $0x2538] sm:$0xff]
          %v1605 = vld [vmem:[#allocation3 + $0x2540] sm:$0xff]
          %v1606 = vld [vmem:[#allocation3 + $0x2548] sm:$0xff]
          %v1607 = vld [vmem:[#allocation3 + $0x2550] sm:$0xff]
          %v1608 = vld [vmem:[#allocation3 + $0x2558] sm:$0xff]
          %v1609 = vld [vmem:[#allocation3 + $0x2560] sm:$0xff]
          %v1610 = vld [vmem:[#allocation3 + $0x2568] sm:$0xff]
          %v1611 = vld [vmem:[#allocation3 + $0x2570] sm:$0xff]
          %v1612 = vld [vmem:[#allocation3 + $0x2578] sm:$0xff]
          %v1613 = vld [vmem:[#allocation3 + $0x2580] sm:$0xff]
          %v1614 = vld [vmem:[#allocation3 + $0x2588] sm:$0xff]
          %v1615 = vld [vmem:[#allocation3 + $0x2590] sm:$0xff]
          %v1616 = vld [vmem:[#allocation3 + $0x2598] sm:$0xff]
          %v1617 = vld [vmem:[#allocation3 + $0x25a0] sm:$0xff]
          %v1618 = vld [vmem:[#allocation3 + $0x25a8] sm:$0xff]
          %v1619 = vld [vmem:[#allocation3 + $0x25b0] sm:$0xff]
          %v1620 = vld [vmem:[#allocation3 + $0x25b8] sm:$0xff]
          %v1621 = vld [vmem:[#allocation3 + $0x25c0] sm:$0xff]
          %v1622 = vld [vmem:[#allocation3 + $0x25c8] sm:$0xff]
          %v1623 = vld [vmem:[#allocation3 + $0x25d0] sm:$0xff]
          %v1624 = vld [vmem:[#allocation3 + $0x25d8] sm:$0xff]
          %v1625 = vld [vmem:[#allocation3 + $0x25e0] sm:$0xff]
          %v1626 = vld [vmem:[#allocation3 + $0x25e8] sm:$0xff]
          %v1627 = vld [vmem:[#allocation3 + $0x25f0] sm:$0xff]
          %v1628 = vld [vmem:[#allocation3 + $0x25f8] sm:$0xff]
          %v1629 = vld [vmem:[#allocation3 + $0x2600] sm:$0xff]
          %v1630 = vld [vmem:[#allocation3 + $0x2608] sm:$0xff]
          %v1631 = vld [vmem:[#allocation3 + $0x2610] sm:$0xff]
          %v1632 = vld [vmem:[#allocation3 + $0x2618] sm:$0xff]
          %v1633 = vld [vmem:[#allocation3 + $0x2620] sm:$0xff]
          %v1634 = vld [vmem:[#allocation3 + $0x2628] sm:$0xff]
          %v1635 = vld [vmem:[#allocation3 + $0x2630] sm:$0xff]
          %v1636 = vld [vmem:[#allocation3 + $0x2638] sm:$0xff]
          %v1637 = vld [vmem:[#allocation3 + $0x2640] sm:$0xff]
          %v1638 = vld [vmem:[#allocation3 + $0x2648] sm:$0xff]
          %v1639 = vld [vmem:[#allocation3 + $0x2650] sm:$0xff]
          %v1640 = vld [vmem:[#allocation3 + $0x2658] sm:$0xff]
          %v1641 = vld [vmem:[#allocation3 + $0x2660] sm:$0xff]
          %v1642 = vld [vmem:[#allocation3 + $0x2668] sm:$0xff]
          %v1643 = vld [vmem:[#allocation3 + $0x2670] sm:$0xff]
          %v1644 = vld [vmem:[#allocation3 + $0x2678] sm:$0xff]
          %v1645 = vld [vmem:[#allocation3 + $0x2680] sm:$0xff]
          %v1646 = vld [vmem:[#allocation3 + $0x2688] sm:$0xff]
          %v1647 = vld [vmem:[#allocation3 + $0x2690] sm:$0xff]
          %v1648 = vld [vmem:[#allocation3 + $0x2698] sm:$0xff]
          %v1649 = vld [vmem:[#allocation3 + $0x26a0] sm:$0xff]
          %v1650 = vld [vmem:[#allocation3 + $0x26a8] sm:$0xff]
          %v1651 = vld [vmem:[#allocation3 + $0x26b0] sm:$0xff]
          %v1652 = vld [vmem:[#allocation3 + $0x26b8] sm:$0xff]
          %v1653 = vld [vmem:[#allocation3 + $0x26c0] sm:$0xff]
          %v1654 = vld [vmem:[#allocation3 + $0x26c8] sm:$0xff]
          %v1655 = vld [vmem:[#allocation3 + $0x26d0] sm:$0xff]
          %v1656 = vld [vmem:[#allocation3 + $0x26d8] sm:$0xff]
          %v1657 = vld [vmem:[#allocation3 + $0x26e0] sm:$0xff]
          %v1658 = vld [vmem:[#allocation3 + $0x26e8] sm:$0xff]
          %v1659 = vld [vmem:[#allocation3 + $0x26f0] sm:$0xff]
          %v1660 = vld [vmem:[#allocation3 + $0x26f8] sm:$0xff]
          %v1661 = vld [vmem:[#allocation3 + $0x2700] sm:$0xff]
          %v1662 = vld [vmem:[#allocation3 + $0x2708] sm:$0xff]
          %v1663 = vld [vmem:[#allocation3 + $0x2710] sm:$0xff]
          %v1664 = vld [vmem:[#allocation3 + $0x2718] sm:$0xff]
          %v1665 = vld [vmem:[#allocation3 + $0x2720] sm:$0xff]
          %v1666 = vld [vmem:[#allocation3 + $0x2728] sm:$0xff]
          %v1667 = vld [vmem:[#allocation3 + $0x2730] sm:$0xff]
          %v1668 = vld [vmem:[#allocation3 + $0x2738] sm:$0xff]
          %v1669 = vld [vmem:[#allocation3 + $0x2740] sm:$0xff]
          %v1670 = vld [vmem:[#allocation3 + $0x2748] sm:$0xff]
          %v1671 = vld [vmem:[#allocation3 + $0x2750] sm:$0xff]
          %v1672 = vld [vmem:[#allocation3 + $0x2758] sm:$0xff]
          %v1673 = vld [vmem:[#allocation3 + $0x2760] sm:$0xff]
          %v1674 = vld [vmem:[#allocation3 + $0x2768] sm:$0xff]
          %v1675 = vld [vmem:[#allocation3 + $0x2770] sm:$0xff]
          %v1676 = vld [vmem:[#allocation3 + $0x2778] sm:$0xff]
          %v1677 = vld [vmem:[#allocation3 + $0x2780] sm:$0xff]
          %v1678 = vld [vmem:[#allocation3 + $0x2788] sm:$0xff]
          %v1679 = vld [vmem:[#allocation3 + $0x2790] sm:$0xff]
          %v1680 = vld [vmem:[#allocation3 + $0x2798] sm:$0xff]
          %v1681 = vld [vmem:[#allocation3 + $0x27a0] sm:$0xff]
          %v1682 = vld [vmem:[#allocation3 + $0x27a8] sm:$0xff]
          %v1683 = vld [vmem:[#allocation3 + $0x27b0] sm:$0xff]
          %v1684 = vld [vmem:[#allocation3 + $0x27b8] sm:$0xff]
          %v1685 = vld [vmem:[#allocation3 + $0x27c0] sm:$0xff]
          %v1686 = vld [vmem:[#allocation3 + $0x27c8] sm:$0xff]
          %v1687 = vld [vmem:[#allocation3 + $0x27d0] sm:$0xff]
          %v1688 = vld [vmem:[#allocation3 + $0x27d8] sm:$0xff]
          %v1689 = vld [vmem:[#allocation3 + $0x27e0] sm:$0xff]
          %v1690 = vld [vmem:[#allocation3 + $0x27e8] sm:$0xff]
          %v1691 = vld [vmem:[#allocation3 + $0x27f0] sm:$0xff]
          %v1692 = vld [vmem:[#allocation3 + $0x27f8] sm:$0xff]
          %v1693 = vld [vmem:[#allocation3 + $0x2800] sm:$0xff]
          %v1694 = vld [vmem:[#allocation3 + $0x2808] sm:$0xff]
          %v1695 = vld [vmem:[#allocation3 + $0x2810] sm:$0xff]
          %v1696 = vld [vmem:[#allocation3 + $0x2818] sm:$0xff]
          %v1697 = vld [vmem:[#allocation3 + $0x2820] sm:$0xff]
          %v1698 = vld [vmem:[#allocation3 + $0x2828] sm:$0xff]
          %v1699 = vld [vmem:[#allocation3 + $0x2830] sm:$0xff]
          %v1700 = vld [vmem:[#allocation3 + $0x2838] sm:$0xff]
          %v1701 = vld [vmem:[#allocation3 + $0x2840] sm:$0xff]
          %v1702 = vld [vmem:[#allocation3 + $0x2848] sm:$0xff]
          %v1703 = vld [vmem:[#allocation3 + $0x2850] sm:$0xff]
          %v1704 = vld [vmem:[#allocation3 + $0x2858] sm:$0xff]
          %v1705 = vld [vmem:[#allocation3 + $0x2860] sm:$0xff]
          %v1706 = vld [vmem:[#allocation3 + $0x2868] sm:$0xff]
          %v1707 = vld [vmem:[#allocation3 + $0x2870] sm:$0xff]
          %v1708 = vld [vmem:[#allocation3 + $0x2878] sm:$0xff]
          %v1709 = vld [vmem:[#allocation3 + $0x2880] sm:$0xff]
          %v1710 = vld [vmem:[#allocation3 + $0x2888] sm:$0xff]
          %v1711 = vld [vmem:[#allocation3 + $0x2890] sm:$0xff]
          %v1712 = vld [vmem:[#allocation3 + $0x2898] sm:$0xff]
          %v1713 = vld [vmem:[#allocation3 + $0x28a0] sm:$0xff]
          %v1714 = vld [vmem:[#allocation3 + $0x28a8] sm:$0xff]
          %v1715 = vld [vmem:[#allocation3 + $0x28b0] sm:$0xff]
          %v1716 = vld [vmem:[#allocation3 + $0x28b8] sm:$0xff]
          %v1717 = vld [vmem:[#allocation3 + $0x28c0] sm:$0xff]
          %v1718 = vld [vmem:[#allocation3 + $0x28c8] sm:$0xff]
          %v1719 = vld [vmem:[#allocation3 + $0x28d0] sm:$0xff]
          %v1720 = vld [vmem:[#allocation3 + $0x28d8] sm:$0xff]
          %v1721 = vld [vmem:[#allocation3 + $0x28e0] sm:$0xff]
          %v1722 = vld [vmem:[#allocation3 + $0x28e8] sm:$0xff]
          %v1723 = vld [vmem:[#allocation3 + $0x28f0] sm:$0xff]
          %v1724 = vld [vmem:[#allocation3 + $0x28f8] sm:$0xff]
          %v1725 = vld [vmem:[#allocation3 + $0x2900] sm:$0xff]
          %v1726 = vld [vmem:[#allocation3 + $0x2908] sm:$0xff]
          %v1727 = vld [vmem:[#allocation3 + $0x2910] sm:$0xff]
          %v1728 = vld [vmem:[#allocation3 + $0x2918] sm:$0xff]
          %v1729 = vld [vmem:[#allocation3 + $0x2920] sm:$0xff]
          %v1730 = vld [vmem:[#allocation3 + $0x2928] sm:$0xff]
          %v1731 = vld [vmem:[#allocation3 + $0x2930] sm:$0xff]
          %v1732 = vld [vmem:[#allocation3 + $0x2938] sm:$0xff]
          %v1733 = vld [vmem:[#allocation3 + $0x2940] sm:$0xff]
          %v1734 = vld [vmem:[#allocation3 + $0x2948] sm:$0xff]
          %v1735 = vld [vmem:[#allocation3 + $0x2950] sm:$0xff]
          %v1736 = vld [vmem:[#allocation3 + $0x2958] sm:$0xff]
          %v1737 = vld [vmem:[#allocation3 + $0x2960] sm:$0xff]
          %v1738 = vld [vmem:[#allocation3 + $0x2968] sm:$0xff]
          %v1739 = vld [vmem:[#allocation3 + $0x2970] sm:$0xff]
          %v1740 = vld [vmem:[#allocation3 + $0x2978] sm:$0xff]
          %v1741 = vld [vmem:[#allocation3 + $0x2980] sm:$0xff]
          %v1742 = vld [vmem:[#allocation3 + $0x2988] sm:$0xff]
          %v1743 = vld [vmem:[#allocation3 + $0x2990] sm:$0xff]
          %v1744 = vld [vmem:[#allocation3 + $0x2998] sm:$0xff]
          %v1745 = vld [vmem:[#allocation3 + $0x29a0] sm:$0xff]
          %v1746 = vld [vmem:[#allocation3 + $0x29a8] sm:$0xff]
          %v1747 = vld [vmem:[#allocation3 + $0x29b0] sm:$0xff]
          %v1748 = vld [vmem:[#allocation3 + $0x29b8] sm:$0xff]
          %v1749 = vld [vmem:[#allocation3 + $0x29c0] sm:$0xff]
          %v1750 = vld [vmem:[#allocation3 + $0x29c8] sm:$0xff]
          %v1751 = vld [vmem:[#allocation3 + $0x29d0] sm:$0xff]
          %v1752 = vld [vmem:[#allocation3 + $0x29d8] sm:$0xff]
          %v1753 = vld [vmem:[#allocation3 + $0x29e0] sm:$0xff]
          %v1754 = vld [vmem:[#allocation3 + $0x29e8] sm:$0xff]
          %v1755 = vld [vmem:[#allocation3 + $0x29f0] sm:$0xff]
          %v1756 = vld [vmem:[#allocation3 + $0x29f8] sm:$0xff]
          %v1757 = vld [vmem:[#allocation3 + $0x2a00] sm:$0xff]
          %v1758 = vld [vmem:[#allocation3 + $0x2a08] sm:$0xff]
          %v1759 = vld [vmem:[#allocation3 + $0x2a10] sm:$0xff]
          %v1760 = vld [vmem:[#allocation3 + $0x2a18] sm:$0xff]
          %v1761 = vld [vmem:[#allocation3 + $0x2a20] sm:$0xff]
          %v1762 = vld [vmem:[#allocation3 + $0x2a28] sm:$0xff]
          %v1763 = vld [vmem:[#allocation3 + $0x2a30] sm:$0xff]
          %v1764 = vld [vmem:[#allocation3 + $0x2a38] sm:$0xff]
          %v1765 = vld [vmem:[#allocation3 + $0x2a40] sm:$0xff]
          %v1766 = vld [vmem:[#allocation3 + $0x2a48] sm:$0xff]
          %v1767 = vld [vmem:[#allocation3 + $0x2a50] sm:$0xff]
          %v1768 = vld [vmem:[#allocation3 + $0x2a58] sm:$0xff]
          %v1769 = vld [vmem:[#allocation3 + $0x2a60] sm:$0xff]
          %v1770 = vld [vmem:[#allocation3 + $0x2a68] sm:$0xff]
          %v1771 = vld [vmem:[#allocation3 + $0x2a70] sm:$0xff]
          %v1772 = vld [vmem:[#allocation3 + $0x2a78] sm:$0xff]
          %v1773 = vld [vmem:[#allocation3 + $0x2a80] sm:$0xff]
          %v1774 = vld [vmem:[#allocation3 + $0x2a88] sm:$0xff]
          %v1775 = vld [vmem:[#allocation3 + $0x2a90] sm:$0xff]
          %v1776 = vld [vmem:[#allocation3 + $0x2a98] sm:$0xff]
          %v1777 = vld [vmem:[#allocation3 + $0x2aa0] sm:$0xff]
          %v1778 = vld [vmem:[#allocation3 + $0x2aa8] sm:$0xff]
          %v1779 = vld [vmem:[#allocation3 + $0x2ab0] sm:$0xff]
          %v1780 = vld [vmem:[#allocation3 + $0x2ab8] sm:$0xff]
          %v1781 = vld [vmem:[#allocation3 + $0x2ac0] sm:$0xff]
          %v1782 = vld [vmem:[#allocation3 + $0x2ac8] sm:$0xff]
          %v1783 = vld [vmem:[#allocation3 + $0x2ad0] sm:$0xff]
          %v1784 = vld [vmem:[#allocation3 + $0x2ad8] sm:$0xff]
          %v1785 = vld [vmem:[#allocation3 + $0x2ae0] sm:$0xff]
          %v1786 = vld [vmem:[#allocation3 + $0x2ae8] sm:$0xff]
          %v1787 = vld [vmem:[#allocation3 + $0x2af0] sm:$0xff]
          %v1788 = vld [vmem:[#allocation3 + $0x2af8] sm:$0xff]
          %v1789 = vld [vmem:[#allocation3 + $0x2b00] sm:$0xff]
          %v1790 = vld [vmem:[#allocation3 + $0x2b08] sm:$0xff]
          %v1791 = vld [vmem:[#allocation3 + $0x2b10] sm:$0xff]
          %v1792 = vld [vmem:[#allocation3 + $0x2b18] sm:$0xff]
          %v1793 = vld [vmem:[#allocation3 + $0x2b20] sm:$0xff]
          %v1794 = vld [vmem:[#allocation3 + $0x2b28] sm:$0xff]
          %v1795 = vld [vmem:[#allocation3 + $0x2b30] sm:$0xff]
          %v1796 = vld [vmem:[#allocation3 + $0x2b38] sm:$0xff]
          %v1797 = vld [vmem:[#allocation3 + $0x2b40] sm:$0xff]
          %v1798 = vld [vmem:[#allocation3 + $0x2b48] sm:$0xff]
          %v1799 = vld [vmem:[#allocation3 + $0x2b50] sm:$0xff]
          %v1800 = vld [vmem:[#allocation3 + $0x2b58] sm:$0xff]
          %v1801 = vld [vmem:[#allocation3 + $0x2b60] sm:$0xff]
          %v1802 = vld [vmem:[#allocation3 + $0x2b68] sm:$0xff]
          %v1803 = vld [vmem:[#allocation3 + $0x2b70] sm:$0xff]
          %v1804 = vld [vmem:[#allocation3 + $0x2b78] sm:$0xff]
          %v1805 = vld [vmem:[#allocation3 + $0x2b80] sm:$0xff]
          %v1806 = vld [vmem:[#allocation3 + $0x2b88] sm:$0xff]
          %v1807 = vld [vmem:[#allocation3 + $0x2b90] sm:$0xff]
          %v1808 = vld [vmem:[#allocation3 + $0x2b98] sm:$0xff]
          %v1809 = vld [vmem:[#allocation3 + $0x2ba0] sm:$0xff]
          %v1810 = vld [vmem:[#allocation3 + $0x2ba8] sm:$0xff]
          %v1811 = vld [vmem:[#allocation3 + $0x2bb0] sm:$0xff]
          %v1812 = vld [vmem:[#allocation3 + $0x2bb8] sm:$0xff]
          %v1813 = vld [vmem:[#allocation3 + $0x2bc0] sm:$0xff]
          %v1814 = vld [vmem:[#allocation3 + $0x2bc8] sm:$0xff]
          %v1815 = vld [vmem:[#allocation3 + $0x2bd0] sm:$0xff]
          %v1816 = vld [vmem:[#allocation3 + $0x2bd8] sm:$0xff]
          %v1817 = vld [vmem:[#allocation3 + $0x2be0] sm:$0xff]
          %v1818 = vld [vmem:[#allocation3 + $0x2be8] sm:$0xff]
          %v1819 = vld [vmem:[#allocation3 + $0x2bf0] sm:$0xff]
          %v1820 = vld [vmem:[#allocation3 + $0x2bf8] sm:$0xff]
          %v1821 = vld [vmem:[#allocation3 + $0x2c00] sm:$0xff]
          %v1822 = vld [vmem:[#allocation3 + $0x2c08] sm:$0xff]
          %v1823 = vld [vmem:[#allocation3 + $0x2c10] sm:$0xff]
          %v1824 = vld [vmem:[#allocation3 + $0x2c18] sm:$0xff]
          %v1825 = vld [vmem:[#allocation3 + $0x2c20] sm:$0xff]
          %v1826 = vld [vmem:[#allocation3 + $0x2c28] sm:$0xff]
          %v1827 = vld [vmem:[#allocation3 + $0x2c30] sm:$0xff]
          %v1828 = vld [vmem:[#allocation3 + $0x2c38] sm:$0xff]
          %v1829 = vld [vmem:[#allocation3 + $0x2c40] sm:$0xff]
          %v1830 = vld [vmem:[#allocation3 + $0x2c48] sm:$0xff]
          %v1831 = vld [vmem:[#allocation3 + $0x2c50] sm:$0xff]
          %v1832 = vld [vmem:[#allocation3 + $0x2c58] sm:$0xff]
          %v1833 = vld [vmem:[#allocation3 + $0x2c60] sm:$0xff]
          %v1834 = vld [vmem:[#allocation3 + $0x2c68] sm:$0xff]
          %v1835 = vld [vmem:[#allocation3 + $0x2c70] sm:$0xff]
          %v1836 = vld [vmem:[#allocation3 + $0x2c78] sm:$0xff]
          %v1837 = vld [vmem:[#allocation3 + $0x2c80] sm:$0xff]
          %v1838 = vld [vmem:[#allocation3 + $0x2c88] sm:$0xff]
          %v1839 = vld [vmem:[#allocation3 + $0x2c90] sm:$0xff]
          %v1840 = vld [vmem:[#allocation3 + $0x2c98] sm:$0xff]
          %v1841 = vld [vmem:[#allocation3 + $0x2ca0] sm:$0xff]
          %v1842 = vld [vmem:[#allocation3 + $0x2ca8] sm:$0xff]
          %v1843 = vld [vmem:[#allocation3 + $0x2cb0] sm:$0xff]
          %v1844 = vld [vmem:[#allocation3 + $0x2cb8] sm:$0xff]
          %v1845 = vld [vmem:[#allocation3 + $0x2cc0] sm:$0xff]
          %v1846 = vld [vmem:[#allocation3 + $0x2cc8] sm:$0xff]
          %v1847 = vld [vmem:[#allocation3 + $0x2cd0] sm:$0xff]
          %v1848 = vld [vmem:[#allocation3 + $0x2cd8] sm:$0xff]
          %v1849 = vld [vmem:[#allocation3 + $0x2ce0] sm:$0xff]
          %v1850 = vld [vmem:[#allocation3 + $0x2ce8] sm:$0xff]
          %v1851 = vld [vmem:[#allocation3 + $0x2cf0] sm:$0xff]
          %v1852 = vld [vmem:[#allocation3 + $0x2cf8] sm:$0xff]
          %v1853 = vld [vmem:[#allocation3 + $0x2d00] sm:$0xff]
          %v1854 = vld [vmem:[#allocation3 + $0x2d08] sm:$0xff]
          %v1855 = vld [vmem:[#allocation3 + $0x2d10] sm:$0xff]
          %v1856 = vld [vmem:[#allocation3 + $0x2d18] sm:$0xff]
          %v1857 = vld [vmem:[#allocation3 + $0x2d20] sm:$0xff]
          %v1858 = vld [vmem:[#allocation3 + $0x2d28] sm:$0xff]
          %v1859 = vld [vmem:[#allocation3 + $0x2d30] sm:$0xff]
          %v1860 = vld [vmem:[#allocation3 + $0x2d38] sm:$0xff]
          %v1861 = vld [vmem:[#allocation3 + $0x2d40] sm:$0xff]
          %v1862 = vld [vmem:[#allocation3 + $0x2d48] sm:$0xff]
          %v1863 = vld [vmem:[#allocation3 + $0x2d50] sm:$0xff]
          %v1864 = vld [vmem:[#allocation3 + $0x2d58] sm:$0xff]
          %v1865 = vld [vmem:[#allocation3 + $0x2d60] sm:$0xff]
          %v1866 = vld [vmem:[#allocation3 + $0x2d68] sm:$0xff]
          %v1867 = vld [vmem:[#allocation3 + $0x2d70] sm:$0xff]
          %v1868 = vld [vmem:[#allocation3 + $0x2d78] sm:$0xff]
          %v1869 = vld [vmem:[#allocation3 + $0x2d80] sm:$0xff]
          %v1870 = vld [vmem:[#allocation3 + $0x2d88] sm:$0xff]
          %v1871 = vld [vmem:[#allocation3 + $0x2d90] sm:$0xff]
          %v1872 = vld [vmem:[#allocation3 + $0x2d98] sm:$0xff]
          %v1873 = vld [vmem:[#allocation3 + $0x2da0] sm:$0xff]
          %v1874 = vld [vmem:[#allocation3 + $0x2da8] sm:$0xff]
          %v1875 = vld [vmem:[#allocation3 + $0x2db0] sm:$0xff]
          %v1876 = vld [vmem:[#allocation3 + $0x2db8] sm:$0xff]
          %v1877 = vld [vmem:[#allocation3 + $0x2dc0] sm:$0xff]
          %v1878 = vld [vmem:[#allocation3 + $0x2dc8] sm:$0xff]
          %v1879 = vld [vmem:[#allocation3 + $0x2dd0] sm:$0xff]
          %v1880 = vld [vmem:[#allocation3 + $0x2dd8] sm:$0xff]
          %v1881 = vld [vmem:[#allocation3 + $0x2de0] sm:$0xff]
          %v1882 = vld [vmem:[#allocation3 + $0x2de8] sm:$0xff]
          %v1883 = vld [vmem:[#allocation3 + $0x2df0] sm:$0xff]
          %v1884 = vld [vmem:[#allocation3 + $0x2df8] sm:$0xff]
          %v1885 = vld [vmem:[#allocation3 + $0x2e00] sm:$0xff]
          %v1886 = vld [vmem:[#allocation3 + $0x2e08] sm:$0xff]
          %v1887 = vld [vmem:[#allocation3 + $0x2e10] sm:$0xff]
          %v1888 = vld [vmem:[#allocation3 + $0x2e18] sm:$0xff]
          %v1889 = vld [vmem:[#allocation3 + $0x2e20] sm:$0xff]
          %v1890 = vld [vmem:[#allocation3 + $0x2e28] sm:$0xff]
          %v1891 = vld [vmem:[#allocation3 + $0x2e30] sm:$0xff]
          %v1892 = vld [vmem:[#allocation3 + $0x2e38] sm:$0xff]
          %v1893 = vld [vmem:[#allocation3 + $0x2e40] sm:$0xff]
          %v1894 = vld [vmem:[#allocation3 + $0x2e48] sm:$0xff]
          %v1895 = vld [vmem:[#allocation3 + $0x2e50] sm:$0xff]
          %v1896 = vld [vmem:[#allocation3 + $0x2e58] sm:$0xff]
          %v1897 = vld [vmem:[#allocation3 + $0x2e60] sm:$0xff]
          %v1898 = vld [vmem:[#allocation3 + $0x2e68] sm:$0xff]
          %v1899 = vld [vmem:[#allocation3 + $0x2e70] sm:$0xff]
          %v1900 = vld [vmem:[#allocation3 + $0x2e78] sm:$0xff]
          %v1901 = vld [vmem:[#allocation3 + $0x2e80] sm:$0xff]
          %v1902 = vld [vmem:[#allocation3 + $0x2e88] sm:$0xff]
          %v1903 = vld [vmem:[#allocation3 + $0x2e90] sm:$0xff]
          %v1904 = vld [vmem:[#allocation3 + $0x2e98] sm:$0xff]
          %v1905 = vld [vmem:[#allocation3 + $0x2ea0] sm:$0xff]
          %v1906 = vld [vmem:[#allocation3 + $0x2ea8] sm:$0xff]
          %v1907 = vld [vmem:[#allocation3 + $0x2eb0] sm:$0xff]
          %v1908 = vld [vmem:[#allocation3 + $0x2eb8] sm:$0xff]
          %v1909 = vld [vmem:[#allocation3 + $0x2ec0] sm:$0xff]
          %v1910 = vld [vmem:[#allocation3 + $0x2ec8] sm:$0xff]
          %v1911 = vld [vmem:[#allocation3 + $0x2ed0] sm:$0xff]
          %v1912 = vld [vmem:[#allocation3 + $0x2ed8] sm:$0xff]
          %v1913 = vld [vmem:[#allocation3 + $0x2ee0] sm:$0xff]
          %v1914 = vld [vmem:[#allocation3 + $0x2ee8] sm:$0xff]
          %v1915 = vld [vmem:[#allocation3 + $0x2ef0] sm:$0xff]
          %v1916 = vld [vmem:[#allocation3 + $0x2ef8] sm:$0xff]
          %v1917 = vld [vmem:[#allocation3 + $0x2f00] sm:$0xff]
          %v1918 = vld [vmem:[#allocation3 + $0x2f08] sm:$0xff]
          %v1919 = vld [vmem:[#allocation3 + $0x2f10] sm:$0xff]
          %v1920 = vld [vmem:[#allocation3 + $0x2f18] sm:$0xff]
          %v1921 = vld [vmem:[#allocation3 + $0x2f20] sm:$0xff]
          %v1922 = vld [vmem:[#allocation3 + $0x2f28] sm:$0xff]
          %v1923 = vld [vmem:[#allocation3 + $0x2f30] sm:$0xff]
          %v1924 = vld [vmem:[#allocation3 + $0x2f38] sm:$0xff]
          %v1925 = vld [vmem:[#allocation3 + $0x2f40] sm:$0xff]
          %v1926 = vld [vmem:[#allocation3 + $0x2f48] sm:$0xff]
          %v1927 = vld [vmem:[#allocation3 + $0x2f50] sm:$0xff]
          %v1928 = vld [vmem:[#allocation3 + $0x2f58] sm:$0xff]
          %v1929 = vld [vmem:[#allocation3 + $0x2f60] sm:$0xff]
          %v1930 = vld [vmem:[#allocation3 + $0x2f68] sm:$0xff]
          %v1931 = vld [vmem:[#allocation3 + $0x2f70] sm:$0xff]
          %v1932 = vld [vmem:[#allocation3 + $0x2f78] sm:$0xff]
          %v1933 = vld [vmem:[#allocation3 + $0x2f80] sm:$0xff]
          %v1934 = vld [vmem:[#allocation3 + $0x2f88] sm:$0xff]
          %v1935 = vld [vmem:[#allocation3 + $0x2f90] sm:$0xff]
          %v1936 = vld [vmem:[#allocation3 + $0x2f98] sm:$0xff]
          %v1937 = vld [vmem:[#allocation3 + $0x2fa0] sm:$0xff]
          %v1938 = vld [vmem:[#allocation3 + $0x2fa8] sm:$0xff]
          %v1939 = vld [vmem:[#allocation3 + $0x2fb0] sm:$0xff]
          %v1940 = vld [vmem:[#allocation3 + $0x2fb8] sm:$0xff]
          %v1941 = vld [vmem:[#allocation3 + $0x2fc0] sm:$0xff]
          %v1942 = vld [vmem:[#allocation3 + $0x2fc8] sm:$0xff]
          %v1943 = vld [vmem:[#allocation3 + $0x2fd0] sm:$0xff]
          %v1944 = vld [vmem:[#allocation3 + $0x2fd8] sm:$0xff]
          %v1945 = vld [vmem:[#allocation3 + $0x2fe0] sm:$0xff]
          %v1946 = vld [vmem:[#allocation3 + $0x2fe8] sm:$0xff]
          %v1947 = vld [vmem:[#allocation3 + $0x2ff0] sm:$0xff]
          %v1948 = vld [vmem:[#allocation3 + $0x2ff8] sm:$0xff]
          %1949 = vmatprep.subr.mxu0 %v414
          %1950 = vmatpush1.msra.mxu0 %v413
          %1951 = vmatprep.subr.mxu0 %v418
          %1952 = vmatpush1.msra.mxu0 %v417
          %1953 = vmatprep.subr.mxu0 %v422
          %1954 = vmatpush1.msra.mxu0 %v421
          %1955 = vmatprep.subr.mxu0 %v426
          %1956 = vmatpush1.msra.mxu0 %v425
          %1957 = vmatprep.subr.mxu0 %v430
          %1958 = vmatpush1.msra.mxu0 %v429
          %1959 = vmatprep.subr.mxu0 %v434
          %1960 = vmatpush1.msra.mxu0 %v433
          %1961 = vmatprep.subr.mxu0 %v438
          %1962 = vmatpush1.msra.mxu0 %v437
          %1963 = vmatprep.subr.mxu0 %v442
          %1964 = vmatpush1.msra.mxu0 %v441
          %1965 = vmatprep.subr.mxu0 %v446
          %1966 = vmatpush1.msra.mxu0 %v445
          %1967 = vmatprep.subr.mxu0 %v450
          %1968 = vmatpush1.msra.mxu0 %v449
          %1969 = vmatprep.subr.mxu0 %v454
          %1970 = vmatpush1.msra.mxu0 %v453
          %1971 = vmatprep.subr.mxu0 %v458
          %1972 = vmatpush1.msra.mxu0 %v457
          %1973 = vmatprep.subr.mxu0 %v462
          %1974 = vmatpush1.msra.mxu0 %v461
          %1975 = vmatprep.subr.mxu0 %v466
          %1976 = vmatpush1.msra.mxu0 %v465
          %1977 = vmatprep.subr.mxu0 %v470
          %1978 = vmatpush1.msra.mxu0 %v469
          %1979 = vmatprep.subr.mxu0 %v474
          %1980 = vmatpush1.msra.mxu0 %v473
          %1981 = vmatprep.subr.mxu0 %v478
          %1982 = vmatpush1.msra.mxu0 %v477
          %1983 = vmatprep.subr.mxu0 %v482
          %1984 = vmatpush1.msra.mxu0 %v481
          %1985 = vmatprep.subr.mxu0 %v486
          %1986 = vmatpush1.msra.mxu0 %v485
          %1987 = vmatprep.subr.mxu0 %v490
          %1988 = vmatpush1.msra.mxu0 %v489
          %1989 = vmatprep.subr.mxu0 %v494
          %1990 = vmatpush1.msra.mxu0 %v493
          %1991 = vmatprep.subr.mxu0 %v498
          %1992 = vmatpush1.msra.mxu0 %v497
          %1993 = vmatprep.subr.mxu0 %v502
          %1994 = vmatpush1.msra.mxu0 %v501
          %1995 = vmatprep.subr.mxu0 %v506
          %1996 = vmatpush1.msra.mxu0 %v505
          %1997 = vmatprep.subr.mxu0 %v510
          %1998 = vmatpush1.msra.mxu0 %v509
          %1999 = vmatprep.subr.mxu0 %v514
          %2000 = vmatpush1.msra.mxu0 %v513
          %2001 = vmatprep.subr.mxu0 %v518
          %2002 = vmatpush1.msra.mxu0 %v517
          %2003 = vmatprep.subr.mxu0 %v522
          %2004 = vmatpush1.msra.mxu0 %v521
          %2005 = vmatprep.subr.mxu0 %v526
          %2006 = vmatpush1.msra.mxu0 %v525
          %2007 = vmatprep.subr.mxu0 %v530
          %2008 = vmatpush1.msra.mxu0 %v529
          %2009 = vmatprep.subr.mxu0 %v534
          %2010 = vmatpush1.msra.mxu0 %v533
          %2011 = vmatprep.subr.mxu0 %v538
          %2012 = vmatpush1.msra.mxu0 %v537
          %2013 = vmatprep.mubr.f32.mxu0 %v390
          %2014 = vmatmul.mubr.f32.gmra.mrb[0].mxu0 %v389
          %v2015 = vpop.f32.mrb[0].mxu0
          %v2016 = vadd.f32 0.0, %v2015
          %v2017 = vpop.f32.mrb[0].mxu0
          %v2018 = vadd.f32 0.0, %v2017
          %2019 = vdwg.mxu0
          %2020 = vmatprep.subr.mxu0 %v542
          %2021 = vmatpush1.msra.mxu0 %v541
          %2022 = vmatprep.subr.mxu0 %v546
          %2023 = vmatpush1.msra.mxu0 %v545
          %2024 = vmatprep.subr.mxu0 %v550
          %2025 = vmatpush1.msra.mxu0 %v549
          %2026 = vmatprep.subr.mxu0 %v554
          %2027 = vmatpush1.msra.mxu0 %v553
          %2028 = vmatprep.subr.mxu0 %v558
          %2029 = vmatpush1.msra.mxu0 %v557
          %2030 = vmatprep.subr.mxu0 %v562
          %2031 = vmatpush1.msra.mxu0 %v561
          %2032 = vmatprep.subr.mxu0 %v566
          %2033 = vmatpush1.msra.mxu0 %v565
          %2034 = vmatprep.subr.mxu0 %v570
          %2035 = vmatpush1.msra.mxu0 %v569
          %2036 = vmatprep.subr.mxu0 %v574
          %2037 = vmatpush1.msra.mxu0 %v573
          %2038 = vmatprep.subr.mxu0 %v578
          %2039 = vmatpush1.msra.mxu0 %v577
          %2040 = vmatprep.subr.mxu0 %v582
          %2041 = vmatpush1.msra.mxu0 %v581
          %2042 = vmatprep.subr.mxu0 %v586
          %2043 = vmatpush1.msra.mxu0 %v585
          %2044 = vmatprep.subr.mxu0 %v590
          %2045 = vmatpush1.msra.mxu0 %v589
          %2046 = vmatprep.subr.mxu0 %v594
          %2047 = vmatpush1.msra.mxu0 %v593
          %2048 = vmatprep.subr.mxu0 %v598
          %2049 = vmatpush1.msra.mxu0 %v597
          %2050 = vmatprep.subr.mxu0 %v602
          %2051 = vmatpush1.msra.mxu0 %v601
          %2052 = vmatprep.subr.mxu0 %v606
          %2053 = vmatpush1.msra.mxu0 %v605
          %2054 = vmatprep.subr.mxu0 %v610
          %2055 = vmatpush1.msra.mxu0 %v609
          %2056 = vmatprep.subr.mxu0 %v614
          %2057 = vmatpush1.msra.mxu0 %v613
          %2058 = vmatprep.subr.mxu0 %v618
          %2059 = vmatpush1.msra.mxu0 %v617
          %2060 = vmatprep.subr.mxu0 %v622
          %2061 = vmatpush1.msra.mxu0 %v621
          %2062 = vmatprep.subr.mxu0 %v626
          %2063 = vmatpush1.msra.mxu0 %v625
          %2064 = vmatprep.subr.mxu0 %v630
          %2065 = vmatpush1.msra.mxu0 %v629
          %2066 = vmatprep.subr.mxu0 %v634
          %2067 = vmatpush1.msra.mxu0 %v633
          %2068 = vmatprep.subr.mxu0 %v638
          %2069 = vmatpush1.msra.mxu0 %v637
          %2070 = vmatprep.subr.mxu0 %v642
          %2071 = vmatpush1.msra.mxu0 %v641
          %2072 = vmatprep.subr.mxu0 %v646
          %2073 = vmatpush1.msra.mxu0 %v645
          %2074 = vmatprep.subr.mxu0 %v650
          %2075 = vmatpush1.msra.mxu0 %v649
          %2076 = vmatprep.subr.mxu0 %v654
          %2077 = vmatpush1.msra.mxu0 %v653
          %2078 = vmatprep.subr.mxu0 %v658
          %2079 = vmatpush1.msra.mxu0 %v657
          %2080 = vmatprep.subr.mxu0 %v662
          %2081 = vmatpush1.msra.mxu0 %v661
          %2082 = vmatprep.subr.mxu0 %v666
          %2083 = vmatpush1.msra.mxu0 %v665
          %2084 = vmatprep.mubr.f32.mxu0 %v392
          %2085 = vmatmul.mubr.f32.gmra.mrb[0].mxu0 %v391
          %v2086 = vpop.f32.mrb[0].mxu0
          %v2087 = vadd.f32 %v2016, %v2086
          %v2088 = vpop.f32.mrb[0].mxu0
          %v2089 = vadd.f32 %v2018, %v2088
          %2090 = vdwg.mxu0
          %2091 = vmatprep.subr.mxu0 %v670
          %2092 = vmatpush1.msra.mxu0 %v669
          %2093 = vmatprep.subr.mxu0 %v674
          %2094 = vmatpush1.msra.mxu0 %v673
          %2095 = vmatprep.subr.mxu0 %v678
          %2096 = vmatpush1.msra.mxu0 %v677
          %2097 = vmatprep.subr.mxu0 %v682
          %2098 = vmatpush1.msra.mxu0 %v681
          %2099 = vmatprep.subr.mxu0 %v686
          %2100 = vmatpush1.msra.mxu0 %v685
          %2101 = vmatprep.subr.mxu0 %v690
          %2102 = vmatpush1.msra.mxu0 %v689
          %2103 = vmatprep.subr.mxu0 %v694
          %2104 = vmatpush1.msra.mxu0 %v693
          %2105 = vmatprep.subr.mxu0 %v698
          %2106 = vmatpush1.msra.mxu0 %v697
          %2107 = vmatprep.subr.mxu0 %v702
          %2108 = vmatpush1.msra.mxu0 %v701
          %2109 = vmatprep.subr.mxu0 %v706
          %2110 = vmatpush1.msra.mxu0 %v705
          %2111 = vmatprep.subr.mxu0 %v710
          %2112 = vmatpush1.msra.mxu0 %v709
          %2113 = vmatprep.subr.mxu0 %v714
          %2114 = vmatpush1.msra.mxu0 %v713
          %2115 = vmatprep.subr.mxu0 %v718
          %2116 = vmatpush1.msra.mxu0 %v717
          %2117 = vmatprep.subr.mxu0 %v722
          %2118 = vmatpush1.msra.mxu0 %v721
          %2119 = vmatprep.subr.mxu0 %v726
          %2120 = vmatpush1.msra.mxu0 %v725
          %2121 = vmatprep.subr.mxu0 %v730
          %2122 = vmatpush1.msra.mxu0 %v729
          %2123 = vmatprep.subr.mxu0 %v734
          %2124 = vmatpush1.msra.mxu0 %v733
          %2125 = vmatprep.subr.mxu0 %v738
          %2126 = vmatpush1.msra.mxu0 %v737
          %2127 = vmatprep.subr.mxu0 %v742
          %2128 = vmatpush1.msra.mxu0 %v741
          %2129 = vmatprep.subr.mxu0 %v746
          %2130 = vmatpush1.msra.mxu0 %v745
          %2131 = vmatprep.subr.mxu0 %v750
          %2132 = vmatpush1.msra.mxu0 %v749
          %2133 = vmatprep.subr.mxu0 %v754
          %2134 = vmatpush1.msra.mxu0 %v753
          %2135 = vmatprep.subr.mxu0 %v758
          %2136 = vmatpush1.msra.mxu0 %v757
          %2137 = vmatprep.subr.mxu0 %v762
          %2138 = vmatpush1.msra.mxu0 %v761
          %2139 = vmatprep.subr.mxu0 %v766
          %2140 = vmatpush1.msra.mxu0 %v765
          %2141 = vmatprep.subr.mxu0 %v770
          %2142 = vmatpush1.msra.mxu0 %v769
          %2143 = vmatprep.subr.mxu0 %v774
          %2144 = vmatpush1.msra.mxu0 %v773
          %2145 = vmatprep.subr.mxu0 %v778
          %2146 = vmatpush1.msra.mxu0 %v777
          %2147 = vmatprep.subr.mxu0 %v782
          %2148 = vmatpush1.msra.mxu0 %v781
          %2149 = vmatprep.subr.mxu0 %v786
          %2150 = vmatpush1.msra.mxu0 %v785
          %2151 = vmatprep.subr.mxu0 %v790
          %2152 = vmatpush1.msra.mxu0 %v789
          %2153 = vmatprep.subr.mxu0 %v794
          %2154 = vmatpush1.msra.mxu0 %v793
          %2155 = vmatprep.mubr.f32.mxu0 %v394
          %2156 = vmatmul.mubr.f32.gmra.mrb[0].mxu0 %v393
          %v2157 = vpop.f32.mrb[0].mxu0
          %v2158 = vadd.f32 %v2087, %v2157
          %v2159 = vpop.f32.mrb[0].mxu0
          %v2160 = vadd.f32 %v2089, %v2159
          %2161 = vdwg.mxu0
          %2162 = vmatprep.subr.mxu0 %v798
          %2163 = vmatpush1.msra.mxu0 %v797
          %2164 = vmatprep.subr.mxu0 %v802
          %2165 = vmatpush1.msra.mxu0 %v801
          %2166 = vmatprep.subr.mxu0 %v806
          %2167 = vmatpush1.msra.mxu0 %v805
          %2168 = vmatprep.subr.mxu0 %v810
          %2169 = vmatpush1.msra.mxu0 %v809
          %2170 = vmatprep.subr.mxu0 %v814
          %2171 = vmatpush1.msra.mxu0 %v813
          %2172 = vmatprep.subr.mxu0 %v818
          %2173 = vmatpush1.msra.mxu0 %v817
          %2174 = vmatprep.subr.mxu0 %v822
          %2175 = vmatpush1.msra.mxu0 %v821
          %2176 = vmatprep.subr.mxu0 %v826
          %2177 = vmatpush1.msra.mxu0 %v825
          %2178 = vmatprep.subr.mxu0 %v830
          %2179 = vmatpush1.msra.mxu0 %v829
          %2180 = vmatprep.subr.mxu0 %v834
          %2181 = vmatpush1.msra.mxu0 %v833
          %2182 = vmatprep.subr.mxu0 %v838
          %2183 = vmatpush1.msra.mxu0 %v837
          %2184 = vmatprep.subr.mxu0 %v842
          %2185 = vmatpush1.msra.mxu0 %v841
          %2186 = vmatprep.subr.mxu0 %v846
          %2187 = vmatpush1.msra.mxu0 %v845
          %2188 = vmatprep.subr.mxu0 %v850
          %2189 = vmatpush1.msra.mxu0 %v849
          %2190 = vmatprep.subr.mxu0 %v854
          %2191 = vmatpush1.msra.mxu0 %v853
          %2192 = vmatprep.subr.mxu0 %v858
          %2193 = vmatpush1.msra.mxu0 %v857
          %2194 = vmatprep.subr.mxu0 %v862
          %2195 = vmatpush1.msra.mxu0 %v861
          %2196 = vmatprep.subr.mxu0 %v866
          %2197 = vmatpush1.msra.mxu0 %v865
          %2198 = vmatprep.subr.mxu0 %v870
          %2199 = vmatpush1.msra.mxu0 %v869
          %2200 = vmatprep.subr.mxu0 %v874
          %2201 = vmatpush1.msra.mxu0 %v873
          %2202 = vmatprep.subr.mxu0 %v878
          %2203 = vmatpush1.msra.mxu0 %v877
          %2204 = vmatprep.subr.mxu0 %v882
          %2205 = vmatpush1.msra.mxu0 %v881
          %2206 = vmatprep.subr.mxu0 %v886
          %2207 = vmatpush1.msra.mxu0 %v885
          %2208 = vmatprep.subr.mxu0 %v890
          %2209 = vmatpush1.msra.mxu0 %v889
          %2210 = vmatprep.subr.mxu0 %v894
          %2211 = vmatpush1.msra.mxu0 %v893
          %2212 = vmatprep.subr.mxu0 %v898
          %2213 = vmatpush1.msra.mxu0 %v897
          %2214 = vmatprep.subr.mxu0 %v902
          %2215 = vmatpush1.msra.mxu0 %v901
          %2216 = vmatprep.subr.mxu0 %v906
          %2217 = vmatpush1.msra.mxu0 %v905
          %2218 = vmatprep.subr.mxu0 %v910
          %2219 = vmatpush1.msra.mxu0 %v909
          %2220 = vmatprep.subr.mxu0 %v914
          %2221 = vmatpush1.msra.mxu0 %v913
          %2222 = vmatprep.subr.mxu0 %v918
          %2223 = vmatpush1.msra.mxu0 %v917
          %2224 = vmatprep.subr.mxu0 %v922
          %2225 = vmatpush1.msra.mxu0 %v921
          %2226 = vmatprep.mubr.f32.mxu0 %v396
          %2227 = vmatmul.mubr.f32.gmra.mrb[0].mxu0 %v395
          %v2228 = vpop.f32.mrb[0].mxu0
          %v2229 = vadd.f32 %v2158, %v2228
          %v2230 = vpop.f32.mrb[0].mxu0
          %v2231 = vadd.f32 %v2160, %v2230
          %2232 = vdwg.mxu0
          %2233 = vmatprep.subr.mxu0 %v926
          %2234 = vmatpush1.msra.mxu0 %v925
          %2235 = vmatprep.subr.mxu0 %v930
          %2236 = vmatpush1.msra.mxu0 %v929
          %2237 = vmatprep.subr.mxu0 %v934
          %2238 = vmatpush1.msra.mxu0 %v933
          %2239 = vmatprep.subr.mxu0 %v938
          %2240 = vmatpush1.msra.mxu0 %v937
          %2241 = vmatprep.subr.mxu0 %v942
          %2242 = vmatpush1.msra.mxu0 %v941
          %2243 = vmatprep.subr.mxu0 %v946
          %2244 = vmatpush1.msra.mxu0 %v945
          %2245 = vmatprep.subr.mxu0 %v950
          %2246 = vmatpush1.msra.mxu0 %v949
          %2247 = vmatprep.subr.mxu0 %v954
          %2248 = vmatpush1.msra.mxu0 %v953
          %2249 = vmatprep.subr.mxu0 %v958
          %2250 = vmatpush1.msra.mxu0 %v957
          %2251 = vmatprep.subr.mxu0 %v962
          %2252 = vmatpush1.msra.mxu0 %v961
          %2253 = vmatprep.subr.mxu0 %v966
          %2254 = vmatpush1.msra.mxu0 %v965
          %2255 = vmatprep.subr.mxu0 %v970
          %2256 = vmatpush1.msra.mxu0 %v969
          %2257 = vmatprep.subr.mxu0 %v974
          %2258 = vmatpush1.msra.mxu0 %v973
          %2259 = vmatprep.subr.mxu0 %v978
          %2260 = vmatpush1.msra.mxu0 %v977
          %2261 = vmatprep.subr.mxu0 %v982
          %2262 = vmatpush1.msra.mxu0 %v981
          %2263 = vmatprep.subr.mxu0 %v986
          %2264 = vmatpush1.msra.mxu0 %v985
          %2265 = vmatprep.subr.mxu0 %v990
          %2266 = vmatpush1.msra.mxu0 %v989
          %2267 = vmatprep.subr.mxu0 %v994
          %2268 = vmatpush1.msra.mxu0 %v993
          %2269 = vmatprep.subr.mxu0 %v998
          %2270 = vmatpush1.msra.mxu0 %v997
          %2271 = vmatprep.subr.mxu0 %v1002
          %2272 = vmatpush1.msra.mxu0 %v1001
          %2273 = vmatprep.subr.mxu0 %v1006
          %2274 = vmatpush1.msra.mxu0 %v1005
          %2275 = vmatprep.subr.mxu0 %v1010
          %2276 = vmatpush1.msra.mxu0 %v1009
          %2277 = vmatprep.subr.mxu0 %v1014
          %2278 = vmatpush1.msra.mxu0 %v1013
          %2279 = vmatprep.subr.mxu0 %v1018
          %2280 = vmatpush1.msra.mxu0 %v1017
          %2281 = vmatprep.subr.mxu0 %v1022
          %2282 = vmatpush1.msra.mxu0 %v1021
          %2283 = vmatprep.subr.mxu0 %v1026
          %2284 = vmatpush1.msra.mxu0 %v1025
          %2285 = vmatprep.subr.mxu0 %v1030
          %2286 = vmatpush1.msra.mxu0 %v1029
          %2287 = vmatprep.subr.mxu0 %v1034
          %2288 = vmatpush1.msra.mxu0 %v1033
          %2289 = vmatprep.subr.mxu0 %v1038
          %2290 = vmatpush1.msra.mxu0 %v1037
          %2291 = vmatprep.subr.mxu0 %v1042
          %2292 = vmatpush1.msra.mxu0 %v1041
          %2293 = vmatprep.subr.mxu0 %v1046
          %2294 = vmatpush1.msra.mxu0 %v1045
          %2295 = vmatprep.subr.mxu0 %v1050
          %2296 = vmatpush1.msra.mxu0 %v1049
          %2297 = vmatprep.mubr.f32.mxu0 %v398
          %2298 = vmatmul.mubr.f32.gmra.mrb[0].mxu0 %v397
          %v2299 = vpop.f32.mrb[0].mxu0
          %v2300 = vadd.f32 %v2229, %v2299
          %v2301 = vpop.f32.mrb[0].mxu0
          %v2302 = vadd.f32 %v2231, %v2301
          %2303 = vdwg.mxu0
          %2304 = vmatprep.subr.mxu0 %v1054
          %2305 = vmatpush1.msra.mxu0 %v1053
          %2306 = vmatprep.subr.mxu0 %v1058
          %2307 = vmatpush1.msra.mxu0 %v1057
          %2308 = vmatprep.subr.mxu0 %v1062
          %2309 = vmatpush1.msra.mxu0 %v1061
          %2310 = vmatprep.subr.mxu0 %v1066
          %2311 = vmatpush1.msra.mxu0 %v1065
          %2312 = vmatprep.subr.mxu0 %v1070
          %2313 = vmatpush1.msra.mxu0 %v1069
          %2314 = vmatprep.subr.mxu0 %v1074
          %2315 = vmatpush1.msra.mxu0 %v1073
          %2316 = vmatprep.subr.mxu0 %v1078
          %2317 = vmatpush1.msra.mxu0 %v1077
          %2318 = vmatprep.subr.mxu0 %v1082
          %2319 = vmatpush1.msra.mxu0 %v1081
          %2320 = vmatprep.subr.mxu0 %v1086
          %2321 = vmatpush1.msra.mxu0 %v1085
          %2322 = vmatprep.subr.mxu0 %v1090
          %2323 = vmatpush1.msra.mxu0 %v1089
          %2324 = vmatprep.subr.mxu0 %v1094
          %2325 = vmatpush1.msra.mxu0 %v1093
          %2326 = vmatprep.subr.mxu0 %v1098
          %2327 = vmatpush1.msra.mxu0 %v1097
          %2328 = vmatprep.subr.mxu0 %v1102
          %2329 = vmatpush1.msra.mxu0 %v1101
          %2330 = vmatprep.subr.mxu0 %v1106
          %2331 = vmatpush1.msra.mxu0 %v1105
          %2332 = vmatprep.subr.mxu0 %v1110
          %2333 = vmatpush1.msra.mxu0 %v1109
          %2334 = vmatprep.subr.mxu0 %v1114
          %2335 = vmatpush1.msra.mxu0 %v1113
          %2336 = vmatprep.subr.mxu0 %v1118
          %2337 = vmatpush1.msra.mxu0 %v1117
          %2338 = vmatprep.subr.mxu0 %v1122
          %2339 = vmatpush1.msra.mxu0 %v1121
          %2340 = vmatprep.subr.mxu0 %v1126
          %2341 = vmatpush1.msra.mxu0 %v1125
          %2342 = vmatprep.subr.mxu0 %v1130
          %2343 = vmatpush1.msra.mxu0 %v1129
          %2344 = vmatprep.subr.mxu0 %v1134
          %2345 = vmatpush1.msra.mxu0 %v1133
          %2346 = vmatprep.subr.mxu0 %v1138
          %2347 = vmatpush1.msra.mxu0 %v1137
          %2348 = vmatprep.subr.mxu0 %v1142
          %2349 = vmatpush1.msra.mxu0 %v1141
          %2350 = vmatprep.subr.mxu0 %v1146
          %2351 = vmatpush1.msra.mxu0 %v1145
          %2352 = vmatprep.subr.mxu0 %v1150
          %2353 = vmatpush1.msra.mxu0 %v1149
          %2354 = vmatprep.subr.mxu0 %v1154
          %2355 = vmatpush1.msra.mxu0 %v1153
          %2356 = vmatprep.subr.mxu0 %v1158
          %2357 = vmatpush1.msra.mxu0 %v1157
          %2358 = vmatprep.subr.mxu0 %v1162
          %2359 = vmatpush1.msra.mxu0 %v1161
          %2360 = vmatprep.subr.mxu0 %v1166
          %2361 = vmatpush1.msra.mxu0 %v1165
          %2362 = vmatprep.subr.mxu0 %v1170
          %2363 = vmatpush1.msra.mxu0 %v1169
          %2364 = vmatprep.subr.mxu0 %v1174
          %2365 = vmatpush1.msra.mxu0 %v1173
          %2366 = vmatprep.subr.mxu0 %v1178
          %2367 = vmatpush1.msra.mxu0 %v1177
          %2368 = vmatprep.mubr.f32.mxu0 %v400
          %2369 = vmatmul.mubr.f32.gmra.mrb[0].mxu0 %v399
          %v2370 = vpop.f32.mrb[0].mxu0
          %v2371 = vadd.f32 %v2300, %v2370
          %v2372 = vpop.f32.mrb[0].mxu0
          %v2373 = vadd.f32 %v2302, %v2372
          %2374 = vdwg.mxu0
          %2375 = vmatprep.subr.mxu0 %v1182
          %2376 = vmatpush1.msra.mxu0 %v1181
          %2377 = vmatprep.subr.mxu0 %v1186
          %2378 = vmatpush1.msra.mxu0 %v1185
          %2379 = vmatprep.subr.mxu0 %v1190
          %2380 = vmatpush1.msra.mxu0 %v1189
          %2381 = vmatprep.subr.mxu0 %v1194
          %2382 = vmatpush1.msra.mxu0 %v1193
          %2383 = vmatprep.subr.mxu0 %v1198
          %2384 = vmatpush1.msra.mxu0 %v1197
          %2385 = vmatprep.subr.mxu0 %v1202
          %2386 = vmatpush1.msra.mxu0 %v1201
          %2387 = vmatprep.subr.mxu0 %v1206
          %2388 = vmatpush1.msra.mxu0 %v1205
          %2389 = vmatprep.subr.mxu0 %v1210
          %2390 = vmatpush1.msra.mxu0 %v1209
          %2391 = vmatprep.subr.mxu0 %v1214
          %2392 = vmatpush1.msra.mxu0 %v1213
          %2393 = vmatprep.subr.mxu0 %v1218
          %2394 = vmatpush1.msra.mxu0 %v1217
          %2395 = vmatprep.subr.mxu0 %v1222
          %2396 = vmatpush1.msra.mxu0 %v1221
          %2397 = vmatprep.subr.mxu0 %v1226
          %2398 = vmatpush1.msra.mxu0 %v1225
          %2399 = vmatprep.subr.mxu0 %v1230
          %2400 = vmatpush1.msra.mxu0 %v1229
          %2401 = vmatprep.subr.mxu0 %v1234
          %2402 = vmatpush1.msra.mxu0 %v1233
          %2403 = vmatprep.subr.mxu0 %v1238
          %2404 = vmatpush1.msra.mxu0 %v1237
          %2405 = vmatprep.subr.mxu0 %v1242
          %2406 = vmatpush1.msra.mxu0 %v1241
          %2407 = vmatprep.subr.mxu0 %v1246
          %2408 = vmatpush1.msra.mxu0 %v1245
          %2409 = vmatprep.subr.mxu0 %v1250
          %2410 = vmatpush1.msra.mxu0 %v1249
          %2411 = vmatprep.subr.mxu0 %v1254
          %2412 = vmatpush1.msra.mxu0 %v1253
          %2413 = vmatprep.subr.mxu0 %v1258
          %2414 = vmatpush1.msra.mxu0 %v1257
          %2415 = vmatprep.subr.mxu0 %v1262
          %2416 = vmatpush1.msra.mxu0 %v1261
          %2417 = vmatprep.subr.mxu0 %v1266
          %2418 = vmatpush1.msra.mxu0 %v1265
          %2419 = vmatprep.subr.mxu0 %v1270
          %2420 = vmatpush1.msra.mxu0 %v1269
          %2421 = vmatprep.subr.mxu0 %v1274
          %2422 = vmatpush1.msra.mxu0 %v1273
          %2423 = vmatprep.subr.mxu0 %v1278
          %2424 = vmatpush1.msra.mxu0 %v1277
          %2425 = vmatprep.subr.mxu0 %v1282
          %2426 = vmatpush1.msra.mxu0 %v1281
          %2427 = vmatprep.subr.mxu0 %v1286
          %2428 = vmatpush1.msra.mxu0 %v1285
          %2429 = vmatprep.subr.mxu0 %v1290
          %2430 = vmatpush1.msra.mxu0 %v1289
          %2431 = vmatprep.subr.mxu0 %v1294
          %2432 = vmatpush1.msra.mxu0 %v1293
          %2433 = vmatprep.subr.mxu0 %v1298
          %2434 = vmatpush1.msra.mxu0 %v1297
          %2435 = vmatprep.subr.mxu0 %v1302
          %2436 = vmatpush1.msra.mxu0 %v1301
          %2437 = vmatprep.subr.mxu0 %v1306
          %2438 = vmatpush1.msra.mxu0 %v1305
          %2439 = vmatprep.mubr.f32.mxu0 %v402
          %2440 = vmatmul.mubr.f32.gmra.mrb[0].mxu0 %v401
          %v2441 = vpop.f32.mrb[0].mxu0
          %v2442 = vadd.f32 %v2371, %v2441
          %v2443 = vpop.f32.mrb[0].mxu0
          %v2444 = vadd.f32 %v2373, %v2443
          %2445 = vdwg.mxu0
          %2446 = vmatprep.subr.mxu0 %v1310
          %2447 = vmatpush1.msra.mxu0 %v1309
          %2448 = vmatprep.subr.mxu0 %v1314
          %2449 = vmatpush1.msra.mxu0 %v1313
          %2450 = vmatprep.subr.mxu0 %v1318
          %2451 = vmatpush1.msra.mxu0 %v1317
          %2452 = vmatprep.subr.mxu0 %v1322
          %2453 = vmatpush1.msra.mxu0 %v1321
          %2454 = vmatprep.subr.mxu0 %v1326
          %2455 = vmatpush1.msra.mxu0 %v1325
          %2456 = vmatprep.subr.mxu0 %v1330
          %2457 = vmatpush1.msra.mxu0 %v1329
          %2458 = vmatprep.subr.mxu0 %v1334
          %2459 = vmatpush1.msra.mxu0 %v1333
          %2460 = vmatprep.subr.mxu0 %v1338
          %2461 = vmatpush1.msra.mxu0 %v1337
          %2462 = vmatprep.subr.mxu0 %v1342
          %2463 = vmatpush1.msra.mxu0 %v1341
          %2464 = vmatprep.subr.mxu0 %v1346
          %2465 = vmatpush1.msra.mxu0 %v1345
          %2466 = vmatprep.subr.mxu0 %v1350
          %2467 = vmatpush1.msra.mxu0 %v1349
          %2468 = vmatprep.subr.mxu0 %v1354
          %2469 = vmatpush1.msra.mxu0 %v1353
          %2470 = vmatprep.subr.mxu0 %v1358
          %2471 = vmatpush1.msra.mxu0 %v1357
          %2472 = vmatprep.subr.mxu0 %v1362
          %2473 = vmatpush1.msra.mxu0 %v1361
          %2474 = vmatprep.subr.mxu0 %v1366
          %2475 = vmatpush1.msra.mxu0 %v1365
          %2476 = vmatprep.subr.mxu0 %v1370
          %2477 = vmatpush1.msra.mxu0 %v1369
          %2478 = vmatprep.subr.mxu0 %v1374
          %2479 = vmatpush1.msra.mxu0 %v1373
          %2480 = vmatprep.subr.mxu0 %v1378
          %2481 = vmatpush1.msra.mxu0 %v1377
          %2482 = vmatprep.subr.mxu0 %v1382
          %2483 = vmatpush1.msra.mxu0 %v1381
          %2484 = vmatprep.subr.mxu0 %v1386
          %2485 = vmatpush1.msra.mxu0 %v1385
          %2486 = vmatprep.subr.mxu0 %v1390
          %2487 = vmatpush1.msra.mxu0 %v1389
          %2488 = vmatprep.subr.mxu0 %v1394
          %2489 = vmatpush1.msra.mxu0 %v1393
          %2490 = vmatprep.subr.mxu0 %v1398
          %2491 = vmatpush1.msra.mxu0 %v1397
          %2492 = vmatprep.subr.mxu0 %v1402
          %2493 = vmatpush1.msra.mxu0 %v1401
          %2494 = vmatprep.subr.mxu0 %v1406
          %2495 = vmatpush1.msra.mxu0 %v1405
          %2496 = vmatprep.subr.mxu0 %v1410
          %2497 = vmatpush1.msra.mxu0 %v1409
          %2498 = vmatprep.subr.mxu0 %v1414
          %2499 = vmatpush1.msra.mxu0 %v1413
          %2500 = vmatprep.subr.mxu0 %v1418
          %2501 = vmatpush1.msra.mxu0 %v1417
          %2502 = vmatprep.subr.mxu0 %v1422
          %2503 = vmatpush1.msra.mxu0 %v1421
          %2504 = vmatprep.subr.mxu0 %v1426
          %2505 = vmatpush1.msra.mxu0 %v1425
          %2506 = vmatprep.subr.mxu0 %v1430
          %2507 = vmatpush1.msra.mxu0 %v1429
          %2508 = vmatprep.subr.mxu0 %v1434
          %2509 = vmatpush1.msra.mxu0 %v1433
          %2510 = vmatprep.mubr.f32.mxu0 %v404
          %2511 = vmatmul.mubr.f32.gmra.mrb[0].mxu0 %v403
          %v2512 = vpop.f32.mrb[0].mxu0
          %v2513 = vadd.f32 %v2442, %v2512
          %v2514 = vpop.f32.mrb[0].mxu0
          %v2515 = vadd.f32 %v2444, %v2514
          %2516 = vdwg.mxu0
          %2517 = vmatprep.subr.mxu0 %v1438
          %2518 = vmatpush1.msra.mxu0 %v1437
          %2519 = vmatprep.subr.mxu0 %v1442
          %2520 = vmatpush1.msra.mxu0 %v1441
          %2521 = vmatprep.subr.mxu0 %v1446
          %2522 = vmatpush1.msra.mxu0 %v1445
          %2523 = vmatprep.subr.mxu0 %v1450
          %2524 = vmatpush1.msra.mxu0 %v1449
          %2525 = vmatprep.subr.mxu0 %v1454
          %2526 = vmatpush1.msra.mxu0 %v1453
          %2527 = vmatprep.subr.mxu0 %v1458
          %2528 = vmatpush1.msra.mxu0 %v1457
          %2529 = vmatprep.subr.mxu0 %v1462
          %2530 = vmatpush1.msra.mxu0 %v1461
          %2531 = vmatprep.subr.mxu0 %v1466
          %2532 = vmatpush1.msra.mxu0 %v1465
          %2533 = vmatprep.subr.mxu0 %v1470
          %2534 = vmatpush1.msra.mxu0 %v1469
          %2535 = vmatprep.subr.mxu0 %v1474
          %2536 = vmatpush1.msra.mxu0 %v1473
          %2537 = vmatprep.subr.mxu0 %v1478
          %2538 = vmatpush1.msra.mxu0 %v1477
          %2539 = vmatprep.subr.mxu0 %v1482
          %2540 = vmatpush1.msra.mxu0 %v1481
          %2541 = vmatprep.subr.mxu0 %v1486
          %2542 = vmatpush1.msra.mxu0 %v1485
          %2543 = vmatprep.subr.mxu0 %v1490
          %2544 = vmatpush1.msra.mxu0 %v1489
          %2545 = vmatprep.subr.mxu0 %v1494
          %2546 = vmatpush1.msra.mxu0 %v1493
          %2547 = vmatprep.subr.mxu0 %v1498
          %2548 = vmatpush1.msra.mxu0 %v1497
          %2549 = vmatprep.subr.mxu0 %v1502
          %2550 = vmatpush1.msra.mxu0 %v1501
          %2551 = vmatprep.subr.mxu0 %v1506
          %2552 = vmatpush1.msra.mxu0 %v1505
          %2553 = vmatprep.subr.mxu0 %v1510
          %2554 = vmatpush1.msra.mxu0 %v1509
          %2555 = vmatprep.subr.mxu0 %v1514
          %2556 = vmatpush1.msra.mxu0 %v1513
          %2557 = vmatprep.subr.mxu0 %v1518
          %2558 = vmatpush1.msra.mxu0 %v1517
          %2559 = vmatprep.subr.mxu0 %v1522
          %2560 = vmatpush1.msra.mxu0 %v1521
          %2561 = vmatprep.subr.mxu0 %v1526
          %2562 = vmatpush1.msra.mxu0 %v1525
          %2563 = vmatprep.subr.mxu0 %v1530
          %2564 = vmatpush1.msra.mxu0 %v1529
          %2565 = vmatprep.subr.mxu0 %v1534
          %2566 = vmatpush1.msra.mxu0 %v1533
          %2567 = vmatprep.subr.mxu0 %v1538
          %2568 = vmatpush1.msra.mxu0 %v1537
          %2569 = vmatprep.subr.mxu0 %v1542
          %2570 = vmatpush1.msra.mxu0 %v1541
          %2571 = vmatprep.subr.mxu0 %v1546
          %2572 = vmatpush1.msra.mxu0 %v1545
          %2573 = vmatprep.subr.mxu0 %v1550
          %2574 = vmatpush1.msra.mxu0 %v1549
          %2575 = vmatprep.subr.mxu0 %v1554
          %2576 = vmatpush1.msra.mxu0 %v1553
          %2577 = vmatprep.subr.mxu0 %v1558
          %2578 = vmatpush1.msra.mxu0 %v1557
          %2579 = vmatprep.subr.mxu0 %v1562
          %2580 = vmatpush1.msra.mxu0 %v1561
          %2581 = vmatprep.mubr.f32.mxu0 %v406
          %2582 = vmatmul.mubr.f32.gmra.mrb[0].mxu0 %v405
          %v2583 = vpop.f32.mrb[0].mxu0
          %v2584 = vadd.f32 %v2513, %v2583
          %v2585 = vpop.f32.mrb[0].mxu0
          %v2586 = vadd.f32 %v2515, %v2585
          %2587 = vdwg.mxu0
          %2588 = vmatprep.subr.mxu0 %v1566
          %2589 = vmatpush1.msra.mxu0 %v1565
          %2590 = vmatprep.subr.mxu0 %v1570
          %2591 = vmatpush1.msra.mxu0 %v1569
          %2592 = vmatprep.subr.mxu0 %v1574
          %2593 = vmatpush1.msra.mxu0 %v1573
          %2594 = vmatprep.subr.mxu0 %v1578
          %2595 = vmatpush1.msra.mxu0 %v1577
          %2596 = vmatprep.subr.mxu0 %v1582
          %2597 = vmatpush1.msra.mxu0 %v1581
          %2598 = vmatprep.subr.mxu0 %v1586
          %2599 = vmatpush1.msra.mxu0 %v1585
          %2600 = vmatprep.subr.mxu0 %v1590
          %2601 = vmatpush1.msra.mxu0 %v1589
          %2602 = vmatprep.subr.mxu0 %v1594
          %2603 = vmatpush1.msra.mxu0 %v1593
          %2604 = vmatprep.subr.mxu0 %v1598
          %2605 = vmatpush1.msra.mxu0 %v1597
          %2606 = vmatprep.subr.mxu0 %v1602
          %2607 = vmatpush1.msra.mxu0 %v1601
          %2608 = vmatprep.subr.mxu0 %v1606
          %2609 = vmatpush1.msra.mxu0 %v1605
          %2610 = vmatprep.subr.mxu0 %v1610
          %2611 = vmatpush1.msra.mxu0 %v1609
          %2612 = vmatprep.subr.mxu0 %v1614
          %2613 = vmatpush1.msra.mxu0 %v1613
          %2614 = vmatprep.subr.mxu0 %v1618
          %2615 = vmatpush1.msra.mxu0 %v1617
          %2616 = vmatprep.subr.mxu0 %v1622
          %2617 = vmatpush1.msra.mxu0 %v1621
          %2618 = vmatprep.subr.mxu0 %v1626
          %2619 = vmatpush1.msra.mxu0 %v1625
          %2620 = vmatprep.subr.mxu0 %v1630
          %2621 = vmatpush1.msra.mxu0 %v1629
          %2622 = vmatprep.subr.mxu0 %v1634
          %2623 = vmatpush1.msra.mxu0 %v1633
          %2624 = vmatprep.subr.mxu0 %v1638
          %2625 = vmatpush1.msra.mxu0 %v1637
          %2626 = vmatprep.subr.mxu0 %v1642
          %2627 = vmatpush1.msra.mxu0 %v1641
          %2628 = vmatprep.subr.mxu0 %v1646
          %2629 = vmatpush1.msra.mxu0 %v1645
          %2630 = vmatprep.subr.mxu0 %v1650
          %2631 = vmatpush1.msra.mxu0 %v1649
          %2632 = vmatprep.subr.mxu0 %v1654
          %2633 = vmatpush1.msra.mxu0 %v1653
          %2634 = vmatprep.subr.mxu0 %v1658
          %2635 = vmatpush1.msra.mxu0 %v1657
          %2636 = vmatprep.subr.mxu0 %v1662
          %2637 = vmatpush1.msra.mxu0 %v1661
          %2638 = vmatprep.subr.mxu0 %v1666
          %2639 = vmatpush1.msra.mxu0 %v1665
          %2640 = vmatprep.subr.mxu0 %v1670
          %2641 = vmatpush1.msra.mxu0 %v1669
          %2642 = vmatprep.subr.mxu0 %v1674
          %2643 = vmatpush1.msra.mxu0 %v1673
          %2644 = vmatprep.subr.mxu0 %v1678
          %2645 = vmatpush1.msra.mxu0 %v1677
          %2646 = vmatprep.subr.mxu0 %v1682
          %2647 = vmatpush1.msra.mxu0 %v1681
          %2648 = vmatprep.subr.mxu0 %v1686
          %2649 = vmatpush1.msra.mxu0 %v1685
          %2650 = vmatprep.subr.mxu0 %v1690
          %2651 = vmatpush1.msra.mxu0 %v1689
          %2652 = vmatprep.mubr.f32.mxu0 %v408
          %2653 = vmatmul.mubr.f32.gmra.mrb[0].mxu0 %v407
          %v2654 = vpop.f32.mrb[0].mxu0
          %v2655 = vadd.f32 %v2584, %v2654
          %v2656 = vpop.f32.mrb[0].mxu0
          %v2657 = vadd.f32 %v2586, %v2656
          %2658 = vdwg.mxu0
          %2659 = vmatprep.subr.mxu0 %v1694
          %2660 = vmatpush1.msra.mxu0 %v1693
          %2661 = vmatprep.subr.mxu0 %v1698
          %2662 = vmatpush1.msra.mxu0 %v1697
          %2663 = vmatprep.subr.mxu0 %v1702
          %2664 = vmatpush1.msra.mxu0 %v1701
          %2665 = vmatprep.subr.mxu0 %v1706
          %2666 = vmatpush1.msra.mxu0 %v1705
          %2667 = vmatprep.subr.mxu0 %v1710
          %2668 = vmatpush1.msra.mxu0 %v1709
          %2669 = vmatprep.subr.mxu0 %v1714
          %2670 = vmatpush1.msra.mxu0 %v1713
          %2671 = vmatprep.subr.mxu0 %v1718
          %2672 = vmatpush1.msra.mxu0 %v1717
          %2673 = vmatprep.subr.mxu0 %v1722
          %2674 = vmatpush1.msra.mxu0 %v1721
          %2675 = vmatprep.subr.mxu0 %v1726
          %2676 = vmatpush1.msra.mxu0 %v1725
          %2677 = vmatprep.subr.mxu0 %v1730
          %2678 = vmatpush1.msra.mxu0 %v1729
          %2679 = vmatprep.subr.mxu0 %v1734
          %2680 = vmatpush1.msra.mxu0 %v1733
          %2681 = vmatprep.subr.mxu0 %v1738
          %2682 = vmatpush1.msra.mxu0 %v1737
          %2683 = vmatprep.subr.mxu0 %v1742
          %2684 = vmatpush1.msra.mxu0 %v1741
          %2685 = vmatprep.subr.mxu0 %v1746
          %2686 = vmatpush1.msra.mxu0 %v1745
          %2687 = vmatprep.subr.mxu0 %v1750
          %2688 = vmatpush1.msra.mxu0 %v1749
          %2689 = vmatprep.subr.mxu0 %v1754
          %2690 = vmatpush1.msra.mxu0 %v1753
          %2691 = vmatprep.subr.mxu0 %v1758
          %2692 = vmatpush1.msra.mxu0 %v1757
          %2693 = vmatprep.subr.mxu0 %v1762
          %2694 = vmatpush1.msra.mxu0 %v1761
          %2695 = vmatprep.subr.mxu0 %v1766
          %2696 = vmatpush1.msra.mxu0 %v1765
          %2697 = vmatprep.subr.mxu0 %v1770
          %2698 = vmatpush1.msra.mxu0 %v1769
          %2699 = vmatprep.subr.mxu0 %v1774
          %2700 = vmatpush1.msra.mxu0 %v1773
          %2701 = vmatprep.subr.mxu0 %v1778
          %2702 = vmatpush1.msra.mxu0 %v1777
          %2703 = vmatprep.subr.mxu0 %v1782
          %2704 = vmatpush1.msra.mxu0 %v1781
          %2705 = vmatprep.subr.mxu0 %v1786
          %2706 = vmatpush1.msra.mxu0 %v1785
          %2707 = vmatprep.subr.mxu0 %v1790
          %2708 = vmatpush1.msra.mxu0 %v1789
          %2709 = vmatprep.subr.mxu0 %v1794
          %2710 = vmatpush1.msra.mxu0 %v1793
          %2711 = vmatprep.subr.mxu0 %v1798
          %2712 = vmatpush1.msra.mxu0 %v1797
          %2713 = vmatprep.subr.mxu0 %v1802
          %2714 = vmatpush1.msra.mxu0 %v1801
          %2715 = vmatprep.subr.mxu0 %v1806
          %2716 = vmatpush1.msra.mxu0 %v1805
          %2717 = vmatprep.subr.mxu0 %v1810
          %2718 = vmatpush1.msra.mxu0 %v1809
          %2719 = vmatprep.subr.mxu0 %v1814
          %2720 = vmatpush1.msra.mxu0 %v1813
          %2721 = vmatprep.subr.mxu0 %v1818
          %2722 = vmatpush1.msra.mxu0 %v1817
          %2723 = vmatprep.mubr.f32.mxu0 %v410
          %2724 = vmatmul.mubr.f32.gmra.mrb[0].mxu0 %v409
          %v2725 = vpop.f32.mrb[0].mxu0
          %v2726 = vadd.f32 %v2655, %v2725
          %v2727 = vpop.f32.mrb[0].mxu0
          %v2728 = vadd.f32 %v2657, %v2727
          %2729 = vdwg.mxu0
          %2730 = vmatprep.subr.mxu0 %v1822
          %2731 = vmatpush1.msra.mxu0 %v1821
          %2732 = vmatprep.subr.mxu0 %v1826
          %2733 = vmatpush1.msra.mxu0 %v1825
          %2734 = vmatprep.subr.mxu0 %v1830
          %2735 = vmatpush1.msra.mxu0 %v1829
          %2736 = vmatprep.subr.mxu0 %v1834
          %2737 = vmatpush1.msra.mxu0 %v1833
          %2738 = vmatprep.subr.mxu0 %v1838
          %2739 = vmatpush1.msra.mxu0 %v1837
          %2740 = vmatprep.subr.mxu0 %v1842
          %2741 = vmatpush1.msra.mxu0 %v1841
          %2742 = vmatprep.subr.mxu0 %v1846
          %2743 = vmatpush1.msra.mxu0 %v1845
          %2744 = vmatprep.subr.mxu0 %v1850
          %2745 = vmatpush1.msra.mxu0 %v1849
          %2746 = vmatprep.subr.mxu0 %v1854
          %2747 = vmatpush1.msra.mxu0 %v1853
          %2748 = vmatprep.subr.mxu0 %v1858
          %2749 = vmatpush1.msra.mxu0 %v1857
          %2750 = vmatprep.subr.mxu0 %v1862
          %2751 = vmatpush1.msra.mxu0 %v1861
          %2752 = vmatprep.subr.mxu0 %v1866
          %2753 = vmatpush1.msra.mxu0 %v1865
          %2754 = vmatprep.subr.mxu0 %v1870
          %2755 = vmatpush1.msra.mxu0 %v1869
          %2756 = vmatprep.subr.mxu0 %v1874
          %2757 = vmatpush1.msra.mxu0 %v1873
          %2758 = vmatprep.subr.mxu0 %v1878
          %2759 = vmatpush1.msra.mxu0 %v1877
          %2760 = vmatprep.subr.mxu0 %v1882
          %2761 = vmatpush1.msra.mxu0 %v1881
          %2762 = vmatprep.subr.mxu0 %v1886
          %2763 = vmatpush1.msra.mxu0 %v1885
          %2764 = vmatprep.subr.mxu0 %v1890
          %2765 = vmatpush1.msra.mxu0 %v1889
          %2766 = vmatprep.subr.mxu0 %v1894
          %2767 = vmatpush1.msra.mxu0 %v1893
          %2768 = vmatprep.subr.mxu0 %v1898
          %2769 = vmatpush1.msra.mxu0 %v1897
          %2770 = vmatprep.subr.mxu0 %v1902
          %2771 = vmatpush1.msra.mxu0 %v1901
          %2772 = vmatprep.subr.mxu0 %v1906
          %2773 = vmatpush1.msra.mxu0 %v1905
          %2774 = vmatprep.subr.mxu0 %v1910
          %2775 = vmatpush1.msra.mxu0 %v1909
          %2776 = vmatprep.subr.mxu0 %v1914
          %2777 = vmatpush1.msra.mxu0 %v1913
          %2778 = vmatprep.subr.mxu0 %v1918
          %2779 = vmatpush1.msra.mxu0 %v1917
          %2780 = vmatprep.subr.mxu0 %v1922
          %2781 = vmatpush1.msra.mxu0 %v1921
          %2782 = vmatprep.subr.mxu0 %v1926
          %2783 = vmatpush1.msra.mxu0 %v1925
          %2784 = vmatprep.subr.mxu0 %v1930
          %2785 = vmatpush1.msra.mxu0 %v1929
          %2786 = vmatprep.subr.mxu0 %v1934
          %2787 = vmatpush1.msra.mxu0 %v1933
          %2788 = vmatprep.subr.mxu0 %v1938
          %2789 = vmatpush1.msra.mxu0 %v1937
          %2790 = vmatprep.subr.mxu0 %v1942
          %2791 = vmatpush1.msra.mxu0 %v1941
          %2792 = vmatprep.subr.mxu0 %v1946
          %2793 = vmatpush1.msra.mxu0 %v1945
          %2794 = vmatprep.mubr.f32.mxu0 %v412
          %2795 = vmatmul.mubr.f32.gmra.mrb[0].mxu0 %v411
          %v2796 = vpop.f32.mrb[0].mxu0
          %v2797 = vadd.f32 %v2726, %v2796
          %v2798 = vpop.f32.mrb[0].mxu0
          %v2799 = vadd.f32 %v2728, %v2798
          %2800 = vdwg.mxu0
          %2801 = vmatprep.subr.mxu0 %v416
          %2802 = vmatpush1.msra.mxu0 %v415
          %2803 = vmatprep.subr.mxu0 %v420
          %2804 = vmatpush1.msra.mxu0 %v419
          %2805 = vmatprep.subr.mxu0 %v424
          %2806 = vmatpush1.msra.mxu0 %v423
          %2807 = vmatprep.subr.mxu0 %v428
          %2808 = vmatpush1.msra.mxu0 %v427
          %2809 = vmatprep.subr.mxu0 %v432
          %2810 = vmatpush1.msra.mxu0 %v431
          %2811 = vmatprep.subr.mxu0 %v436
          %2812 = vmatpush1.msra.mxu0 %v435
          %2813 = vmatprep.subr.mxu0 %v440
          %2814 = vmatpush1.msra.mxu0 %v439
          %2815 = vmatprep.subr.mxu0 %v444
          %2816 = vmatpush1.msra.mxu0 %v443
          %2817 = vmatprep.subr.mxu0 %v448
          %2818 = vmatpush1.msra.mxu0 %v447
          %2819 = vmatprep.subr.mxu0 %v452
          %2820 = vmatpush1.msra.mxu0 %v451
          %2821 = vmatprep.subr.mxu0 %v456
          %2822 = vmatpush1.msra.mxu0 %v455
          %2823 = vmatprep.subr.mxu0 %v460
          %2824 = vmatpush1.msra.mxu0 %v459
          %2825 = vmatprep.subr.mxu0 %v464
          %2826 = vmatpush1.msra.mxu0 %v463
          %2827 = vmatprep.subr.mxu0 %v468
          %2828 = vmatpush1.msra.mxu0 %v467
          %2829 = vmatprep.subr.mxu0 %v472
          %2830 = vmatpush1.msra.mxu0 %v471
          %2831 = vmatprep.subr.mxu0 %v476
          %2832 = vmatpush1.msra.mxu0 %v475
          %2833 = vmatprep.subr.mxu0 %v480
          %2834 = vmatpush1.msra.mxu0 %v479
          %2835 = vmatprep.subr.mxu0 %v484
          %2836 = vmatpush1.msra.mxu0 %v483
          %2837 = vmatprep.subr.mxu0 %v488
          %2838 = vmatpush1.msra.mxu0 %v487
          %2839 = vmatprep.subr.mxu0 %v492
          %2840 = vmatpush1.msra.mxu0 %v491
          %2841 = vmatprep.subr.mxu0 %v496
          %2842 = vmatpush1.msra.mxu0 %v495
          %2843 = vmatprep.subr.mxu0 %v500
          %2844 = vmatpush1.msra.mxu0 %v499
          %2845 = vmatprep.subr.mxu0 %v504
          %2846 = vmatpush1.msra.mxu0 %v503
          %2847 = vmatprep.subr.mxu0 %v508
          %2848 = vmatpush1.msra.mxu0 %v507
          %2849 = vmatprep.subr.mxu0 %v512
          %2850 = vmatpush1.msra.mxu0 %v511
          %2851 = vmatprep.subr.mxu0 %v516
          %2852 = vmatpush1.msra.mxu0 %v515
          %2853 = vmatprep.subr.mxu0 %v520
          %2854 = vmatpush1.msra.mxu0 %v519
          %2855 = vmatprep.subr.mxu0 %v524
          %2856 = vmatpush1.msra.mxu0 %v523
          %2857 = vmatprep.subr.mxu0 %v528
          %2858 = vmatpush1.msra.mxu0 %v527
          %2859 = vmatprep.subr.mxu0 %v532
          %2860 = vmatpush1.msra.mxu0 %v531
          %2861 = vmatprep.subr.mxu0 %v536
          %2862 = vmatpush1.msra.mxu0 %v535
          %2863 = vmatprep.subr.mxu0 %v540
          %2864 = vmatpush1.msra.mxu0 %v539
          %2865 = vmatprep.mubr.f32.mxu0 %v390
          %2866 = vmatmul.mubr.f32.gmra.mrb[0].mxu0 %v389
          %v2867 = vpop.f32.mrb[0].mxu0
          %v2868 = vadd.f32 0.0, %v2867
          %v2869 = vpop.f32.mrb[0].mxu0
          %v2870 = vadd.f32 0.0, %v2869
          %2871 = vdwg.mxu0
          %2872 = vmatprep.subr.mxu0 %v544
          %2873 = vmatpush1.msra.mxu0 %v543
          %2874 = vmatprep.subr.mxu0 %v548
          %2875 = vmatpush1.msra.mxu0 %v547
          %2876 = vmatprep.subr.mxu0 %v552
          %2877 = vmatpush1.msra.mxu0 %v551
          %2878 = vmatprep.subr.mxu0 %v556
          %2879 = vmatpush1.msra.mxu0 %v555
          %2880 = vmatprep.subr.mxu0 %v560
          %2881 = vmatpush1.msra.mxu0 %v559
          %2882 = vmatprep.subr.mxu0 %v564
          %2883 = vmatpush1.msra.mxu0 %v563
          %2884 = vmatprep.subr.mxu0 %v568
          %2885 = vmatpush1.msra.mxu0 %v567
          %2886 = vmatprep.subr.mxu0 %v572
          %2887 = vmatpush1.msra.mxu0 %v571
          %2888 = vmatprep.subr.mxu0 %v576
          %2889 = vmatpush1.msra.mxu0 %v575
          %2890 = vmatprep.subr.mxu0 %v580
          %2891 = vmatpush1.msra.mxu0 %v579
          %2892 = vmatprep.subr.mxu0 %v584
          %2893 = vmatpush1.msra.mxu0 %v583
          %2894 = vmatprep.subr.mxu0 %v588
          %2895 = vmatpush1.msra.mxu0 %v587
          %2896 = vmatprep.subr.mxu0 %v592
          %2897 = vmatpush1.msra.mxu0 %v591
          %2898 = vmatprep.subr.mxu0 %v596
          %2899 = vmatpush1.msra.mxu0 %v595
          %2900 = vmatprep.subr.mxu0 %v600
          %2901 = vmatpush1.msra.mxu0 %v599
          %2902 = vmatprep.subr.mxu0 %v604
          %2903 = vmatpush1.msra.mxu0 %v603
          %2904 = vmatprep.subr.mxu0 %v608
          %2905 = vmatpush1.msra.mxu0 %v607
          %2906 = vmatprep.subr.mxu0 %v612
          %2907 = vmatpush1.msra.mxu0 %v611
          %2908 = vmatprep.subr.mxu0 %v616
          %2909 = vmatpush1.msra.mxu0 %v615
          %2910 = vmatprep.subr.mxu0 %v620
          %2911 = vmatpush1.msra.mxu0 %v619
          %2912 = vmatprep.subr.mxu0 %v624
          %2913 = vmatpush1.msra.mxu0 %v623
          %2914 = vmatprep.subr.mxu0 %v628
          %2915 = vmatpush1.msra.mxu0 %v627
          %2916 = vmatprep.subr.mxu0 %v632
          %2917 = vmatpush1.msra.mxu0 %v631
          %2918 = vmatprep.subr.mxu0 %v636
          %2919 = vmatpush1.msra.mxu0 %v635
          %2920 = vmatprep.subr.mxu0 %v640
          %2921 = vmatpush1.msra.mxu0 %v639
          %2922 = vmatprep.subr.mxu0 %v644
          %2923 = vmatpush1.msra.mxu0 %v643
          %2924 = vmatprep.subr.mxu0 %v648
          %2925 = vmatpush1.msra.mxu0 %v647
          %2926 = vmatprep.subr.mxu0 %v652
          %2927 = vmatpush1.msra.mxu0 %v651
          %2928 = vmatprep.subr.mxu0 %v656
          %2929 = vmatpush1.msra.mxu0 %v655
          %2930 = vmatprep.subr.mxu0 %v660
          %2931 = vmatpush1.msra.mxu0 %v659
          %2932 = vmatprep.subr.mxu0 %v664
          %2933 = vmatpush1.msra.mxu0 %v663
          %2934 = vmatprep.subr.mxu0 %v668
          %2935 = vmatpush1.msra.mxu0 %v667
          %2936 = vmatprep.mubr.f32.mxu0 %v392
          %2937 = vmatmul.mubr.f32.gmra.mrb[0].mxu0 %v391
          %v2938 = vpop.f32.mrb[0].mxu0
          %v2939 = vadd.f32 %v2868, %v2938
          %v2940 = vpop.f32.mrb[0].mxu0
          %v2941 = vadd.f32 %v2870, %v2940
          %2942 = vdwg.mxu0
          %2943 = vmatprep.subr.mxu0 %v672
          %2944 = vmatpush1.msra.mxu0 %v671
          %2945 = vmatprep.subr.mxu0 %v676
          %2946 = vmatpush1.msra.mxu0 %v675
          %2947 = vmatprep.subr.mxu0 %v680
          %2948 = vmatpush1.msra.mxu0 %v679
          %2949 = vmatprep.subr.mxu0 %v684
          %2950 = vmatpush1.msra.mxu0 %v683
          %2951 = vmatprep.subr.mxu0 %v688
          %2952 = vmatpush1.msra.mxu0 %v687
          %2953 = vmatprep.subr.mxu0 %v692
          %2954 = vmatpush1.msra.mxu0 %v691
          %2955 = vmatprep.subr.mxu0 %v696
          %2956 = vmatpush1.msra.mxu0 %v695
          %2957 = vmatprep.subr.mxu0 %v700
          %2958 = vmatpush1.msra.mxu0 %v699
          %2959 = vmatprep.subr.mxu0 %v704
          %2960 = vmatpush1.msra.mxu0 %v703
          %2961 = vmatprep.subr.mxu0 %v708
          %2962 = vmatpush1.msra.mxu0 %v707
          %2963 = vmatprep.subr.mxu0 %v712
          %2964 = vmatpush1.msra.mxu0 %v711
          %2965 = vmatprep.subr.mxu0 %v716
          %2966 = vmatpush1.msra.mxu0 %v715
          %2967 = vmatprep.subr.mxu0 %v720
          %2968 = vmatpush1.msra.mxu0 %v719
          %2969 = vmatprep.subr.mxu0 %v724
          %2970 = vmatpush1.msra.mxu0 %v723
          %2971 = vmatprep.subr.mxu0 %v728
          %2972 = vmatpush1.msra.mxu0 %v727
          %2973 = vmatprep.subr.mxu0 %v732
          %2974 = vmatpush1.msra.mxu0 %v731
          %2975 = vmatprep.subr.mxu0 %v736
          %2976 = vmatpush1.msra.mxu0 %v735
          %2977 = vmatprep.subr.mxu0 %v740
          %2978 = vmatpush1.msra.mxu0 %v739
          %2979 = vmatprep.subr.mxu0 %v744
          %2980 = vmatpush1.msra.mxu0 %v743
          %2981 = vmatprep.subr.mxu0 %v748
          %2982 = vmatpush1.msra.mxu0 %v747
          %2983 = vmatprep.subr.mxu0 %v752
          %2984 = vmatpush1.msra.mxu0 %v751
          %2985 = vmatprep.subr.mxu0 %v756
          %2986 = vmatpush1.msra.mxu0 %v755
          %2987 = vmatprep.subr.mxu0 %v760
          %2988 = vmatpush1.msra.mxu0 %v759
          %2989 = vmatprep.subr.mxu0 %v764
          %2990 = vmatpush1.msra.mxu0 %v763
          %2991 = vmatprep.subr.mxu0 %v768
          %2992 = vmatpush1.msra.mxu0 %v767
          %2993 = vmatprep.subr.mxu0 %v772
          %2994 = vmatpush1.msra.mxu0 %v771
          %2995 = vmatprep.subr.mxu0 %v776
          %2996 = vmatpush1.msra.mxu0 %v775
          %2997 = vmatprep.subr.mxu0 %v780
          %2998 = vmatpush1.msra.mxu0 %v779
          %2999 = vmatprep.subr.mxu0 %v784
          %3000 = vmatpush1.msra.mxu0 %v783
          %3001 = vmatprep.subr.mxu0 %v788
          %3002 = vmatpush1.msra.mxu0 %v787
          %3003 = vmatprep.subr.mxu0 %v792
          %3004 = vmatpush1.msra.mxu0 %v791
          %3005 = vmatprep.subr.mxu0 %v796
          %3006 = vmatpush1.msra.mxu0 %v795
          %3007 = vmatprep.mubr.f32.mxu0 %v394
          %3008 = vmatmul.mubr.f32.gmra.mrb[0].mxu0 %v393
          %v3009 = vpop.f32.mrb[0].mxu0
          %v3010 = vadd.f32 %v2939, %v3009
          %v3011 = vpop.f32.mrb[0].mxu0
          %v3012 = vadd.f32 %v2941, %v3011
          %3013 = vdwg.mxu0
          %3014 = vmatprep.subr.mxu0 %v800
          %3015 = vmatpush1.msra.mxu0 %v799
          %3016 = vmatprep.subr.mxu0 %v804
          %3017 = vmatpush1.msra.mxu0 %v803
          %3018 = vmatprep.subr.mxu0 %v808
          %3019 = vmatpush1.msra.mxu0 %v807
          %3020 = vmatprep.subr.mxu0 %v812
          %3021 = vmatpush1.msra.mxu0 %v811
          %3022 = vmatprep.subr.mxu0 %v816
          %3023 = vmatpush1.msra.mxu0 %v815
          %3024 = vmatprep.subr.mxu0 %v820
          %3025 = vmatpush1.msra.mxu0 %v819
          %3026 = vmatprep.subr.mxu0 %v824
          %3027 = vmatpush1.msra.mxu0 %v823
          %3028 = vmatprep.subr.mxu0 %v828
          %3029 = vmatpush1.msra.mxu0 %v827
          %3030 = vmatprep.subr.mxu0 %v832
          %3031 = vmatpush1.msra.mxu0 %v831
          %3032 = vmatprep.subr.mxu0 %v836
          %3033 = vmatpush1.msra.mxu0 %v835
          %3034 = vmatprep.subr.mxu0 %v840
          %3035 = vmatpush1.msra.mxu0 %v839
          %3036 = vmatprep.subr.mxu0 %v844
          %3037 = vmatpush1.msra.mxu0 %v843
          %3038 = vmatprep.subr.mxu0 %v848
          %3039 = vmatpush1.msra.mxu0 %v847
          %3040 = vmatprep.subr.mxu0 %v852
          %3041 = vmatpush1.msra.mxu0 %v851
          %3042 = vmatprep.subr.mxu0 %v856
          %3043 = vmatpush1.msra.mxu0 %v855
          %3044 = vmatprep.subr.mxu0 %v860
          %3045 = vmatpush1.msra.mxu0 %v859
          %3046 = vmatprep.subr.mxu0 %v864
          %3047 = vmatpush1.msra.mxu0 %v863
          %3048 = vmatprep.subr.mxu0 %v868
          %3049 = vmatpush1.msra.mxu0 %v867
          %3050 = vmatprep.subr.mxu0 %v872
          %3051 = vmatpush1.msra.mxu0 %v871
          %3052 = vmatprep.subr.mxu0 %v876
          %3053 = vmatpush1.msra.mxu0 %v875
          %3054 = vmatprep.subr.mxu0 %v880
          %3055 = vmatpush1.msra.mxu0 %v879
          %3056 = vmatprep.subr.mxu0 %v884
          %3057 = vmatpush1.msra.mxu0 %v883
          %3058 = vmatprep.subr.mxu0 %v888
          %3059 = vmatpush1.msra.mxu0 %v887
          %3060 = vmatprep.subr.mxu0 %v892
          %3061 = vmatpush1.msra.mxu0 %v891
          %3062 = vmatprep.subr.mxu0 %v896
          %3063 = vmatpush1.msra.mxu0 %v895
          %3064 = vmatprep.subr.mxu0 %v900
          %3065 = vmatpush1.msra.mxu0 %v899
          %3066 = vmatprep.subr.mxu0 %v904
          %3067 = vmatpush1.msra.mxu0 %v903
          %3068 = vmatprep.subr.mxu0 %v908
          %3069 = vmatpush1.msra.mxu0 %v907
          %3070 = vmatprep.subr.mxu0 %v912
          %3071 = vmatpush1.msra.mxu0 %v911
          %3072 = vmatprep.subr.mxu0 %v916
          %3073 = vmatpush1.msra.mxu0 %v915
          %3074 = vmatprep.subr.mxu0 %v920
          %3075 = vmatpush1.msra.mxu0 %v919
          %3076 = vmatprep.subr.mxu0 %v924
          %3077 = vmatpush1.msra.mxu0 %v923
          %3078 = vmatprep.mubr.f32.mxu0 %v396
          %3079 = vmatmul.mubr.f32.gmra.mrb[0].mxu0 %v395
          %v3080 = vpop.f32.mrb[0].mxu0
          %v3081 = vadd.f32 %v3010, %v3080
          %v3082 = vpop.f32.mrb[0].mxu0
          %v3083 = vadd.f32 %v3012, %v3082
          %3084 = vdwg.mxu0
          %3085 = vmatprep.subr.mxu0 %v928
          %3086 = vmatpush1.msra.mxu0 %v927
          %3087 = vmatprep.subr.mxu0 %v932
          %3088 = vmatpush1.msra.mxu0 %v931
          %3089 = vmatprep.subr.mxu0 %v936
          %3090 = vmatpush1.msra.mxu0 %v935
          %3091 = vmatprep.subr.mxu0 %v940
          %3092 = vmatpush1.msra.mxu0 %v939
          %3093 = vmatprep.subr.mxu0 %v944
          %3094 = vmatpush1.msra.mxu0 %v943
          %3095 = vmatprep.subr.mxu0 %v948
          %3096 = vmatpush1.msra.mxu0 %v947
          %3097 = vmatprep.subr.mxu0 %v952
          %3098 = vmatpush1.msra.mxu0 %v951
          %3099 = vmatprep.subr.mxu0 %v956
          %3100 = vmatpush1.msra.mxu0 %v955
          %3101 = vmatprep.subr.mxu0 %v960
          %3102 = vmatpush1.msra.mxu0 %v959
          %3103 = vmatprep.subr.mxu0 %v964
          %3104 = vmatpush1.msra.mxu0 %v963
          %3105 = vmatprep.subr.mxu0 %v968
          %3106 = vmatpush1.msra.mxu0 %v967
          %3107 = vmatprep.subr.mxu0 %v972
          %3108 = vmatpush1.msra.mxu0 %v971
          %3109 = vmatprep.subr.mxu0 %v976
          %3110 = vmatpush1.msra.mxu0 %v975
          %3111 = vmatprep.subr.mxu0 %v980
          %3112 = vmatpush1.msra.mxu0 %v979
          %3113 = vmatprep.subr.mxu0 %v984
          %3114 = vmatpush1.msra.mxu0 %v983
          %3115 = vmatprep.subr.mxu0 %v988
          %3116 = vmatpush1.msra.mxu0 %v987
          %3117 = vmatprep.subr.mxu0 %v992
          %3118 = vmatpush1.msra.mxu0 %v991
          %3119 = vmatprep.subr.mxu0 %v996
          %3120 = vmatpush1.msra.mxu0 %v995
          %3121 = vmatprep.subr.mxu0 %v1000
          %3122 = vmatpush1.msra.mxu0 %v999
          %3123 = vmatprep.subr.mxu0 %v1004
          %3124 = vmatpush1.msra.mxu0 %v1003
          %3125 = vmatprep.subr.mxu0 %v1008
          %3126 = vmatpush1.msra.mxu0 %v1007
          %3127 = vmatprep.subr.mxu0 %v1012
          %3128 = vmatpush1.msra.mxu0 %v1011
          %3129 = vmatprep.subr.mxu0 %v1016
          %3130 = vmatpush1.msra.mxu0 %v1015
          %3131 = vmatprep.subr.mxu0 %v1020
          %3132 = vmatpush1.msra.mxu0 %v1019
          %3133 = vmatprep.subr.mxu0 %v1024
          %3134 = vmatpush1.msra.mxu0 %v1023
          %3135 = vmatprep.subr.mxu0 %v1028
          %3136 = vmatpush1.msra.mxu0 %v1027
          %3137 = vmatprep.subr.mxu0 %v1032
          %3138 = vmatpush1.msra.mxu0 %v1031
          %3139 = vmatprep.subr.mxu0 %v1036
          %3140 = vmatpush1.msra.mxu0 %v1035
          %3141 = vmatprep.subr.mxu0 %v1040
          %3142 = vmatpush1.msra.mxu0 %v1039
          %3143 = vmatprep.subr.mxu0 %v1044
          %3144 = vmatpush1.msra.mxu0 %v1043
          %3145 = vmatprep.subr.mxu0 %v1048
          %3146 = vmatpush1.msra.mxu0 %v1047
          %3147 = vmatprep.subr.mxu0 %v1052
          %3148 = vmatpush1.msra.mxu0 %v1051
          %3149 = vmatprep.mubr.f32.mxu0 %v398
          %3150 = vmatmul.mubr.f32.gmra.mrb[0].mxu0 %v397
          %v3151 = vpop.f32.mrb[0].mxu0
          %v3152 = vadd.f32 %v3081, %v3151
          %v3153 = vpop.f32.mrb[0].mxu0
          %v3154 = vadd.f32 %v3083, %v3153
          %3155 = vdwg.mxu0
          %3156 = vmatprep.subr.mxu0 %v1056
          %3157 = vmatpush1.msra.mxu0 %v1055
          %3158 = vmatprep.subr.mxu0 %v1060
          %3159 = vmatpush1.msra.mxu0 %v1059
          %3160 = vmatprep.subr.mxu0 %v1064
          %3161 = vmatpush1.msra.mxu0 %v1063
          %3162 = vmatprep.subr.mxu0 %v1068
          %3163 = vmatpush1.msra.mxu0 %v1067
          %3164 = vmatprep.subr.mxu0 %v1072
          %3165 = vmatpush1.msra.mxu0 %v1071
          %3166 = vmatprep.subr.mxu0 %v1076
          %3167 = vmatpush1.msra.mxu0 %v1075
          %3168 = vmatprep.subr.mxu0 %v1080
          %3169 = vmatpush1.msra.mxu0 %v1079
          %3170 = vmatprep.subr.mxu0 %v1084
          %3171 = vmatpush1.msra.mxu0 %v1083
          %3172 = vmatprep.subr.mxu0 %v1088
          %3173 = vmatpush1.msra.mxu0 %v1087
          %3174 = vmatprep.subr.mxu0 %v1092
          %3175 = vmatpush1.msra.mxu0 %v1091
          %3176 = vmatprep.subr.mxu0 %v1096
          %3177 = vmatpush1.msra.mxu0 %v1095
          %3178 = vmatprep.subr.mxu0 %v1100
          %3179 = vmatpush1.msra.mxu0 %v1099
          %3180 = vmatprep.subr.mxu0 %v1104
          %3181 = vmatpush1.msra.mxu0 %v1103
          %3182 = vmatprep.subr.mxu0 %v1108
          %3183 = vmatpush1.msra.mxu0 %v1107
          %3184 = vmatprep.subr.mxu0 %v1112
          %3185 = vmatpush1.msra.mxu0 %v1111
          %3186 = vmatprep.subr.mxu0 %v1116
          %3187 = vmatpush1.msra.mxu0 %v1115
          %3188 = vmatprep.subr.mxu0 %v1120
          %3189 = vmatpush1.msra.mxu0 %v1119
          %3190 = vmatprep.subr.mxu0 %v1124
          %3191 = vmatpush1.msra.mxu0 %v1123
          %3192 = vmatprep.subr.mxu0 %v1128
          %3193 = vmatpush1.msra.mxu0 %v1127
          %3194 = vmatprep.subr.mxu0 %v1132
          %3195 = vmatpush1.msra.mxu0 %v1131
          %3196 = vmatprep.subr.mxu0 %v1136
          %3197 = vmatpush1.msra.mxu0 %v1135
          %3198 = vmatprep.subr.mxu0 %v1140
          %3199 = vmatpush1.msra.mxu0 %v1139
          %3200 = vmatprep.subr.mxu0 %v1144
          %3201 = vmatpush1.msra.mxu0 %v1143
          %3202 = vmatprep.subr.mxu0 %v1148
          %3203 = vmatpush1.msra.mxu0 %v1147
          %3204 = vmatprep.subr.mxu0 %v1152
          %3205 = vmatpush1.msra.mxu0 %v1151
          %3206 = vmatprep.subr.mxu0 %v1156
          %3207 = vmatpush1.msra.mxu0 %v1155
          %3208 = vmatprep.subr.mxu0 %v1160
          %3209 = vmatpush1.msra.mxu0 %v1159
          %3210 = vmatprep.subr.mxu0 %v1164
          %3211 = vmatpush1.msra.mxu0 %v1163
          %3212 = vmatprep.subr.mxu0 %v1168
          %3213 = vmatpush1.msra.mxu0 %v1167
          %3214 = vmatprep.subr.mxu0 %v1172
          %3215 = vmatpush1.msra.mxu0 %v1171
          %3216 = vmatprep.subr.mxu0 %v1176
          %3217 = vmatpush1.msra.mxu0 %v1175
          %3218 = vmatprep.subr.mxu0 %v1180
          %3219 = vmatpush1.msra.mxu0 %v1179
          %3220 = vmatprep.mubr.f32.mxu0 %v400
          %3221 = vmatmul.mubr.f32.gmra.mrb[0].mxu0 %v399
          %v3222 = vpop.f32.mrb[0].mxu0
          %v3223 = vadd.f32 %v3152, %v3222
          %v3224 = vpop.f32.mrb[0].mxu0
          %v3225 = vadd.f32 %v3154, %v3224
          %3226 = vdwg.mxu0
          %3227 = vmatprep.subr.mxu0 %v1184
          %3228 = vmatpush1.msra.mxu0 %v1183
          %3229 = vmatprep.subr.mxu0 %v1188
          %3230 = vmatpush1.msra.mxu0 %v1187
          %3231 = vmatprep.subr.mxu0 %v1192
          %3232 = vmatpush1.msra.mxu0 %v1191
          %3233 = vmatprep.subr.mxu0 %v1196
          %3234 = vmatpush1.msra.mxu0 %v1195
          %3235 = vmatprep.subr.mxu0 %v1200
          %3236 = vmatpush1.msra.mxu0 %v1199
          %3237 = vmatprep.subr.mxu0 %v1204
          %3238 = vmatpush1.msra.mxu0 %v1203
          %3239 = vmatprep.subr.mxu0 %v1208
          %3240 = vmatpush1.msra.mxu0 %v1207
          %3241 = vmatprep.subr.mxu0 %v1212
          %3242 = vmatpush1.msra.mxu0 %v1211
          %3243 = vmatprep.subr.mxu0 %v1216
          %3244 = vmatpush1.msra.mxu0 %v1215
          %3245 = vmatprep.subr.mxu0 %v1220
          %3246 = vmatpush1.msra.mxu0 %v1219
          %3247 = vmatprep.subr.mxu0 %v1224
          %3248 = vmatpush1.msra.mxu0 %v1223
          %3249 = vmatprep.subr.mxu0 %v1228
          %3250 = vmatpush1.msra.mxu0 %v1227
          %3251 = vmatprep.subr.mxu0 %v1232
          %3252 = vmatpush1.msra.mxu0 %v1231
          %3253 = vmatprep.subr.mxu0 %v1236
          %3254 = vmatpush1.msra.mxu0 %v1235
          %3255 = vmatprep.subr.mxu0 %v1240
          %3256 = vmatpush1.msra.mxu0 %v1239
          %3257 = vmatprep.subr.mxu0 %v1244
          %3258 = vmatpush1.msra.mxu0 %v1243
          %3259 = vmatprep.subr.mxu0 %v1248
          %3260 = vmatpush1.msra.mxu0 %v1247
          %3261 = vmatprep.subr.mxu0 %v1252
          %3262 = vmatpush1.msra.mxu0 %v1251
          %3263 = vmatprep.subr.mxu0 %v1256
          %3264 = vmatpush1.msra.mxu0 %v1255
          %3265 = vmatprep.subr.mxu0 %v1260
          %3266 = vmatpush1.msra.mxu0 %v1259
          %3267 = vmatprep.subr.mxu0 %v1264
          %3268 = vmatpush1.msra.mxu0 %v1263
          %3269 = vmatprep.subr.mxu0 %v1268
          %3270 = vmatpush1.msra.mxu0 %v1267
          %3271 = vmatprep.subr.mxu0 %v1272
          %3272 = vmatpush1.msra.mxu0 %v1271
          %3273 = vmatprep.subr.mxu0 %v1276
          %3274 = vmatpush1.msra.mxu0 %v1275
          %3275 = vmatprep.subr.mxu0 %v1280
          %3276 = vmatpush1.msra.mxu0 %v1279
          %3277 = vmatprep.subr.mxu0 %v1284
          %3278 = vmatpush1.msra.mxu0 %v1283
          %3279 = vmatprep.subr.mxu0 %v1288
          %3280 = vmatpush1.msra.mxu0 %v1287
          %3281 = vmatprep.subr.mxu0 %v1292
          %3282 = vmatpush1.msra.mxu0 %v1291
          %3283 = vmatprep.subr.mxu0 %v1296
          %3284 = vmatpush1.msra.mxu0 %v1295
          %3285 = vmatprep.subr.mxu0 %v1300
          %3286 = vmatpush1.msra.mxu0 %v1299
          %3287 = vmatprep.subr.mxu0 %v1304
          %3288 = vmatpush1.msra.mxu0 %v1303
          %3289 = vmatprep.subr.mxu0 %v1308
          %3290 = vmatpush1.msra.mxu0 %v1307
          %3291 = vmatprep.mubr.f32.mxu0 %v402
          %3292 = vmatmul.mubr.f32.gmra.mrb[0].mxu0 %v401
          %v3293 = vpop.f32.mrb[0].mxu0
          %v3294 = vadd.f32 %v3223, %v3293
          %v3295 = vpop.f32.mrb[0].mxu0
          %v3296 = vadd.f32 %v3225, %v3295
          %3297 = vdwg.mxu0
          %3298 = vmatprep.subr.mxu0 %v1312
          %3299 = vmatpush1.msra.mxu0 %v1311
          %3300 = vmatprep.subr.mxu0 %v1316
          %3301 = vmatpush1.msra.mxu0 %v1315
          %3302 = vmatprep.subr.mxu0 %v1320
          %3303 = vmatpush1.msra.mxu0 %v1319
          %3304 = vmatprep.subr.mxu0 %v1324
          %3305 = vmatpush1.msra.mxu0 %v1323
          %3306 = vmatprep.subr.mxu0 %v1328
          %3307 = vmatpush1.msra.mxu0 %v1327
          %3308 = vmatprep.subr.mxu0 %v1332
          %3309 = vmatpush1.msra.mxu0 %v1331
          %3310 = vmatprep.subr.mxu0 %v1336
          %3311 = vmatpush1.msra.mxu0 %v1335
          %3312 = vmatprep.subr.mxu0 %v1340
          %3313 = vmatpush1.msra.mxu0 %v1339
          %3314 = vmatprep.subr.mxu0 %v1344
          %3315 = vmatpush1.msra.mxu0 %v1343
          %3316 = vmatprep.subr.mxu0 %v1348
          %3317 = vmatpush1.msra.mxu0 %v1347
          %3318 = vmatprep.subr.mxu0 %v1352
          %3319 = vmatpush1.msra.mxu0 %v1351
          %3320 = vmatprep.subr.mxu0 %v1356
          %3321 = vmatpush1.msra.mxu0 %v1355
          %3322 = vmatprep.subr.mxu0 %v1360
          %3323 = vmatpush1.msra.mxu0 %v1359
          %3324 = vmatprep.subr.mxu0 %v1364
          %3325 = vmatpush1.msra.mxu0 %v1363
          %3326 = vmatprep.subr.mxu0 %v1368
          %3327 = vmatpush1.msra.mxu0 %v1367
          %3328 = vmatprep.subr.mxu0 %v1372
          %3329 = vmatpush1.msra.mxu0 %v1371
          %3330 = vmatprep.subr.mxu0 %v1376
          %3331 = vmatpush1.msra.mxu0 %v1375
          %3332 = vmatprep.subr.mxu0 %v1380
          %3333 = vmatpush1.msra.mxu0 %v1379
          %3334 = vmatprep.subr.mxu0 %v1384
          %3335 = vmatpush1.msra.mxu0 %v1383
          %3336 = vmatprep.subr.mxu0 %v1388
          %3337 = vmatpush1.msra.mxu0 %v1387
          %3338 = vmatprep.subr.mxu0 %v1392
          %3339 = vmatpush1.msra.mxu0 %v1391
          %3340 = vmatprep.subr.mxu0 %v1396
          %3341 = vmatpush1.msra.mxu0 %v1395
          %3342 = vmatprep.subr.mxu0 %v1400
          %3343 = vmatpush1.msra.mxu0 %v1399
          %3344 = vmatprep.subr.mxu0 %v1404
          %3345 = vmatpush1.msra.mxu0 %v1403
          %3346 = vmatprep.subr.mxu0 %v1408
          %3347 = vmatpush1.msra.mxu0 %v1407
          %3348 = vmatprep.subr.mxu0 %v1412
          %3349 = vmatpush1.msra.mxu0 %v1411
          %3350 = vmatprep.subr.mxu0 %v1416
          %3351 = vmatpush1.msra.mxu0 %v1415
          %3352 = vmatprep.subr.mxu0 %v1420
          %3353 = vmatpush1.msra.mxu0 %v1419
          %3354 = vmatprep.subr.mxu0 %v1424
          %3355 = vmatpush1.msra.mxu0 %v1423
          %3356 = vmatprep.subr.mxu0 %v1428
          %3357 = vmatpush1.msra.mxu0 %v1427
          %3358 = vmatprep.subr.mxu0 %v1432
          %3359 = vmatpush1.msra.mxu0 %v1431
          %3360 = vmatprep.subr.mxu0 %v1436
          %3361 = vmatpush1.msra.mxu0 %v1435
          %3362 = vmatprep.mubr.f32.mxu0 %v404
          %3363 = vmatmul.mubr.f32.gmra.mrb[0].mxu0 %v403
          %v3364 = vpop.f32.mrb[0].mxu0
          %v3365 = vadd.f32 %v3294, %v3364
          %v3366 = vpop.f32.mrb[0].mxu0
          %v3367 = vadd.f32 %v3296, %v3366
          %3368 = vdwg.mxu0
          %3369 = vmatprep.subr.mxu0 %v1440
          %3370 = vmatpush1.msra.mxu0 %v1439
          %3371 = vmatprep.subr.mxu0 %v1444
          %3372 = vmatpush1.msra.mxu0 %v1443
          %3373 = vmatprep.subr.mxu0 %v1448
          %3374 = vmatpush1.msra.mxu0 %v1447
          %3375 = vmatprep.subr.mxu0 %v1452
          %3376 = vmatpush1.msra.mxu0 %v1451
          %3377 = vmatprep.subr.mxu0 %v1456
          %3378 = vmatpush1.msra.mxu0 %v1455
          %3379 = vmatprep.subr.mxu0 %v1460
          %3380 = vmatpush1.msra.mxu0 %v1459
          %3381 = vmatprep.subr.mxu0 %v1464
          %3382 = vmatpush1.msra.mxu0 %v1463
          %3383 = vmatprep.subr.mxu0 %v1468
          %3384 = vmatpush1.msra.mxu0 %v1467
          %3385 = vmatprep.subr.mxu0 %v1472
          %3386 = vmatpush1.msra.mxu0 %v1471
          %3387 = vmatprep.subr.mxu0 %v1476
          %3388 = vmatpush1.msra.mxu0 %v1475
          %3389 = vmatprep.subr.mxu0 %v1480
          %3390 = vmatpush1.msra.mxu0 %v1479
          %3391 = vmatprep.subr.mxu0 %v1484
          %3392 = vmatpush1.msra.mxu0 %v1483
          %3393 = vmatprep.subr.mxu0 %v1488
          %3394 = vmatpush1.msra.mxu0 %v1487
          %3395 = vmatprep.subr.mxu0 %v1492
          %3396 = vmatpush1.msra.mxu0 %v1491
          %3397 = vmatprep.subr.mxu0 %v1496
          %3398 = vmatpush1.msra.mxu0 %v1495
          %3399 = vmatprep.subr.mxu0 %v1500
          %3400 = vmatpush1.msra.mxu0 %v1499
          %3401 = vmatprep.subr.mxu0 %v1504
          %3402 = vmatpush1.msra.mxu0 %v1503
          %3403 = vmatprep.subr.mxu0 %v1508
          %3404 = vmatpush1.msra.mxu0 %v1507
          %3405 = vmatprep.subr.mxu0 %v1512
          %3406 = vmatpush1.msra.mxu0 %v1511
          %3407 = vmatprep.subr.mxu0 %v1516
          %3408 = vmatpush1.msra.mxu0 %v1515
          %3409 = vmatprep.subr.mxu0 %v1520
          %3410 = vmatpush1.msra.mxu0 %v1519
          %3411 = vmatprep.subr.mxu0 %v1524
          %3412 = vmatpush1.msra.mxu0 %v1523
          %3413 = vmatprep.subr.mxu0 %v1528
          %3414 = vmatpush1.msra.mxu0 %v1527
          %3415 = vmatprep.subr.mxu0 %v1532
          %3416 = vmatpush1.msra.mxu0 %v1531
          %3417 = vmatprep.subr.mxu0 %v1536
          %3418 = vmatpush1.msra.mxu0 %v1535
          %3419 = vmatprep.subr.mxu0 %v1540
          %3420 = vmatpush1.msra.mxu0 %v1539
          %3421 = vmatprep.subr.mxu0 %v1544
          %3422 = vmatpush1.msra.mxu0 %v1543
          %3423 = vmatprep.subr.mxu0 %v1548
          %3424 = vmatpush1.msra.mxu0 %v1547
          %3425 = vmatprep.subr.mxu0 %v1552
          %3426 = vmatpush1.msra.mxu0 %v1551
          %3427 = vmatprep.subr.mxu0 %v1556
          %3428 = vmatpush1.msra.mxu0 %v1555
          %3429 = vmatprep.subr.mxu0 %v1560
          %3430 = vmatpush1.msra.mxu0 %v1559
          %3431 = vmatprep.subr.mxu0 %v1564
          %3432 = vmatpush1.msra.mxu0 %v1563
          %3433 = vmatprep.mubr.f32.mxu0 %v406
          %3434 = vmatmul.mubr.f32.gmra.mrb[0].mxu0 %v405
          %v3435 = vpop.f32.mrb[0].mxu0
          %v3436 = vadd.f32 %v3365, %v3435
          %v3437 = vpop.f32.mrb[0].mxu0
          %v3438 = vadd.f32 %v3367, %v3437
          %3439 = vdwg.mxu0
          %3440 = vmatprep.subr.mxu0 %v1568
          %3441 = vmatpush1.msra.mxu0 %v1567
          %3442 = vmatprep.subr.mxu0 %v1572
          %3443 = vmatpush1.msra.mxu0 %v1571
          %3444 = vmatprep.subr.mxu0 %v1576
          %3445 = vmatpush1.msra.mxu0 %v1575
          %3446 = vmatprep.subr.mxu0 %v1580
          %3447 = vmatpush1.msra.mxu0 %v1579
          %3448 = vmatprep.subr.mxu0 %v1584
          %3449 = vmatpush1.msra.mxu0 %v1583
          %3450 = vmatprep.subr.mxu0 %v1588
          %3451 = vmatpush1.msra.mxu0 %v1587
          %3452 = vmatprep.subr.mxu0 %v1592
          %3453 = vmatpush1.msra.mxu0 %v1591
          %3454 = vmatprep.subr.mxu0 %v1596
          %3455 = vmatpush1.msra.mxu0 %v1595
          %3456 = vmatprep.subr.mxu0 %v1600
          %3457 = vmatpush1.msra.mxu0 %v1599
          %3458 = vmatprep.subr.mxu0 %v1604
          %3459 = vmatpush1.msra.mxu0 %v1603
          %3460 = vmatprep.subr.mxu0 %v1608
          %3461 = vmatpush1.msra.mxu0 %v1607
          %3462 = vmatprep.subr.mxu0 %v1612
          %3463 = vmatpush1.msra.mxu0 %v1611
          %3464 = vmatprep.subr.mxu0 %v1616
          %3465 = vmatpush1.msra.mxu0 %v1615
          %3466 = vmatprep.subr.mxu0 %v1620
          %3467 = vmatpush1.msra.mxu0 %v1619
          %3468 = vmatprep.subr.mxu0 %v1624
          %3469 = vmatpush1.msra.mxu0 %v1623
          %3470 = vmatprep.subr.mxu0 %v1628
          %3471 = vmatpush1.msra.mxu0 %v1627
          %3472 = vmatprep.subr.mxu0 %v1632
          %3473 = vmatpush1.msra.mxu0 %v1631
          %3474 = vmatprep.subr.mxu0 %v1636
          %3475 = vmatpush1.msra.mxu0 %v1635
          %3476 = vmatprep.subr.mxu0 %v1640
          %3477 = vmatpush1.msra.mxu0 %v1639
          %3478 = vmatprep.subr.mxu0 %v1644
          %3479 = vmatpush1.msra.mxu0 %v1643
          %3480 = vmatprep.subr.mxu0 %v1648
          %3481 = vmatpush1.msra.mxu0 %v1647
          %3482 = vmatprep.subr.mxu0 %v1652
          %3483 = vmatpush1.msra.mxu0 %v1651
          %3484 = vmatprep.subr.mxu0 %v1656
          %3485 = vmatpush1.msra.mxu0 %v1655
          %3486 = vmatprep.subr.mxu0 %v1660
          %3487 = vmatpush1.msra.mxu0 %v1659
          %3488 = vmatprep.subr.mxu0 %v1664
          %3489 = vmatpush1.msra.mxu0 %v1663
          %3490 = vmatprep.subr.mxu0 %v1668
          %3491 = vmatpush1.msra.mxu0 %v1667
          %3492 = vmatprep.subr.mxu0 %v1672
          %3493 = vmatpush1.msra.mxu0 %v1671
          %3494 = vmatprep.subr.mxu0 %v1676
          %3495 = vmatpush1.msra.mxu0 %v1675
          %3496 = vmatprep.subr.mxu0 %v1680
          %3497 = vmatpush1.msra.mxu0 %v1679
          %3498 = vmatprep.subr.mxu0 %v1684
          %3499 = vmatpush1.msra.mxu0 %v1683
          %3500 = vmatprep.subr.mxu0 %v1688
          %3501 = vmatpush1.msra.mxu0 %v1687
          %3502 = vmatprep.subr.mxu0 %v1692
          %3503 = vmatpush1.msra.mxu0 %v1691
          %3504 = vmatprep.mubr.f32.mxu0 %v408
          %3505 = vmatmul.mubr.f32.gmra.mrb[0].mxu0 %v407
          %v3506 = vpop.f32.mrb[0].mxu0
          %v3507 = vadd.f32 %v3436, %v3506
          %v3508 = vpop.f32.mrb[0].mxu0
          %v3509 = vadd.f32 %v3438, %v3508
          %3510 = vdwg.mxu0
          %3511 = vmatprep.subr.mxu0 %v1696
          %3512 = vmatpush1.msra.mxu0 %v1695
          %3513 = vmatprep.subr.mxu0 %v1700
          %3514 = vmatpush1.msra.mxu0 %v1699
          %3515 = vmatprep.subr.mxu0 %v1704
          %3516 = vmatpush1.msra.mxu0 %v1703
          %3517 = vmatprep.subr.mxu0 %v1708
          %3518 = vmatpush1.msra.mxu0 %v1707
          %3519 = vmatprep.subr.mxu0 %v1712
          %3520 = vmatpush1.msra.mxu0 %v1711
          %3521 = vmatprep.subr.mxu0 %v1716
          %3522 = vmatpush1.msra.mxu0 %v1715
          %3523 = vmatprep.subr.mxu0 %v1720
          %3524 = vmatpush1.msra.mxu0 %v1719
          %3525 = vmatprep.subr.mxu0 %v1724
          %3526 = vmatpush1.msra.mxu0 %v1723
          %3527 = vmatprep.subr.mxu0 %v1728
          %3528 = vmatpush1.msra.mxu0 %v1727
          %3529 = vmatprep.subr.mxu0 %v1732
          %3530 = vmatpush1.msra.mxu0 %v1731
          %3531 = vmatprep.subr.mxu0 %v1736
          %3532 = vmatpush1.msra.mxu0 %v1735
          %3533 = vmatprep.subr.mxu0 %v1740
          %3534 = vmatpush1.msra.mxu0 %v1739
          %3535 = vmatprep.subr.mxu0 %v1744
          %3536 = vmatpush1.msra.mxu0 %v1743
          %3537 = vmatprep.subr.mxu0 %v1748
          %3538 = vmatpush1.msra.mxu0 %v1747
          %3539 = vmatprep.subr.mxu0 %v1752
          %3540 = vmatpush1.msra.mxu0 %v1751
          %3541 = vmatprep.subr.mxu0 %v1756
          %3542 = vmatpush1.msra.mxu0 %v1755
          %3543 = vmatprep.subr.mxu0 %v1760
          %3544 = vmatpush1.msra.mxu0 %v1759
          %3545 = vmatprep.subr.mxu0 %v1764
          %3546 = vmatpush1.msra.mxu0 %v1763
          %3547 = vmatprep.subr.mxu0 %v1768
          %3548 = vmatpush1.msra.mxu0 %v1767
          %3549 = vmatprep.subr.mxu0 %v1772
          %3550 = vmatpush1.msra.mxu0 %v1771
          %3551 = vmatprep.subr.mxu0 %v1776
          %3552 = vmatpush1.msra.mxu0 %v1775
          %3553 = vmatprep.subr.mxu0 %v1780
          %3554 = vmatpush1.msra.mxu0 %v1779
          %3555 = vmatprep.subr.mxu0 %v1784
          %3556 = vmatpush1.msra.mxu0 %v1783
          %3557 = vmatprep.subr.mxu0 %v1788
          %3558 = vmatpush1.msra.mxu0 %v1787
          %3559 = vmatprep.subr.mxu0 %v1792
          %3560 = vmatpush1.msra.mxu0 %v1791
          %3561 = vmatprep.subr.mxu0 %v1796
          %3562 = vmatpush1.msra.mxu0 %v1795
          %3563 = vmatprep.subr.mxu0 %v1800
          %3564 = vmatpush1.msra.mxu0 %v1799
          %3565 = vmatprep.subr.mxu0 %v1804
          %3566 = vmatpush1.msra.mxu0 %v1803
          %3567 = vmatprep.subr.mxu0 %v1808
          %3568 = vmatpush1.msra.mxu0 %v1807
          %3569 = vmatprep.subr.mxu0 %v1812
          %3570 = vmatpush1.msra.mxu0 %v1811
          %3571 = vmatprep.subr.mxu0 %v1816
          %3572 = vmatpush1.msra.mxu0 %v1815
          %3573 = vmatprep.subr.mxu0 %v1820
          %3574 = vmatpush1.msra.mxu0 %v1819
          %3575 = vmatprep.mubr.f32.mxu0 %v410
          %3576 = vmatmul.mubr.f32.gmra.mrb[0].mxu0 %v409
          %v3577 = vpop.f32.mrb[0].mxu0
          %v3578 = vadd.f32 %v3507, %v3577
          %v3579 = vpop.f32.mrb[0].mxu0
          %v3580 = vadd.f32 %v3509, %v3579
          %3581 = vdwg.mxu0
          %3582 = vmatprep.subr.mxu0 %v1824
          %3583 = vmatpush1.msra.mxu0 %v1823
          %3584 = vmatprep.subr.mxu0 %v1828
          %3585 = vmatpush1.msra.mxu0 %v1827
          %3586 = vmatprep.subr.mxu0 %v1832
          %3587 = vmatpush1.msra.mxu0 %v1831
          %3588 = vmatprep.subr.mxu0 %v1836
          %3589 = vmatpush1.msra.mxu0 %v1835
          %3590 = vmatprep.subr.mxu0 %v1840
          %3591 = vmatpush1.msra.mxu0 %v1839
          %3592 = vmatprep.subr.mxu0 %v1844
          %3593 = vmatpush1.msra.mxu0 %v1843
          %3594 = vmatprep.subr.mxu0 %v1848
          %3595 = vmatpush1.msra.mxu0 %v1847
          %3596 = vmatprep.subr.mxu0 %v1852
          %3597 = vmatpush1.msra.mxu0 %v1851
          %3598 = vmatprep.subr.mxu0 %v1856
          %3599 = vmatpush1.msra.mxu0 %v1855
          %3600 = vmatprep.subr.mxu0 %v1860
          %3601 = vmatpush1.msra.mxu0 %v1859
          %3602 = vmatprep.subr.mxu0 %v1864
          %3603 = vmatpush1.msra.mxu0 %v1863
          %3604 = vmatprep.subr.mxu0 %v1868
          %3605 = vmatpush1.msra.mxu0 %v1867
          %3606 = vmatprep.subr.mxu0 %v1872
          %3607 = vmatpush1.msra.mxu0 %v1871
          %3608 = vmatprep.subr.mxu0 %v1876
          %3609 = vmatpush1.msra.mxu0 %v1875
          %3610 = vmatprep.subr.mxu0 %v1880
          %3611 = vmatpush1.msra.mxu0 %v1879
          %3612 = vmatprep.subr.mxu0 %v1884
          %3613 = vmatpush1.msra.mxu0 %v1883
          %3614 = vmatprep.subr.mxu0 %v1888
          %3615 = vmatpush1.msra.mxu0 %v1887
          %3616 = vmatprep.subr.mxu0 %v1892
          %3617 = vmatpush1.msra.mxu0 %v1891
          %3618 = vmatprep.subr.mxu0 %v1896
          %3619 = vmatpush1.msra.mxu0 %v1895
          %3620 = vmatprep.subr.mxu0 %v1900
          %3621 = vmatpush1.msra.mxu0 %v1899
          %3622 = vmatprep.subr.mxu0 %v1904
          %3623 = vmatpush1.msra.mxu0 %v1903
          %3624 = vmatprep.subr.mxu0 %v1908
          %3625 = vmatpush1.msra.mxu0 %v1907
          %3626 = vmatprep.subr.mxu0 %v1912
          %3627 = vmatpush1.msra.mxu0 %v1911
          %3628 = vmatprep.subr.mxu0 %v1916
          %3629 = vmatpush1.msra.mxu0 %v1915
          %3630 = vmatprep.subr.mxu0 %v1920
          %3631 = vmatpush1.msra.mxu0 %v1919
          %3632 = vmatprep.subr.mxu0 %v1924
          %3633 = vmatpush1.msra.mxu0 %v1923
          %3634 = vmatprep.subr.mxu0 %v1928
          %3635 = vmatpush1.msra.mxu0 %v1927
          %3636 = vmatprep.subr.mxu0 %v1932
          %3637 = vmatpush1.msra.mxu0 %v1931
          %3638 = vmatprep.subr.mxu0 %v1936
          %3639 = vmatpush1.msra.mxu0 %v1935
          %3640 = vmatprep.subr.mxu0 %v1940
          %3641 = vmatpush1.msra.mxu0 %v1939
          %3642 = vmatprep.subr.mxu0 %v1944
          %3643 = vmatpush1.msra.mxu0 %v1943
          %3644 = vmatprep.subr.mxu0 %v1948
          %3645 = vmatpush1.msra.mxu0 %v1947
          %3646 = vmatprep.mubr.f32.mxu0 %v412
          %3647 = vmatmul.mubr.f32.gmra.mrb[0].mxu0 %v411
          %v3648 = vpop.f32.mrb[0].mxu0
          %v3649 = vadd.f32 %v3578, %v3648
          %v3650 = vpop.f32.mrb[0].mxu0
          %v3651 = vadd.f32 %v3580, %v3650
          %3652 = vdwg.mxu0
          %v3653 = vld [vmem:[%s2] sm:$0xff]
          %v3654 = vld [vmem:[%s2 + $0x8] sm:$0xff]
          %v3655 = vld [vmem:[%s2 + $0x10] sm:$0xff]
          %v3656 = vld [vmem:[%s2 + $0x18] sm:$0xff]
          %v3657 = vld [vmem:[%s2 + $0x20] sm:$0xff]
          %v3658 = vld [vmem:[%s2 + $0x28] sm:$0xff]
          %v3659 = vld [vmem:[%s2 + $0x30] sm:$0xff]
          %v3660 = vld [vmem:[%s2 + $0x38] sm:$0xff]
          %v3661 = vld [vmem:[%s2 + $0x40] sm:$0xff]
          %v3662 = vld [vmem:[%s2 + $0x48] sm:$0xff]
          %v3663 = vld [vmem:[%s2 + $0x50] sm:$0xff]
          %v3664 = vld [vmem:[%s2 + $0x58] sm:$0xff]
          %v3665 = vld [vmem:[%s2 + $0x60] sm:$0xff]
          %v3666 = vld [vmem:[%s2 + $0x68] sm:$0xff]
          %v3667 = vld [vmem:[%s2 + $0x70] sm:$0xff]
          %v3668 = vld [vmem:[%s2 + $0x78] sm:$0xff]
          %v3669 = vld [vmem:[%s2 + $0x80] sm:$0xff]
          %v3670 = vld [vmem:[%s2 + $0x88] sm:$0xff]
          %v3671 = vld [vmem:[%s2 + $0x90] sm:$0xff]
          %v3672 = vld [vmem:[%s2 + $0x98] sm:$0xff]
          %v3673 = vld [vmem:[%s2 + $0xa0] sm:$0xff]
          %v3674 = vld [vmem:[%s2 + $0xa8] sm:$0xff]
          %v3675 = vld [vmem:[%s2 + $0xb0] sm:$0xff]
          %v3676 = vld [vmem:[%s2 + $0xb8] sm:$0xff]
          %v3677 = vld [vmem:[%s2 + $0xc0] sm:$0xff]
          %v3678 = vld [vmem:[%s2 + $0xc8] sm:$0xff]
          %v3679 = vld [vmem:[%s2 + $0xd0] sm:$0xff]
          %v3680 = vld [vmem:[%s2 + $0xd8] sm:$0xff]
          %v3681 = vld [vmem:[%s2 + $0xe0] sm:$0xff]
          %v3682 = vld [vmem:[%s2 + $0xe8] sm:$0xff]
          %v3683 = vld [vmem:[%s2 + $0xf0] sm:$0xff]
          %v3684 = vld [vmem:[%s2 + $0xf8] sm:$0xff]
          %v3685 = vld [vmem:[%s2 + $0x100] sm:$0xff]
          %v3686 = vld [vmem:[%s2 + $0x108] sm:$0xff]
          %v3687 = vld [vmem:[%s2 + $0x110] sm:$0xff]
          %v3688 = vld [vmem:[%s2 + $0x118] sm:$0xff]
          %v3689 = vld [vmem:[%s2 + $0x120] sm:$0xff]
          %v3690 = vld [vmem:[%s2 + $0x128] sm:$0xff]
          %v3691 = vld [vmem:[%s2 + $0x130] sm:$0xff]
          %v3692 = vld [vmem:[%s2 + $0x138] sm:$0xff]
          %v3693 = vld [vmem:[%s2 + $0x140] sm:$0xff]
          %v3694 = vld [vmem:[%s2 + $0x148] sm:$0xff]
          %v3695 = vld [vmem:[%s2 + $0x150] sm:$0xff]
          %v3696 = vld [vmem:[%s2 + $0x158] sm:$0xff]
          %v3697 = vld [vmem:[%s2 + $0x160] sm:$0xff]
          %v3698 = vld [vmem:[%s2 + $0x168] sm:$0xff]
          %v3699 = vld [vmem:[%s2 + $0x170] sm:$0xff]
          %v3700 = vld [vmem:[%s2 + $0x178] sm:$0xff]
          %v3701 = vld [vmem:[%s2 + $0x180] sm:$0xff]
          %v3702 = vld [vmem:[%s2 + $0x188] sm:$0xff]
          %v3703 = vld [vmem:[%s2 + $0x190] sm:$0xff]
          %v3704 = vld [vmem:[%s2 + $0x198] sm:$0xff]
          %v3705 = vld [vmem:[%s2 + $0x1a0] sm:$0xff]
          %v3706 = vld [vmem:[%s2 + $0x1a8] sm:$0xff]
          %v3707 = vld [vmem:[%s2 + $0x1b0] sm:$0xff]
          %v3708 = vld [vmem:[%s2 + $0x1b8] sm:$0xff]
          %v3709 = vld [vmem:[%s2 + $0x1c0] sm:$0xff]
          %v3710 = vld [vmem:[%s2 + $0x1c8] sm:$0xff]
          %v3711 = vld [vmem:[%s2 + $0x1d0] sm:$0xff]
          %v3712 = vld [vmem:[%s2 + $0x1d8] sm:$0xff]
          %v3713 = vld [vmem:[%s2 + $0x1e0] sm:$0xff]
          %v3714 = vld [vmem:[%s2 + $0x1e8] sm:$0xff]
          %v3715 = vld [vmem:[%s2 + $0x1f0] sm:$0xff]
          %v3716 = vld [vmem:[%s2 + $0x1f8] sm:$0xff]
          %v3717 = vld [vmem:[%s3] sm:$0x1]
          %v3719 = vlaneseq
          %v3720 = vshrl.u32 %v3719, 7
          %v3721 = vsub.s32 0, %v3720
          %v3722 = vrot.slane %v3717, %v3721
          %3724 = vmatprep.subr.mxu0 0.0
          %3725 = vmatpush1.msra.mxu0 %v3653
          %3726 = vmatprep.subr.mxu0 0.0
          %3727 = vmatpush1.msra.mxu0 %v3654
          %3728 = vmatprep.subr.mxu0 0.0
          %3729 = vmatpush1.msra.mxu0 %v3655
          %3730 = vmatprep.subr.mxu0 0.0
          %3731 = vmatpush1.msra.mxu0 %v3656
          %3732 = vmatprep.subr.mxu0 0.0
          %3733 = vmatpush1.msra.mxu0 %v3657
          %3734 = vmatprep.subr.mxu0 0.0
          %3735 = vmatpush1.msra.mxu0 %v3658
          %3736 = vmatprep.subr.mxu0 0.0
          %3737 = vmatpush1.msra.mxu0 %v3659
          %3738 = vmatprep.subr.mxu0 0.0
          %3739 = vmatpush1.msra.mxu0 %v3660
          %3740 = vmatprep.subr.mxu0 0.0
          %3741 = vmatpush1.msra.mxu0 %v3661
          %3742 = vmatprep.subr.mxu0 0.0
          %3743 = vmatpush1.msra.mxu0 %v3662
          %3744 = vmatprep.subr.mxu0 0.0
          %3745 = vmatpush1.msra.mxu0 %v3663
          %3746 = vmatprep.subr.mxu0 0.0
          %3747 = vmatpush1.msra.mxu0 %v3664
          %3748 = vmatprep.subr.mxu0 0.0
          %3749 = vmatpush1.msra.mxu0 %v3665
          %3750 = vmatprep.subr.mxu0 0.0
          %3751 = vmatpush1.msra.mxu0 %v3666
          %3752 = vmatprep.subr.mxu0 0.0
          %3753 = vmatpush1.msra.mxu0 %v3667
          %3754 = vmatprep.subr.mxu0 0.0
          %3755 = vmatpush1.msra.mxu0 %v3668
          %3756 = vmatprep.subr.mxu0 0.0
          %3757 = vmatpush1.msra.mxu0 %v3669
          %3758 = vmatprep.subr.mxu0 0.0
          %3759 = vmatpush1.msra.mxu0 %v3670
          %3760 = vmatprep.subr.mxu0 0.0
          %3761 = vmatpush1.msra.mxu0 %v3671
          %3762 = vmatprep.subr.mxu0 0.0
          %3763 = vmatpush1.msra.mxu0 %v3672
          %3764 = vmatprep.subr.mxu0 0.0
          %3765 = vmatpush1.msra.mxu0 %v3673
          %3766 = vmatprep.subr.mxu0 0.0
          %3767 = vmatpush1.msra.mxu0 %v3674
          %3768 = vmatprep.subr.mxu0 0.0
          %3769 = vmatpush1.msra.mxu0 %v3675
          %3770 = vmatprep.subr.mxu0 0.0
          %3771 = vmatpush1.msra.mxu0 %v3676
          %3772 = vmatprep.subr.mxu0 0.0
          %3773 = vmatpush1.msra.mxu0 %v3677
          %3774 = vmatprep.subr.mxu0 0.0
          %3775 = vmatpush1.msra.mxu0 %v3678
          %3776 = vmatprep.subr.mxu0 0.0
          %3777 = vmatpush1.msra.mxu0 %v3679
          %3778 = vmatprep.subr.mxu0 0.0
          %3779 = vmatpush1.msra.mxu0 %v3680
          %3780 = vmatprep.subr.mxu0 0.0
          %3781 = vmatpush1.msra.mxu0 %v3681
          %3782 = vmatprep.subr.mxu0 0.0
          %3783 = vmatpush1.msra.mxu0 %v3682
          %3784 = vmatprep.subr.mxu0 0.0
          %3785 = vmatpush1.msra.mxu0 %v3683
          %3786 = vmatprep.subr.mxu0 0.0
          %3787 = vmatpush1.msra.mxu0 %v3684
          %3788 = vmatprep.mubr.f32.mxu0 %v2799
          %3789 = vmatmul.mubr.f32.gmra.mrb[0].mxu0 %v2797
          %v3790 = vpop.f32.mrb[0].mxu0
          %v3791 = vadd.f32 %v3722, %v3790
          %v3792 = vpop.f32.mrb[0].mxu0
          %3793 = vdwg.mxu0
          %3794 = vmatprep.subr.mxu0 0.0
          %3795 = vmatpush1.msra.mxu0 %v3685
          %3796 = vmatprep.subr.mxu0 0.0
          %3797 = vmatpush1.msra.mxu0 %v3686
          %3798 = vmatprep.subr.mxu0 0.0
          %3799 = vmatpush1.msra.mxu0 %v3687
          %3800 = vmatprep.subr.mxu0 0.0
          %3801 = vmatpush1.msra.mxu0 %v3688
          %3802 = vmatprep.subr.mxu0 0.0
          %3803 = vmatpush1.msra.mxu0 %v3689
          %3804 = vmatprep.subr.mxu0 0.0
          %3805 = vmatpush1.msra.mxu0 %v3690
          %3806 = vmatprep.subr.mxu0 0.0
          %3807 = vmatpush1.msra.mxu0 %v3691
          %3808 = vmatprep.subr.mxu0 0.0
          %3809 = vmatpush1.msra.mxu0 %v3692
          %3810 = vmatprep.subr.mxu0 0.0
          %3811 = vmatpush1.msra.mxu0 %v3693
          %3812 = vmatprep.subr.mxu0 0.0
          %3813 = vmatpush1.msra.mxu0 %v3694
          %3814 = vmatprep.subr.mxu0 0.0
          %3815 = vmatpush1.msra.mxu0 %v3695
          %3816 = vmatprep.subr.mxu0 0.0
          %3817 = vmatpush1.msra.mxu0 %v3696
          %3818 = vmatprep.subr.mxu0 0.0
          %3819 = vmatpush1.msra.mxu0 %v3697
          %3820 = vmatprep.subr.mxu0 0.0
          %3821 = vmatpush1.msra.mxu0 %v3698
          %3822 = vmatprep.subr.mxu0 0.0
          %3823 = vmatpush1.msra.mxu0 %v3699
          %3824 = vmatprep.subr.mxu0 0.0
          %3825 = vmatpush1.msra.mxu0 %v3700
          %3826 = vmatprep.subr.mxu0 0.0
          %3827 = vmatpush1.msra.mxu0 %v3701
          %3828 = vmatprep.subr.mxu0 0.0
          %3829 = vmatpush1.msra.mxu0 %v3702
          %3830 = vmatprep.subr.mxu0 0.0
          %3831 = vmatpush1.msra.mxu0 %v3703
          %3832 = vmatprep.subr.mxu0 0.0
          %3833 = vmatpush1.msra.mxu0 %v3704
          %3834 = vmatprep.subr.mxu0 0.0
          %3835 = vmatpush1.msra.mxu0 %v3705
          %3836 = vmatprep.subr.mxu0 0.0
          %3837 = vmatpush1.msra.mxu0 %v3706
          %3838 = vmatprep.subr.mxu0 0.0
          %3839 = vmatpush1.msra.mxu0 %v3707
          %3840 = vmatprep.subr.mxu0 0.0
          %3841 = vmatpush1.msra.mxu0 %v3708
          %3842 = vmatprep.subr.mxu0 0.0
          %3843 = vmatpush1.msra.mxu0 %v3709
          %3844 = vmatprep.subr.mxu0 0.0
          %3845 = vmatpush1.msra.mxu0 %v3710
          %3846 = vmatprep.subr.mxu0 0.0
          %3847 = vmatpush1.msra.mxu0 %v3711
          %3848 = vmatprep.subr.mxu0 0.0
          %3849 = vmatpush1.msra.mxu0 %v3712
          %3850 = vmatprep.subr.mxu0 0.0
          %3851 = vmatpush1.msra.mxu0 %v3713
          %3852 = vmatprep.subr.mxu0 0.0
          %3853 = vmatpush1.msra.mxu0 %v3714
          %3854 = vmatprep.subr.mxu0 0.0
          %3855 = vmatpush1.msra.mxu0 %v3715
          %3856 = vmatprep.subr.mxu0 0.0
          %3857 = vmatpush1.msra.mxu0 %v3716
          %3858 = vmatprep.mubr.f32.mxu0 %v3651
          %3859 = vmatmul.mubr.f32.gmra.mrb[0].mxu0 %v3649
          %v3860 = vpop.f32.mrb[0].mxu0
          %v3861 = vadd.f32 %v3791, %v3860
          %v3862 = vpop.f32.mrb[0].mxu0
          %3863 = vdwg.mxu0
          %3864 = vst [vmem:[%s236] sm:$0xff] %v3861
        $region48: #{resnet_classifier.1} parent=35 // pred_fallthru
          _
        %p3865 = scmp.lt.s32.totalorder %s20, 0
        %s3866 = scalar_select %p3865, %s20, 0
        %s3867 = smul.addr %s3866, 8
        %s3868 = scalar_lea.vmem %s4, %s3867
        // Predicated region
        $region49: #{resnet_classifier.1} parent=35 // pred_check
          %p3869 = pneg %p137
        $region50: #{resnet_classifier.1} parent=35 // pred_check_branch
          %3871 = sbr.rel (%p3869) target = $region52
        $region51: #{resnet_classifier.1} parent=35 // pred_region
          _
        $region52: #{resnet_classifier.1} parent=35 // pred_fallthru
          _
        // Predicated region
        $region53: #{resnet_classifier.1} parent=35 // pred_check
          %p3872 = pneg %p137
        $region54: #{resnet_classifier.1} parent=35 // pred_check_branch
          %3874 = sbr.rel (%p3872) target = $region56
        $region55: #{resnet_classifier.1} parent=35 // pred_region
          %p3875 = scmp.lt.s32.totalorder %s20, 0
          %s3876 = scalar_select %p3875, %s20, 0
          %s3877 = smul.addr %s3876, 8
          %s3878 = scalar_lea.vmem %s4, %s3877
        $region56: #{resnet_classifier.1} parent=35 // pred_fallthru
          _
      $region36: #{resnet_classifier.1} parent=5 // pred_fallthru
        _
      %p3879 = scmp.le.s32.totalorder 2, %s11
      // Predicated region
      $region57: #{resnet_classifier.1} parent=5 // pred_check
        %p3880 = pneg %p3879
      $region58: #{resnet_classifier.1} parent=5 // pred_check_branch
        %3882 = sbr.rel (%p3880) target = $region60
      $region59: #{resnet_classifier.1} parent=5 // pred_region
        %s3883 = ssub.s32 %s11, 2
      $region60: #{resnet_classifier.1} parent=5 // pred_fallthru
        _
    $region6: #{resnet_classifier.1} parent=1 // loop_footer
      %s15 = sadd.s32 1, %s11
    $region7: #{resnet_classifier.1} parent=1 // loop_footer_branch
      %10 = sbr.rel target = $region3
    $region8: #{resnet_classifier.1} parent=1 // loop_exit
      _
    %3884 = vsyncpa [#allocation4], 1
    %s3885 = scalar_lea.sflag [#allocation4], 1
    %3886 = vsyncpa %s3885, 1

</llo_original>
